<compile_context>
chip_gen: v5e
topology: v5e:2x2
jax: 0.10.0
libtpu: 0.0.40
codegen_flags: <defaults>
</compile_context>

<pallas_src>
import functools

import jax
import jax.numpy as jnp
from jax import lax
from jax.experimental import pallas as pl
from jax.experimental.pallas import tpu as pltpu

PARAM_ORDER = (
    "wqkv",                     # fused (k, 3*h*k) projection, bf16, scale folded
    "wu", "bu",                 # unifyheads: (h*k, k) bf16, (1, k) f32
    "g1", "be1",                # norm1 gamma/beta: (1, k) f32
    "w1", "b1",                 # ff layer 1: (k, 4k) bf16, (1, 4k) f32
    "w2", "b2",                 # ff layer 2: (4k, k) bf16, (1, k) f32
    "g2", "be2",                # norm2 gamma/beta: (1, k) f32
)


def _layer_norm(x, gamma, beta, eps=1e-5):
    mu = jnp.mean(x, axis=-1, keepdims=True)
    var = jnp.mean((x - mu) ** 2, axis=-1, keepdims=True)
    return (x - mu) * lax.rsqrt(var + eps) * gamma + beta


def transformer_block_kernel(heads, seq_len, batch_block, ff_chunk,
                             x_ref, wqkv_ref, wu_ref, bu_ref,
                             g1_ref, be1_ref, w1_ref, b1_ref, w2_ref, b2_ref,
                             g2_ref, be2_ref, o_ref, qkv_scr, ho_scr):
    h = heads
    t = seq_len
    rows, k = x_ref.shape            # rows = batch_block * seq_len
    d = k                            # per-head dim == embedding dim (module spec)
    hd = h * d

    xf = x_ref[...]                  # (rows, k) f32: residual / LayerNorm path
    xb = xf.astype(jnp.bfloat16)     # bf16 MXU operand

    # ---- Fused QKV projection: one wide MXU pass (bf16 in, f32 accum), then
    # the bf16 result is staged in VMEM scratch.  1/k**0.25 is pre-folded.
    qkv_scr[...] = jnp.dot(
        xb, wqkv_ref[...], preferred_element_type=jnp.float32
    ).astype(jnp.bfloat16)                                    # (rows, 3*h*d)

    # ---- Attention per (batch-in-block, head) on static ref slices.  Each
    # head's output lands in ho_scr so unifyheads runs once with the full h*d
    # contraction dim.
    for bi in range(batch_block):
        r0 = bi * t
        for head in range(h):
            c0 = head * d
            qh = qkv_scr[r0:r0 + t, c0:c0 + d]                        # (t, d) bf16
            kh = qkv_scr[r0:r0 + t, hd + c0:hd + c0 + d]              # (t, d) bf16
            vh = qkv_scr[r0:r0 + t, 2 * hd + c0:2 * hd + c0 + d]      # (t, d) bf16
            # contract on dim 1 of both operands -> no kh.T transpose
            s = lax.dot_general(qh, kh, (((1,), (1,)), ((), ())),
                                preferred_element_type=jnp.float32)   # (t, t) f32
            m = jnp.max(s, axis=-1, keepdims=True)
            e = jnp.exp(s - m)
            p = e * pl.reciprocal(jnp.sum(e, axis=-1, keepdims=True),
                                  approx=True)
            ho = jnp.dot(p.astype(jnp.bfloat16), vh,
                         preferred_element_type=jnp.float32)          # (t, d) f32
            ho_scr[r0:r0 + t, c0:c0 + d] = ho.astype(jnp.bfloat16)

    # ---- unifyheads: single (rows, h*d) @ (h*d, k) MXU pass.
    attended = jnp.dot(ho_scr[...], wu_ref[...],
                       preferred_element_type=jnp.float32) + bu_ref[...]

    # ---- residual + norm1 (f32)
    x1 = _layer_norm(attended + xf, g1_ref[...], be1_ref[...])
    x1b = x1.astype(jnp.bfloat16)

    # ---- feed-forward, tiled over the 4k hidden dimension.
    ff_dim = w1_ref.shape[1]
    ff = jnp.zeros((rows, k), jnp.float32)
    for c0 in range(0, ff_dim, ff_chunk):
        hid = jnp.maximum(
            jnp.dot(x1b, w1_ref[:, c0:c0 + ff_chunk],
                    preferred_element_type=jnp.float32)
            + b1_ref[:, c0:c0 + ff_chunk], 0.0)
        ff = ff + jnp.dot(hid.astype(jnp.bfloat16),
                          w2_ref[c0:c0 + ff_chunk, :],
                          preferred_element_type=jnp.float32)
    ff = ff + b2_ref[...]

    # ---- residual + norm2 (f32)
    o_ref[...] = _layer_norm(ff + x1, g2_ref[...], be2_ref[...])


def transformer_block(x, params, heads, *, batch_block=None, ff_chunk=None):
    b, t, k = x.shape
    h = heads
    ff_dim = 4 * k

    if batch_block is None:
        # Target a few hundred rows per grid step, but keep >= 2 grid steps
        # when the batch allows so both v7x TensorCores get work.
        target_rows = 256
        batch_block = max(1, min(b, target_rows // max(t, 1)))
        if b >= 2:
            batch_block = min(batch_block, max(1, b // 2))
        while b % batch_block != 0:
            batch_block -= 1
    rows = batch_block * t
    # (8, 128) rule: second-to-last block dim divisible by 8 or full extent.
    if rows % 8 != 0 and batch_block != b:
        batch_block = b
        rows = b * t
    grid = (b // batch_block,)

    if ff_chunk is None:
        ff_chunk = 512 if (ff_dim > 512 and ff_dim % 512 == 0) else ff_dim

    x2 = x.reshape(b * t, k).astype(jnp.float32)   # row slab
    plist = [params[name] for name in PARAM_ORDER]

    # advisory cost estimate for XLA scheduling
    flops = (2 * b * t * k * (3 * h * k)            # fused QKV projection
             + b * h * 4 * t * t * k                # scores + att @ v
             + 2 * b * t * (h * k) * k              # unifyheads
             + 2 * 2 * b * t * k * ff_dim)          # FFN
    transcendentals = b * h * t * t + 2 * b * t
    bytes_accessed = (2 * b * t * k * 4
                      + sum(int(p.size) * p.dtype.itemsize for p in plist))
    scratch_bytes = rows * (3 * h * k) * 2 + rows * (h * k) * 2   # bf16 scratch

    def _run(single_buffer_weights):
        weight_kwargs = ({"pipeline_mode": pl.Buffered(1)}
                         if single_buffer_weights else {})
        in_specs = [pl.BlockSpec((rows, k), lambda i: (i, 0))]
        for p in plist:
            in_specs.append(
                pl.BlockSpec(p.shape, lambda i: (0, 0), **weight_kwargs))

        weight_bytes = sum(int(p.size) * p.dtype.itemsize for p in plist)
        weight_bytes *= 1 if single_buffer_weights else 2
        io_bytes = 2 * 2 * rows * k * 4            # x + out tiles, double-buffered
        vmem_limit = int(min(64 << 20,
                             max(16 << 20,
                                 2 * (weight_bytes + io_bytes + scratch_bytes)
                                 + (4 << 20))))

        return pl.pallas_call(
            functools.partial(transformer_block_kernel, h, t, batch_block,
                              ff_chunk),
            out_shape=jax.ShapeDtypeStruct((b * t, k), jnp.float32),
            grid_spec=pltpu.PrefetchScalarGridSpec(
                num_scalar_prefetch=0,
                grid=grid,
                in_specs=in_specs,
                out_specs=pl.BlockSpec((rows, k), lambda i: (i, 0)),
                scratch_shapes=[
                    pltpu.VMEM((rows, 3 * h * k), jnp.bfloat16),   # qkv staging
                    pltpu.VMEM((rows, h * k), jnp.bfloat16),       # head outputs
                ]),
            compiler_params=pltpu.CompilerParams(
                dimension_semantics=("parallel",),
                vmem_limit_bytes=vmem_limit),
            cost_estimate=pl.CostEstimate(
                flops=int(flops),
                transcendentals=int(transcendentals),
                bytes_accessed=int(bytes_accessed)),
        )(x2, *plist)

    try:
        out = _run(True)
    except Exception:
        # TODO(synk): pl.Buffered(1) single-buffered weights rejected on this
        # jax version; fall back to default double-buffered weight blocks.
        out = _run(False)

    return out.reshape(b, t, k)


def init_params(k, heads, key):
    """Deterministic synthetic f32 parameters matching the nn.Module shapes."""
    keys = jax.random.split(key, 8)

    def lin(kk, fan_in, shape):
        return (jax.random.normal(kk, shape, jnp.float32)
                / jnp.sqrt(jnp.float32(fan_in)))

    return {
        "wq": lin(keys[0], k, (k, k * heads)),
        "wk": lin(keys[1], k, (k, k * heads)),
        "wv": lin(keys[2], k, (k, k * heads)),
        "wu": lin(keys[3], k * heads, (k * heads, k)),
        "bu": lin(keys[4], k * heads, (1, k)),
        "g1": jnp.ones((1, k), jnp.float32),
        "be1": jnp.zeros((1, k), jnp.float32),
        "w1": lin(keys[5], k, (k, 4 * k)),
        "b1": lin(keys[6], k, (1, 4 * k)),
        "w2": lin(keys[7], 4 * k, (4 * k, k)),
        "b2": jnp.zeros((1, k), jnp.float32),
        "g2": jnp.ones((1, k), jnp.float32),
        "be2": jnp.zeros((1, k), jnp.float32),
    }


def prepare_params(params, k):
    """One-time transform: fold 1/k**0.25 into wq/wk, fuse wq|wk|wv into one
    (k, 3*h*k) weight, and cast matmul weights to bf16 (biases / norm params
    stay f32)."""
    scale = jnp.float32(k) ** 0.25
    wqkv = jnp.concatenate(
        [params["wq"] / scale, params["wk"] / scale, params["wv"]],
        axis=1).astype(jnp.bfloat16)
    return {
        "wqkv": wqkv,
        "wu": params["wu"].astype(jnp.bfloat16),
        "bu": params["bu"],
        "g1": params["g1"], "be1": params["be1"],
        "w1": params["w1"].astype(jnp.bfloat16),
        "b1": params["b1"],
        "w2": params["w2"].astype(jnp.bfloat16),
        "b2": params["b2"],
        "g2": params["g2"], "be2": params["be2"],
    }


def reference(x, params, heads):
    """Pure-JAX f32 mirror of the PyTorch TransformerBlock.forward."""
    b, t, k = x.shape
    h = heads
    scale = k ** 0.25

    q = (x @ params["wq"]).reshape(b, t, h, k) / scale
    kk = (x @ params["wk"]).reshape(b, t, h, k) / scale
    v = (x @ params["wv"]).reshape(b, t, h, k)

    dot = jnp.einsum("bqhd,bkhd->bhqk", q, kk)
    att = jax.nn.softmax(dot, axis=-1)
    out = jnp.einsum("bhqk,bkhd->bqhd", att, v).reshape(b, t, h * k)
    attended = out @ params["wu"] + params["bu"]

    x1 = _layer_norm(attended + x, params["g1"], params["be1"])
    ff = jnp.maximum(x1 @ params["w1"] + params["b1"], 0.0) @ params["w2"] \
        + params["b2"]
    return _layer_norm(ff + x1, params["g2"], params["be2"])


if __name__ == "__main__":
    K, HEADS, B, T = 32, 8, 2, 8

    root = jax.random.PRNGKey(0)
    kx, kp = jax.random.split(root)
    x = jax.random.normal(kx, (B, T, K), dtype=jnp.float32)

    params_f32 = init_params(K, HEADS, kp)         # f32 reference params
    params_kernel = prepare_params(params_f32, K)  # bf16 / fused / scale-folded

    out = transformer_block(x, params_kernel, HEADS)
    out = jax.block_until_ready(out)

    ref = reference(x, params_f32, HEADS)
    assert out.shape == (B, T, K)
    max_err = jnp.max(jnp.abs(out - ref))
    # bf16 matmul operands (f32 accumulation) -> slightly loosened tolerance.
    assert jnp.allclose(out, ref, rtol=5e-2, atol=5e-2), \
        f"max abs err = {max_err}"

    print("KERNEL_OK")
</pallas_src>

<mosaic_0001>
module attributes {stable_mosaic.version = 11 : i64} {
  func.func @transformer_block_kernel(%arg0: i32, %arg1: memref<8x32xf32, #tpu.memory_space<vmem>>, %arg2: memref<32x768xbf16, #tpu.memory_space<vmem>>, %arg3: memref<256x32xbf16, #tpu.memory_space<vmem>>, %arg4: memref<1x32xf32, #tpu.memory_space<vmem>>, %arg5: memref<1x32xf32, #tpu.memory_space<vmem>>, %arg6: memref<1x32xf32, #tpu.memory_space<vmem>>, %arg7: memref<32x128xbf16, #tpu.memory_space<vmem>>, %arg8: memref<1x128xf32, #tpu.memory_space<vmem>>, %arg9: memref<128x32xbf16, #tpu.memory_space<vmem>>, %arg10: memref<1x32xf32, #tpu.memory_space<vmem>>, %arg11: memref<1x32xf32, #tpu.memory_space<vmem>>, %arg12: memref<1x32xf32, #tpu.memory_space<vmem>>, %arg13: memref<8x32xf32, #tpu.memory_space<vmem>>, %arg14: memref<8x768xbf16, #tpu.memory_space<vmem>>, %arg15: memref<8x256xbf16, #tpu.memory_space<vmem>>) attributes {dimension_semantics = [#tpu.dimension_semantics<parallel>], iteration_bounds = array<i64: 2>, scalar_prefetch = 0 : i64, scratch_operands = 2 : i64, tpu.core_type = #tpu.core_type<tc>, window_params = [{transform_indices = @transform_0, window_bounds = array<i64: 8, 32>}, {pipeline_mode = #tpu.pipeline_mode<synchronous>, transform_indices = @transform_1, window_bounds = array<i64: 32, 768>}, {pipeline_mode = #tpu.pipeline_mode<synchronous>, transform_indices = @transform_2, window_bounds = array<i64: 256, 32>}, {pipeline_mode = #tpu.pipeline_mode<synchronous>, transform_indices = @transform_3, window_bounds = array<i64: 1, 32>}, {pipeline_mode = #tpu.pipeline_mode<synchronous>, transform_indices = @transform_4, window_bounds = array<i64: 1, 32>}, {pipeline_mode = #tpu.pipeline_mode<synchronous>, transform_indices = @transform_5, window_bounds = array<i64: 1, 32>}, {pipeline_mode = #tpu.pipeline_mode<synchronous>, transform_indices = @transform_6, window_bounds = array<i64: 32, 128>}, {pipeline_mode = #tpu.pipeline_mode<synchronous>, transform_indices = @transform_7, window_bounds = array<i64: 1, 128>}, {pipeline_mode = #tpu.pipeline_mode<synchronous>, transform_indices = @transform_8, window_bounds = array<i64: 128, 32>}, {pipeline_mode = #tpu.pipeline_mode<synchronous>, transform_indices = @transform_9, window_bounds = array<i64: 1, 32>}, {pipeline_mode = #tpu.pipeline_mode<synchronous>, transform_indices = @transform_10, window_bounds = array<i64: 1, 32>}, {pipeline_mode = #tpu.pipeline_mode<synchronous>, transform_indices = @transform_11, window_bounds = array<i64: 1, 32>}, {transform_indices = @transform_12, window_bounds = array<i64: 8, 32>}]} {
    %c0 = arith.constant 0 : index
    %c0_0 = arith.constant 0 : index
    %0 = vector.load %arg1[%c0, %c0_0] : memref<8x32xf32, #tpu.memory_space<vmem>>, vector<8x32xf32>
    %1 = arith.truncf %0 : vector<8x32xf32> to vector<8x32xbf16>
    %c0_1 = arith.constant 0 : index
    %c0_2 = arith.constant 0 : index
    %2 = vector.load %arg2[%c0_1, %c0_2] : memref<32x768xbf16, #tpu.memory_space<vmem>>, vector<32x768xbf16>
    %cst = arith.constant dense<0.000000e+00> : vector<8x768xf32>
    %3 = tpu.matmul %1, %2, %cst {dimension_numbers = #tpu.dot_dimension_numbers<[1], [0], [0], [1], [0, 0, 1, 1], [], []>} : vector<8x32xbf16>, vector<32x768xbf16>, vector<8x768xf32> -> vector<8x768xf32>
    %4 = arith.truncf %3 : vector<8x768xf32> to vector<8x768xbf16>
    %c0_3 = arith.constant 0 : index
    %c0_4 = arith.constant 0 : index
    %5 = vector.load %arg14[%c0_3, %c0_4] : memref<8x768xbf16, #tpu.memory_space<vmem>>, vector<8x768xbf16>
    tpu.vector_store %arg14[%c0_3, %c0_4], %4 {strides = array<i32>} : memref<8x768xbf16, #tpu.memory_space<vmem>>, vector<8x768xbf16>,
    %c0_5 = arith.constant 0 : index
    %c0_6 = arith.constant 0 : index
    %6 = vector.load %arg14[%c0_5, %c0_6] : memref<8x768xbf16, #tpu.memory_space<vmem>>, vector<8x32xbf16>
    %c0_7 = arith.constant 0 : index
    %c256 = arith.constant 256 : index
    %7 = vector.load %arg14[%c0_7, %c256] : memref<8x768xbf16, #tpu.memory_space<vmem>>, vector<8x32xbf16>
    %c0_8 = arith.constant 0 : index
    %c512 = arith.constant 512 : index
    %8 = vector.load %arg14[%c0_8, %c512] : memref<8x768xbf16, #tpu.memory_space<vmem>>, vector<8x32xbf16>
    %cst_9 = arith.constant dense<0.000000e+00> : vector<8x8xf32>
    %9 = tpu.matmul %6, %7, %cst_9 {dimension_numbers = #tpu.dot_dimension_numbers<[1], [1], [0], [0], [0, 0, 1, 0], [], []>} : vector<8x32xbf16>, vector<8x32xbf16>, vector<8x8xf32> -> vector<8x8xf32>
    %cst_10 = arith.constant dense<0xFF800000> : vector<8xf32>
    %10 = vector.multi_reduction <maximumf>, %9, %cst_10 [1] : vector<8x8xf32> to vector<8xf32>
    %11 = vector.shape_cast %10 : vector<8xf32> to vector<8x1xf32>
    %12 = vector.broadcast %11 : vector<8x1xf32> to vector<8x8xf32>
    %13 = arith.subf %9, %12 : vector<8x8xf32>
    %14 = math.exp %13 : vector<8x8xf32>
    %cst_11 = arith.constant dense<0.000000e+00> : vector<8xf32>
    %15 = vector.multi_reduction <add>, %14, %cst_11 [1] : vector<8x8xf32> to vector<8xf32>
    %16 = vector.shape_cast %15 : vector<8xf32> to vector<8x1xf32>
    %17 = tpu.reciprocal %16 {approx = true} : vector<8x1xf32> -> vector<8x1xf32>
    %18 = vector.broadcast %17 : vector<8x1xf32> to vector<8x8xf32>
    %19 = arith.mulf %14, %18 : vector<8x8xf32>
    %20 = arith.truncf %19 : vector<8x8xf32> to vector<8x8xbf16>
    %cst_12 = arith.constant dense<0.000000e+00> : vector<8x32xf32>
    %21 = tpu.matmul %20, %8, %cst_12 {dimension_numbers = #tpu.dot_dimension_numbers<[1], [0], [0], [1], [0, 0, 1, 1], [], []>} : vector<8x8xbf16>, vector<8x32xbf16>, vector<8x32xf32> -> vector<8x32xf32>
    %22 = arith.truncf %21 : vector<8x32xf32> to vector<8x32xbf16>
    %c0_13 = arith.constant 0 : index
    %c0_14 = arith.constant 0 : index
    %23 = vector.load %arg15[%c0_13, %c0_14] : memref<8x256xbf16, #tpu.memory_space<vmem>>, vector<8x32xbf16>
    tpu.vector_store %arg15[%c0_13, %c0_14], %22 {strides = array<i32>} : memref<8x256xbf16, #tpu.memory_space<vmem>>, vector<8x32xbf16>,
    %c0_15 = arith.constant 0 : index
    %c32 = arith.constant 32 : index
    %24 = vector.load %arg14[%c0_15, %c32] : memref<8x768xbf16, #tpu.memory_space<vmem>>, vector<8x32xbf16>
    %c0_16 = arith.constant 0 : index
    %c288 = arith.constant 288 : index
    %25 = vector.load %arg14[%c0_16, %c288] : memref<8x768xbf16, #tpu.memory_space<vmem>>, vector<8x32xbf16>
    %c0_17 = arith.constant 0 : index
    %c544 = arith.constant 544 : index
    %26 = vector.load %arg14[%c0_17, %c544] : memref<8x768xbf16, #tpu.memory_space<vmem>>, vector<8x32xbf16>
    %cst_18 = arith.constant dense<0.000000e+00> : vector<8x8xf32>
    %27 = tpu.matmul %24, %25, %cst_18 {dimension_numbers = #tpu.dot_dimension_numbers<[1], [1], [0], [0], [0, 0, 1, 0], [], []>} : vector<8x32xbf16>, vector<8x32xbf16>, vector<8x8xf32> -> vector<8x8xf32>
    %cst_19 = arith.constant dense<0xFF800000> : vector<8xf32>
    %28 = vector.multi_reduction <maximumf>, %27, %cst_19 [1] : vector<8x8xf32> to vector<8xf32>
    %29 = vector.shape_cast %28 : vector<8xf32> to vector<8x1xf32>
    %30 = vector.broadcast %29 : vector<8x1xf32> to vector<8x8xf32>
    %31 = arith.subf %27, %30 : vector<8x8xf32>
    %32 = math.exp %31 : vector<8x8xf32>
    %cst_20 = arith.constant dense<0.000000e+00> : vector<8xf32>
    %33 = vector.multi_reduction <add>, %32, %cst_20 [1] : vector<8x8xf32> to vector<8xf32>
    %34 = vector.shape_cast %33 : vector<8xf32> to vector<8x1xf32>
    %35 = tpu.reciprocal %34 {approx = true} : vector<8x1xf32> -> vector<8x1xf32>
    %36 = vector.broadcast %35 : vector<8x1xf32> to vector<8x8xf32>
    %37 = arith.mulf %32, %36 : vector<8x8xf32>
    %38 = arith.truncf %37 : vector<8x8xf32> to vector<8x8xbf16>
    %cst_21 = arith.constant dense<0.000000e+00> : vector<8x32xf32>
    %39 = tpu.matmul %38, %26, %cst_21 {dimension_numbers = #tpu.dot_dimension_numbers<[1], [0], [0], [1], [0, 0, 1, 1], [], []>} : vector<8x8xbf16>, vector<8x32xbf16>, vector<8x32xf32> -> vector<8x32xf32>
    %40 = arith.truncf %39 : vector<8x32xf32> to vector<8x32xbf16>
    %c0_22 = arith.constant 0 : index
    %c32_23 = arith.constant 32 : index
    %41 = vector.load %arg15[%c0_22, %c32_23] : memref<8x256xbf16, #tpu.memory_space<vmem>>, vector<8x32xbf16>
    tpu.vector_store %arg15[%c0_22, %c32_23], %40 {strides = array<i32>} : memref<8x256xbf16, #tpu.memory_space<vmem>>, vector<8x32xbf16>,
    %c0_24 = arith.constant 0 : index
    %c64 = arith.constant 64 : index
    %42 = vector.load %arg14[%c0_24, %c64] : memref<8x768xbf16, #tpu.memory_space<vmem>>, vector<8x32xbf16>
    %c0_25 = arith.constant 0 : index
    %c320 = arith.constant 320 : index
    %43 = vector.load %arg14[%c0_25, %c320] : memref<8x768xbf16, #tpu.memory_space<vmem>>, vector<8x32xbf16>
    %c0_26 = arith.constant 0 : index
    %c576 = arith.constant 576 : index
    %44 = vector.load %arg14[%c0_26, %c576] : memref<8x768xbf16, #tpu.memory_space<vmem>>, vector<8x32xbf16>
    %cst_27 = arith.constant dense<0.000000e+00> : vector<8x8xf32>
    %45 = tpu.matmul %42, %43, %cst_27 {dimension_numbers = #tpu.dot_dimension_numbers<[1], [1], [0], [0], [0, 0, 1, 0], [], []>} : vector<8x32xbf16>, vector<8x32xbf16>, vector<8x8xf32> -> vector<8x8xf32>
    %cst_28 = arith.constant dense<0xFF800000> : vector<8xf32>
    %46 = vector.multi_reduction <maximumf>, %45, %cst_28 [1] : vector<8x8xf32> to vector<8xf32>
    %47 = vector.shape_cast %46 : vector<8xf32> to vector<8x1xf32>
    %48 = vector.broadcast %47 : vector<8x1xf32> to vector<8x8xf32>
    %49 = arith.subf %45, %48 : vector<8x8xf32>
    %50 = math.exp %49 : vector<8x8xf32>
    %cst_29 = arith.constant dense<0.000000e+00> : vector<8xf32>
    %51 = vector.multi_reduction <add>, %50, %cst_29 [1] : vector<8x8xf32> to vector<8xf32>
    %52 = vector.shape_cast %51 : vector<8xf32> to vector<8x1xf32>
    %53 = tpu.reciprocal %52 {approx = true} : vector<8x1xf32> -> vector<8x1xf32>
    %54 = vector.broadcast %53 : vector<8x1xf32> to vector<8x8xf32>
    %55 = arith.mulf %50, %54 : vector<8x8xf32>
    %56 = arith.truncf %55 : vector<8x8xf32> to vector<8x8xbf16>
    %cst_30 = arith.constant dense<0.000000e+00> : vector<8x32xf32>
    %57 = tpu.matmul %56, %44, %cst_30 {dimension_numbers = #tpu.dot_dimension_numbers<[1], [0], [0], [1], [0, 0, 1, 1], [], []>} : vector<8x8xbf16>, vector<8x32xbf16>, vector<8x32xf32> -> vector<8x32xf32>
    %58 = arith.truncf %57 : vector<8x32xf32> to vector<8x32xbf16>
    %c0_31 = arith.constant 0 : index
    %c64_32 = arith.constant 64 : index
    %59 = vector.load %arg15[%c0_31, %c64_32] : memref<8x256xbf16, #tpu.memory_space<vmem>>, vector<8x32xbf16>
    tpu.vector_store %arg15[%c0_31, %c64_32], %58 {strides = array<i32>} : memref<8x256xbf16, #tpu.memory_space<vmem>>, vector<8x32xbf16>,
    %c0_33 = arith.constant 0 : index
    %c96 = arith.constant 96 : index
    %60 = vector.load %arg14[%c0_33, %c96] : memref<8x768xbf16, #tpu.memory_space<vmem>>, vector<8x32xbf16>
    %c0_34 = arith.constant 0 : index
    %c352 = arith.constant 352 : index
    %61 = vector.load %arg14[%c0_34, %c352] : memref<8x768xbf16, #tpu.memory_space<vmem>>, vector<8x32xbf16>
    %c0_35 = arith.constant 0 : index
    %c608 = arith.constant 608 : index
    %62 = vector.load %arg14[%c0_35, %c608] : memref<8x768xbf16, #tpu.memory_space<vmem>>, vector<8x32xbf16>
    %cst_36 = arith.constant dense<0.000000e+00> : vector<8x8xf32>
    %63 = tpu.matmul %60, %61, %cst_36 {dimension_numbers = #tpu.dot_dimension_numbers<[1], [1], [0], [0], [0, 0, 1, 0], [], []>} : vector<8x32xbf16>, vector<8x32xbf16>, vector<8x8xf32> -> vector<8x8xf32>
    %cst_37 = arith.constant dense<0xFF800000> : vector<8xf32>
    %64 = vector.multi_reduction <maximumf>, %63, %cst_37 [1] : vector<8x8xf32> to vector<8xf32>
    %65 = vector.shape_cast %64 : vector<8xf32> to vector<8x1xf32>
    %66 = vector.broadcast %65 : vector<8x1xf32> to vector<8x8xf32>
    %67 = arith.subf %63, %66 : vector<8x8xf32>
    %68 = math.exp %67 : vector<8x8xf32>
    %cst_38 = arith.constant dense<0.000000e+00> : vector<8xf32>
    %69 = vector.multi_reduction <add>, %68, %cst_38 [1] : vector<8x8xf32> to vector<8xf32>
    %70 = vector.shape_cast %69 : vector<8xf32> to vector<8x1xf32>
    %71 = tpu.reciprocal %70 {approx = true} : vector<8x1xf32> -> vector<8x1xf32>
    %72 = vector.broadcast %71 : vector<8x1xf32> to vector<8x8xf32>
    %73 = arith.mulf %68, %72 : vector<8x8xf32>
    %74 = arith.truncf %73 : vector<8x8xf32> to vector<8x8xbf16>
    %cst_39 = arith.constant dense<0.000000e+00> : vector<8x32xf32>
    %75 = tpu.matmul %74, %62, %cst_39 {dimension_numbers = #tpu.dot_dimension_numbers<[1], [0], [0], [1], [0, 0, 1, 1], [], []>} : vector<8x8xbf16>, vector<8x32xbf16>, vector<8x32xf32> -> vector<8x32xf32>
    %76 = arith.truncf %75 : vector<8x32xf32> to vector<8x32xbf16>
    %c0_40 = arith.constant 0 : index
    %c96_41 = arith.constant 96 : index
    %77 = vector.load %arg15[%c0_40, %c96_41] : memref<8x256xbf16, #tpu.memory_space<vmem>>, vector<8x32xbf16>
    tpu.vector_store %arg15[%c0_40, %c96_41], %76 {strides = array<i32>} : memref<8x256xbf16, #tpu.memory_space<vmem>>, vector<8x32xbf16>,
    %c0_42 = arith.constant 0 : index
    %c128 = arith.constant 128 : index
    %78 = vector.load %arg14[%c0_42, %c128] : memref<8x768xbf16, #tpu.memory_space<vmem>>, vector<8x32xbf16>
    %c0_43 = arith.constant 0 : index
    %c384 = arith.constant 384 : index
    %79 = vector.load %arg14[%c0_43, %c384] : memref<8x768xbf16, #tpu.memory_space<vmem>>, vector<8x32xbf16>
    %c0_44 = arith.constant 0 : index
    %c640 = arith.constant 640 : index
    %80 = vector.load %arg14[%c0_44, %c640] : memref<8x768xbf16, #tpu.memory_space<vmem>>, vector<8x32xbf16>
    %cst_45 = arith.constant dense<0.000000e+00> : vector<8x8xf32>
    %81 = tpu.matmul %78, %79, %cst_45 {dimension_numbers = #tpu.dot_dimension_numbers<[1], [1], [0], [0], [0, 0, 1, 0], [], []>} : vector<8x32xbf16>, vector<8x32xbf16>, vector<8x8xf32> -> vector<8x8xf32>
    %cst_46 = arith.constant dense<0xFF800000> : vector<8xf32>
    %82 = vector.multi_reduction <maximumf>, %81, %cst_46 [1] : vector<8x8xf32> to vector<8xf32>
    %83 = vector.shape_cast %82 : vector<8xf32> to vector<8x1xf32>
    %84 = vector.broadcast %83 : vector<8x1xf32> to vector<8x8xf32>
    %85 = arith.subf %81, %84 : vector<8x8xf32>
    %86 = math.exp %85 : vector<8x8xf32>
    %cst_47 = arith.constant dense<0.000000e+00> : vector<8xf32>
    %87 = vector.multi_reduction <add>, %86, %cst_47 [1] : vector<8x8xf32> to vector<8xf32>
    %88 = vector.shape_cast %87 : vector<8xf32> to vector<8x1xf32>
    %89 = tpu.reciprocal %88 {approx = true} : vector<8x1xf32> -> vector<8x1xf32>
    %90 = vector.broadcast %89 : vector<8x1xf32> to vector<8x8xf32>
    %91 = arith.mulf %86, %90 : vector<8x8xf32>
    %92 = arith.truncf %91 : vector<8x8xf32> to vector<8x8xbf16>
    %cst_48 = arith.constant dense<0.000000e+00> : vector<8x32xf32>
    %93 = tpu.matmul %92, %80, %cst_48 {dimension_numbers = #tpu.dot_dimension_numbers<[1], [0], [0], [1], [0, 0, 1, 1], [], []>} : vector<8x8xbf16>, vector<8x32xbf16>, vector<8x32xf32> -> vector<8x32xf32>
    %94 = arith.truncf %93 : vector<8x32xf32> to vector<8x32xbf16>
    %c0_49 = arith.constant 0 : index
    %c128_50 = arith.constant 128 : index
    %95 = vector.load %arg15[%c0_49, %c128_50] : memref<8x256xbf16, #tpu.memory_space<vmem>>, vector<8x32xbf16>
    tpu.vector_store %arg15[%c0_49, %c128_50], %94 {strides = array<i32>} : memref<8x256xbf16, #tpu.memory_space<vmem>>, vector<8x32xbf16>,
    %c0_51 = arith.constant 0 : index
    %c160 = arith.constant 160 : index
    %96 = vector.load %arg14[%c0_51, %c160] : memref<8x768xbf16, #tpu.memory_space<vmem>>, vector<8x32xbf16>
    %c0_52 = arith.constant 0 : index
    %c416 = arith.constant 416 : index
    %97 = vector.load %arg14[%c0_52, %c416] : memref<8x768xbf16, #tpu.memory_space<vmem>>, vector<8x32xbf16>
    %c0_53 = arith.constant 0 : index
    %c672 = arith.constant 672 : index
    %98 = vector.load %arg14[%c0_53, %c672] : memref<8x768xbf16, #tpu.memory_space<vmem>>, vector<8x32xbf16>
    %cst_54 = arith.constant dense<0.000000e+00> : vector<8x8xf32>
    %99 = tpu.matmul %96, %97, %cst_54 {dimension_numbers = #tpu.dot_dimension_numbers<[1], [1], [0], [0], [0, 0, 1, 0], [], []>} : vector<8x32xbf16>, vector<8x32xbf16>, vector<8x8xf32> -> vector<8x8xf32>
    %cst_55 = arith.constant dense<0xFF800000> : vector<8xf32>
    %100 = vector.multi_reduction <maximumf>, %99, %cst_55 [1] : vector<8x8xf32> to vector<8xf32>
    %101 = vector.shape_cast %100 : vector<8xf32> to vector<8x1xf32>
    %102 = vector.broadcast %101 : vector<8x1xf32> to vector<8x8xf32>
    %103 = arith.subf %99, %102 : vector<8x8xf32>
    %104 = math.exp %103 : vector<8x8xf32>
    %cst_56 = arith.constant dense<0.000000e+00> : vector<8xf32>
    %105 = vector.multi_reduction <add>, %104, %cst_56 [1] : vector<8x8xf32> to vector<8xf32>
    %106 = vector.shape_cast %105 : vector<8xf32> to vector<8x1xf32>
    %107 = tpu.reciprocal %106 {approx = true} : vector<8x1xf32> -> vector<8x1xf32>
    %108 = vector.broadcast %107 : vector<8x1xf32> to vector<8x8xf32>
    %109 = arith.mulf %104, %108 : vector<8x8xf32>
    %110 = arith.truncf %109 : vector<8x8xf32> to vector<8x8xbf16>
    %cst_57 = arith.constant dense<0.000000e+00> : vector<8x32xf32>
    %111 = tpu.matmul %110, %98, %cst_57 {dimension_numbers = #tpu.dot_dimension_numbers<[1], [0], [0], [1], [0, 0, 1, 1], [], []>} : vector<8x8xbf16>, vector<8x32xbf16>, vector<8x32xf32> -> vector<8x32xf32>
    %112 = arith.truncf %111 : vector<8x32xf32> to vector<8x32xbf16>
    %c0_58 = arith.constant 0 : index
    %c160_59 = arith.constant 160 : index
    %113 = vector.load %arg15[%c0_58, %c160_59] : memref<8x256xbf16, #tpu.memory_space<vmem>>, vector<8x32xbf16>
    tpu.vector_store %arg15[%c0_58, %c160_59], %112 {strides = array<i32>} : memref<8x256xbf16, #tpu.memory_space<vmem>>, vector<8x32xbf16>,
    %c0_60 = arith.constant 0 : index
    %c192 = arith.constant 192 : index
    %114 = vector.load %arg14[%c0_60, %c192] : memref<8x768xbf16, #tpu.memory_space<vmem>>, vector<8x32xbf16>
    %c0_61 = arith.constant 0 : index
    %c448 = arith.constant 448 : index
    %115 = vector.load %arg14[%c0_61, %c448] : memref<8x768xbf16, #tpu.memory_space<vmem>>, vector<8x32xbf16>
    %c0_62 = arith.constant 0 : index
    %c704 = arith.constant 704 : index
    %116 = vector.load %arg14[%c0_62, %c704] : memref<8x768xbf16, #tpu.memory_space<vmem>>, vector<8x32xbf16>
    %cst_63 = arith.constant dense<0.000000e+00> : vector<8x8xf32>
    %117 = tpu.matmul %114, %115, %cst_63 {dimension_numbers = #tpu.dot_dimension_numbers<[1], [1], [0], [0], [0, 0, 1, 0], [], []>} : vector<8x32xbf16>, vector<8x32xbf16>, vector<8x8xf32> -> vector<8x8xf32>
    %cst_64 = arith.constant dense<0xFF800000> : vector<8xf32>
    %118 = vector.multi_reduction <maximumf>, %117, %cst_64 [1] : vector<8x8xf32> to vector<8xf32>
    %119 = vector.shape_cast %118 : vector<8xf32> to vector<8x1xf32>
    %120 = vector.broadcast %119 : vector<8x1xf32> to vector<8x8xf32>
    %121 = arith.subf %117, %120 : vector<8x8xf32>
    %122 = math.exp %121 : vector<8x8xf32>
    %cst_65 = arith.constant dense<0.000000e+00> : vector<8xf32>
    %123 = vector.multi_reduction <add>, %122, %cst_65 [1] : vector<8x8xf32> to vector<8xf32>
    %124 = vector.shape_cast %123 : vector<8xf32> to vector<8x1xf32>
    %125 = tpu.reciprocal %124 {approx = true} : vector<8x1xf32> -> vector<8x1xf32>
    %126 = vector.broadcast %125 : vector<8x1xf32> to vector<8x8xf32>
    %127 = arith.mulf %122, %126 : vector<8x8xf32>
    %128 = arith.truncf %127 : vector<8x8xf32> to vector<8x8xbf16>
    %cst_66 = arith.constant dense<0.000000e+00> : vector<8x32xf32>
    %129 = tpu.matmul %128, %116, %cst_66 {dimension_numbers = #tpu.dot_dimension_numbers<[1], [0], [0], [1], [0, 0, 1, 1], [], []>} : vector<8x8xbf16>, vector<8x32xbf16>, vector<8x32xf32> -> vector<8x32xf32>
    %130 = arith.truncf %129 : vector<8x32xf32> to vector<8x32xbf16>
    %c0_67 = arith.constant 0 : index
    %c192_68 = arith.constant 192 : index
    %131 = vector.load %arg15[%c0_67, %c192_68] : memref<8x256xbf16, #tpu.memory_space<vmem>>, vector<8x32xbf16>
    tpu.vector_store %arg15[%c0_67, %c192_68], %130 {strides = array<i32>} : memref<8x256xbf16, #tpu.memory_space<vmem>>, vector<8x32xbf16>,
    %c0_69 = arith.constant 0 : index
    %c224 = arith.constant 224 : index
    %132 = vector.load %arg14[%c0_69, %c224] : memref<8x768xbf16, #tpu.memory_space<vmem>>, vector<8x32xbf16>
    %c0_70 = arith.constant 0 : index
    %c480 = arith.constant 480 : index
    %133 = vector.load %arg14[%c0_70, %c480] : memref<8x768xbf16, #tpu.memory_space<vmem>>, vector<8x32xbf16>
    %c0_71 = arith.constant 0 : index
    %c736 = arith.constant 736 : index
    %134 = vector.load %arg14[%c0_71, %c736] : memref<8x768xbf16, #tpu.memory_space<vmem>>, vector<8x32xbf16>
    %cst_72 = arith.constant dense<0.000000e+00> : vector<8x8xf32>
    %135 = tpu.matmul %132, %133, %cst_72 {dimension_numbers = #tpu.dot_dimension_numbers<[1], [1], [0], [0], [0, 0, 1, 0], [], []>} : vector<8x32xbf16>, vector<8x32xbf16>, vector<8x8xf32> -> vector<8x8xf32>
    %cst_73 = arith.constant dense<0xFF800000> : vector<8xf32>
    %136 = vector.multi_reduction <maximumf>, %135, %cst_73 [1] : vector<8x8xf32> to vector<8xf32>
    %137 = vector.shape_cast %136 : vector<8xf32> to vector<8x1xf32>
    %138 = vector.broadcast %137 : vector<8x1xf32> to vector<8x8xf32>
    %139 = arith.subf %135, %138 : vector<8x8xf32>
    %140 = math.exp %139 : vector<8x8xf32>
    %cst_74 = arith.constant dense<0.000000e+00> : vector<8xf32>
    %141 = vector.multi_reduction <add>, %140, %cst_74 [1] : vector<8x8xf32> to vector<8xf32>
    %142 = vector.shape_cast %141 : vector<8xf32> to vector<8x1xf32>
    %143 = tpu.reciprocal %142 {approx = true} : vector<8x1xf32> -> vector<8x1xf32>
    %144 = vector.broadcast %143 : vector<8x1xf32> to vector<8x8xf32>
    %145 = arith.mulf %140, %144 : vector<8x8xf32>
    %146 = arith.truncf %145 : vector<8x8xf32> to vector<8x8xbf16>
    %cst_75 = arith.constant dense<0.000000e+00> : vector<8x32xf32>
    %147 = tpu.matmul %146, %134, %cst_75 {dimension_numbers = #tpu.dot_dimension_numbers<[1], [0], [0], [1], [0, 0, 1, 1], [], []>} : vector<8x8xbf16>, vector<8x32xbf16>, vector<8x32xf32> -> vector<8x32xf32>
    %148 = arith.truncf %147 : vector<8x32xf32> to vector<8x32xbf16>
    %c0_76 = arith.constant 0 : index
    %c224_77 = arith.constant 224 : index
    %149 = vector.load %arg15[%c0_76, %c224_77] : memref<8x256xbf16, #tpu.memory_space<vmem>>, vector<8x32xbf16>
    tpu.vector_store %arg15[%c0_76, %c224_77], %148 {strides = array<i32>} : memref<8x256xbf16, #tpu.memory_space<vmem>>, vector<8x32xbf16>,
    %c0_78 = arith.constant 0 : index
    %c0_79 = arith.constant 0 : index
    %150 = vector.load %arg15[%c0_78, %c0_79] : memref<8x256xbf16, #tpu.memory_space<vmem>>, vector<8x256xbf16>
    %c0_80 = arith.constant 0 : index
    %c0_81 = arith.constant 0 : index
    %151 = vector.load %arg3[%c0_80, %c0_81] : memref<256x32xbf16, #tpu.memory_space<vmem>>, vector<256x32xbf16>
    %cst_82 = arith.constant dense<0.000000e+00> : vector<8x32xf32>
    %152 = tpu.matmul %150, %151, %cst_82 {dimension_numbers = #tpu.dot_dimension_numbers<[1], [0], [0], [1], [0, 0, 1, 1], [], []>} : vector<8x256xbf16>, vector<256x32xbf16>, vector<8x32xf32> -> vector<8x32xf32>
    %c0_83 = arith.constant 0 : index
    %c0_84 = arith.constant 0 : index
    %153 = vector.load %arg4[%c0_83, %c0_84] : memref<1x32xf32, #tpu.memory_space<vmem>>, vector<1x32xf32>
    %154 = vector.broadcast %153 : vector<1x32xf32> to vector<8x32xf32>
    %155 = arith.addf %152, %154 : vector<8x32xf32>
    %156 = arith.addf %155, %0 : vector<8x32xf32>
    %c0_85 = arith.constant 0 : index
    %c0_86 = arith.constant 0 : index
    %157 = vector.load %arg5[%c0_85, %c0_86] : memref<1x32xf32, #tpu.memory_space<vmem>>, vector<1x32xf32>
    %c0_87 = arith.constant 0 : index
    %c0_88 = arith.constant 0 : index
    %158 = vector.load %arg6[%c0_87, %c0_88] : memref<1x32xf32, #tpu.memory_space<vmem>>, vector<1x32xf32>
    %cst_89 = arith.constant dense<0.000000e+00> : vector<8xf32>
    %159 = vector.multi_reduction <add>, %156, %cst_89 [1] : vector<8x32xf32> to vector<8xf32>
    %160 = vector.shape_cast %159 : vector<8xf32> to vector<8x1xf32>
    %cst_90 = arith.constant 3.200000e+01 : f32
    %161 = vector.broadcast %cst_90 : f32 to vector<8x1xf32>
    %162 = arith.divf %160, %161 : vector<8x1xf32>
    %163 = vector.broadcast %162 : vector<8x1xf32> to vector<8x32xf32>
    %164 = arith.subf %156, %163 : vector<8x32xf32>
    %165 = arith.mulf %164, %164 : vector<8x32xf32>
    %cst_91 = arith.constant dense<0.000000e+00> : vector<8xf32>
    %166 = vector.multi_reduction <add>, %165, %cst_91 [1] : vector<8x32xf32> to vector<8xf32>
    %167 = vector.shape_cast %166 : vector<8xf32> to vector<8x1xf32>
    %cst_92 = arith.constant 3.200000e+01 : f32
    %168 = vector.broadcast %cst_92 : f32 to vector<8x1xf32>
    %169 = arith.divf %167, %168 : vector<8x1xf32>
    %170 = vector.broadcast %162 : vector<8x1xf32> to vector<8x32xf32>
    %171 = arith.subf %156, %170 : vector<8x32xf32>
    %cst_93 = arith.constant 9.99999974E-6 : f32
    %172 = vector.broadcast %cst_93 : f32 to vector<8x1xf32>
    %173 = arith.addf %169, %172 : vector<8x1xf32>
    %174 = math.rsqrt %173 : vector<8x1xf32>
    %175 = vector.broadcast %174 : vector<8x1xf32> to vector<8x32xf32>
    %176 = arith.mulf %171, %175 : vector<8x32xf32>
    %177 = vector.broadcast %157 : vector<1x32xf32> to vector<8x32xf32>
    %178 = arith.mulf %176, %177 : vector<8x32xf32>
    %179 = vector.broadcast %158 : vector<1x32xf32> to vector<8x32xf32>
    %180 = arith.addf %178, %179 : vector<8x32xf32>
    %181 = arith.truncf %180 : vector<8x32xf32> to vector<8x32xbf16>
    %cst_94 = arith.constant 0.000000e+00 : f32
    %182 = vector.broadcast %cst_94 : f32 to vector<8x32xf32>
    %c0_95 = arith.constant 0 : index
    %c0_96 = arith.constant 0 : index
    %183 = vector.load %arg7[%c0_95, %c0_96] : memref<32x128xbf16, #tpu.memory_space<vmem>>, vector<32x128xbf16>
    %cst_97 = arith.constant dense<0.000000e+00> : vector<8x128xf32>
    %184 = tpu.matmul %181, %183, %cst_97 {dimension_numbers = #tpu.dot_dimension_numbers<[1], [0], [0], [1], [0, 0, 1, 1], [], []>} : vector<8x32xbf16>, vector<32x128xbf16>, vector<8x128xf32> -> vector<8x128xf32>
    %c0_98 = arith.constant 0 : index
    %c0_99 = arith.constant 0 : index
    %185 = vector.load %arg8[%c0_98, %c0_99] : memref<1x128xf32, #tpu.memory_space<vmem>>, vector<1x128xf32>
    %186 = vector.broadcast %185 : vector<1x128xf32> to vector<8x128xf32>
    %187 = arith.addf %184, %186 : vector<8x128xf32>
    %cst_100 = arith.constant 0.000000e+00 : f32
    %188 = vector.broadcast %cst_100 : f32 to vector<8x128xf32>
    %189 = arith.maximumf %187, %188 : vector<8x128xf32>
    %190 = arith.truncf %189 : vector<8x128xf32> to vector<8x128xbf16>
    %c0_101 = arith.constant 0 : index
    %c0_102 = arith.constant 0 : index
    %191 = vector.load %arg9[%c0_101, %c0_102] : memref<128x32xbf16, #tpu.memory_space<vmem>>, vector<128x32xbf16>
    %cst_103 = arith.constant dense<0.000000e+00> : vector<8x32xf32>
    %192 = tpu.matmul %190, %191, %cst_103 {dimension_numbers = #tpu.dot_dimension_numbers<[1], [0], [0], [1], [0, 0, 1, 1], [], []>} : vector<8x128xbf16>, vector<128x32xbf16>, vector<8x32xf32> -> vector<8x32xf32>
    %193 = arith.addf %182, %192 : vector<8x32xf32>
    %c0_104 = arith.constant 0 : index
    %c0_105 = arith.constant 0 : index
    %194 = vector.load %arg10[%c0_104, %c0_105] : memref<1x32xf32, #tpu.memory_space<vmem>>, vector<1x32xf32>
    %195 = vector.broadcast %194 : vector<1x32xf32> to vector<8x32xf32>
    %196 = arith.addf %193, %195 : vector<8x32xf32>
    %197 = arith.addf %196, %180 : vector<8x32xf32>
    %c0_106 = arith.constant 0 : index
    %c0_107 = arith.constant 0 : index
    %198 = vector.load %arg11[%c0_106, %c0_107] : memref<1x32xf32, #tpu.memory_space<vmem>>, vector<1x32xf32>
    %c0_108 = arith.constant 0 : index
    %c0_109 = arith.constant 0 : index
    %199 = vector.load %arg12[%c0_108, %c0_109] : memref<1x32xf32, #tpu.memory_space<vmem>>, vector<1x32xf32>
    %cst_110 = arith.constant dense<0.000000e+00> : vector<8xf32>
    %200 = vector.multi_reduction <add>, %197, %cst_110 [1] : vector<8x32xf32> to vector<8xf32>
    %201 = vector.shape_cast %200 : vector<8xf32> to vector<8x1xf32>
    %cst_111 = arith.constant 3.200000e+01 : f32
    %202 = vector.broadcast %cst_111 : f32 to vector<8x1xf32>
    %203 = arith.divf %201, %202 : vector<8x1xf32>
    %204 = vector.broadcast %203 : vector<8x1xf32> to vector<8x32xf32>
    %205 = arith.subf %197, %204 : vector<8x32xf32>
    %206 = arith.mulf %205, %205 : vector<8x32xf32>
    %cst_112 = arith.constant dense<0.000000e+00> : vector<8xf32>
    %207 = vector.multi_reduction <add>, %206, %cst_112 [1] : vector<8x32xf32> to vector<8xf32>
    %208 = vector.shape_cast %207 : vector<8xf32> to vector<8x1xf32>
    %cst_113 = arith.constant 3.200000e+01 : f32
    %209 = vector.broadcast %cst_113 : f32 to vector<8x1xf32>
    %210 = arith.divf %208, %209 : vector<8x1xf32>
    %211 = vector.broadcast %203 : vector<8x1xf32> to vector<8x32xf32>
    %212 = arith.subf %197, %211 : vector<8x32xf32>
    %cst_114 = arith.constant 9.99999974E-6 : f32
    %213 = vector.broadcast %cst_114 : f32 to vector<8x1xf32>
    %214 = arith.addf %210, %213 : vector<8x1xf32>
    %215 = math.rsqrt %214 : vector<8x1xf32>
    %216 = vector.broadcast %215 : vector<8x1xf32> to vector<8x32xf32>
    %217 = arith.mulf %212, %216 : vector<8x32xf32>
    %218 = vector.broadcast %198 : vector<1x32xf32> to vector<8x32xf32>
    %219 = arith.mulf %217, %218 : vector<8x32xf32>
    %220 = vector.broadcast %199 : vector<1x32xf32> to vector<8x32xf32>
    %221 = arith.addf %219, %220 : vector<8x32xf32>
    %c0_115 = arith.constant 0 : index
    %c0_116 = arith.constant 0 : index
    %222 = vector.load %arg13[%c0_115, %c0_116] : memref<8x32xf32, #tpu.memory_space<vmem>>, vector<8x32xf32>
    tpu.vector_store %arg13[%c0_115, %c0_116], %221 {strides = array<i32>} : memref<8x32xf32, #tpu.memory_space<vmem>>, vector<8x32xf32>,
    return
  }
  func.func @transform_0(%arg0: i32) -> (i32, i32) {
    %c0_i32 = arith.constant 0 : i32
    %c0_i32_0 = arith.constant 0 : i32
    return %arg0, %c0_i32 : i32, i32
  }
  func.func @transform_1(%arg0: i32) -> (i32, i32) {
    %c0_i32 = arith.constant 0 : i32
    %c0_i32_0 = arith.constant 0 : i32
    %c0_i32_1 = arith.constant 0 : i32
    return %c0_i32, %c0_i32_0 : i32, i32
  }
  func.func @transform_2(%arg0: i32) -> (i32, i32) {
    %c0_i32 = arith.constant 0 : i32
    %c0_i32_0 = arith.constant 0 : i32
    %c0_i32_1 = arith.constant 0 : i32
    return %c0_i32, %c0_i32_0 : i32, i32
  }
  func.func @transform_3(%arg0: i32) -> (i32, i32) {
    %c0_i32 = arith.constant 0 : i32
    %c0_i32_0 = arith.constant 0 : i32
    %c0_i32_1 = arith.constant 0 : i32
    return %c0_i32, %c0_i32_0 : i32, i32
  }
  func.func @transform_4(%arg0: i32) -> (i32, i32) {
    %c0_i32 = arith.constant 0 : i32
    %c0_i32_0 = arith.constant 0 : i32
    %c0_i32_1 = arith.constant 0 : i32
    return %c0_i32, %c0_i32_0 : i32, i32
  }
  func.func @transform_5(%arg0: i32) -> (i32, i32) {
    %c0_i32 = arith.constant 0 : i32
    %c0_i32_0 = arith.constant 0 : i32
    %c0_i32_1 = arith.constant 0 : i32
    return %c0_i32, %c0_i32_0 : i32, i32
  }
  func.func @transform_6(%arg0: i32) -> (i32, i32) {
    %c0_i32 = arith.constant 0 : i32
    %c0_i32_0 = arith.constant 0 : i32
    %c0_i32_1 = arith.constant 0 : i32
    return %c0_i32, %c0_i32_0 : i32, i32
  }
  func.func @transform_7(%arg0: i32) -> (i32, i32) {
    %c0_i32 = arith.constant 0 : i32
    %c0_i32_0 = arith.constant 0 : i32
    %c0_i32_1 = arith.constant 0 : i32
    return %c0_i32, %c0_i32_0 : i32, i32
  }
  func.func @transform_8(%arg0: i32) -> (i32, i32) {
    %c0_i32 = arith.constant 0 : i32
    %c0_i32_0 = arith.constant 0 : i32
    %c0_i32_1 = arith.constant 0 : i32
    return %c0_i32, %c0_i32_0 : i32, i32
  }
  func.func @transform_9(%arg0: i32) -> (i32, i32) {
    %c0_i32 = arith.constant 0 : i32
    %c0_i32_0 = arith.constant 0 : i32
    %c0_i32_1 = arith.constant 0 : i32
    return %c0_i32, %c0_i32_0 : i32, i32
  }
  func.func @transform_10(%arg0: i32) -> (i32, i32) {
    %c0_i32 = arith.constant 0 : i32
    %c0_i32_0 = arith.constant 0 : i32
    %c0_i32_1 = arith.constant 0 : i32
    return %c0_i32, %c0_i32_0 : i32, i32
  }
  func.func @transform_11(%arg0: i32) -> (i32, i32) {
    %c0_i32 = arith.constant 0 : i32
    %c0_i32_0 = arith.constant 0 : i32
    %c0_i32_1 = arith.constant 0 : i32
    return %c0_i32, %c0_i32_0 : i32, i32
  }
  func.func @transform_12(%arg0: i32) -> (i32, i32) {
    %c0_i32 = arith.constant 0 : i32
    %c0_i32_0 = arith.constant 0 : i32
    return %arg0, %c0_i32 : i32, i32
  }
}

module attributes {stable_mosaic.version = 11 : i64} {
  func.func @transformer_block_kernel(%arg0: i32, %arg1: memref<8x32xf32, #tpu.memory_space<vmem>>, %arg2: memref<32x768xbf16, #tpu.memory_space<vmem>>, %arg3: memref<256x32xbf16, #tpu.memory_space<vmem>>, %arg4: memref<1x32xf32, #tpu.memory_space<vmem>>, %arg5: memref<1x32xf32, #tpu.memory_space<vmem>>, %arg6: memref<1x32xf32, #tpu.memory_space<vmem>>, %arg7: memref<32x128xbf16, #tpu.memory_space<vmem>>, %arg8: memref<1x128xf32, #tpu.memory_space<vmem>>, %arg9: memref<128x32xbf16, #tpu.memory_space<vmem>>, %arg10: memref<1x32xf32, #tpu.memory_space<vmem>>, %arg11: memref<1x32xf32, #tpu.memory_space<vmem>>, %arg12: memref<1x32xf32, #tpu.memory_space<vmem>>, %arg13: memref<8x32xf32, #tpu.memory_space<vmem>>, %arg14: memref<8x768xbf16, #tpu.memory_space<vmem>>, %arg15: memref<8x256xbf16, #tpu.memory_space<vmem>>) attributes {dimension_semantics = [#tpu.dimension_semantics<parallel>], iteration_bounds = array<i64: 2>, scalar_prefetch = 0 : i64, scratch_operands = 2 : i64, tpu.core_type = #tpu.core_type<tc>, window_params = [{transform_indices = @transform_0, window_bounds = array<i64: 8, 32>}, {pipeline_mode = #tpu.pipeline_mode<synchronous>, transform_indices = @transform_1, window_bounds = array<i64: 32, 768>}, {pipeline_mode = #tpu.pipeline_mode<synchronous>, transform_indices = @transform_2, window_bounds = array<i64: 256, 32>}, {pipeline_mode = #tpu.pipeline_mode<synchronous>, transform_indices = @transform_3, window_bounds = array<i64: 1, 32>}, {pipeline_mode = #tpu.pipeline_mode<synchronous>, transform_indices = @transform_4, window_bounds = array<i64: 1, 32>}, {pipeline_mode = #tpu.pipeline_mode<synchronous>, transform_indices = @transform_5, window_bounds = array<i64: 1, 32>}, {pipeline_mode = #tpu.pipeline_mode<synchronous>, transform_indices = @transform_6, window_bounds = array<i64: 32, 128>}, {pipeline_mode = #tpu.pipeline_mode<synchronous>, transform_indices = @transform_7, window_bounds = array<i64: 1, 128>}, {pipeline_mode = #tpu.pipeline_mode<synchronous>, transform_indices = @transform_8, window_bounds = array<i64: 128, 32>}, {pipeline_mode = #tpu.pipeline_mode<synchronous>, transform_indices = @transform_9, window_bounds = array<i64: 1, 32>}, {pipeline_mode = #tpu.pipeline_mode<synchronous>, transform_indices = @transform_10, window_bounds = array<i64: 1, 32>}, {pipeline_mode = #tpu.pipeline_mode<synchronous>, transform_indices = @transform_11, window_bounds = array<i64: 1, 32>}, {transform_indices = @transform_12, window_bounds = array<i64: 8, 32>}]} {
    %c0 = arith.constant 0 : index
    %c0_0 = arith.constant 0 : index
    %0 = vector.load %arg1[%c0, %c0_0] : memref<8x32xf32, #tpu.memory_space<vmem>>, vector<8x32xf32>
    %1 = arith.truncf %0 : vector<8x32xf32> to vector<8x32xbf16>
    %c0_1 = arith.constant 0 : index
    %c0_2 = arith.constant 0 : index
    %2 = vector.load %arg2[%c0_1, %c0_2] : memref<32x768xbf16, #tpu.memory_space<vmem>>, vector<32x768xbf16>
    %cst = arith.constant dense<0.000000e+00> : vector<8x768xf32>
    %3 = tpu.matmul %1, %2, %cst {dimension_numbers = #tpu.dot_dimension_numbers<[1], [0], [0], [1], [0, 0, 1, 1], [], []>} : vector<8x32xbf16>, vector<32x768xbf16>, vector<8x768xf32> -> vector<8x768xf32>
    %4 = arith.truncf %3 : vector<8x768xf32> to vector<8x768xbf16>
    %c0_3 = arith.constant 0 : index
    %c0_4 = arith.constant 0 : index
    %5 = vector.load %arg14[%c0_3, %c0_4] : memref<8x768xbf16, #tpu.memory_space<vmem>>, vector<8x768xbf16>
    tpu.vector_store %arg14[%c0_3, %c0_4], %4 {strides = array<i32>} : memref<8x768xbf16, #tpu.memory_space<vmem>>, vector<8x768xbf16>,
    %c0_5 = arith.constant 0 : index
    %c0_6 = arith.constant 0 : index
    %6 = vector.load %arg14[%c0_5, %c0_6] : memref<8x768xbf16, #tpu.memory_space<vmem>>, vector<8x32xbf16>
    %c0_7 = arith.constant 0 : index
    %c256 = arith.constant 256 : index
    %7 = vector.load %arg14[%c0_7, %c256] : memref<8x768xbf16, #tpu.memory_space<vmem>>, vector<8x32xbf16>
    %c0_8 = arith.constant 0 : index
    %c512 = arith.constant 512 : index
    %8 = vector.load %arg14[%c0_8, %c512] : memref<8x768xbf16, #tpu.memory_space<vmem>>, vector<8x32xbf16>
    %cst_9 = arith.constant dense<0.000000e+00> : vector<8x8xf32>
    %9 = tpu.matmul %6, %7, %cst_9 {dimension_numbers = #tpu.dot_dimension_numbers<[1], [1], [0], [0], [0, 0, 1, 0], [], []>} : vector<8x32xbf16>, vector<8x32xbf16>, vector<8x8xf32> -> vector<8x8xf32>
    %cst_10 = arith.constant dense<0xFF800000> : vector<8xf32>
    %10 = vector.multi_reduction <maximumf>, %9, %cst_10 [1] : vector<8x8xf32> to vector<8xf32>
    %11 = vector.shape_cast %10 : vector<8xf32> to vector<8x1xf32>
    %12 = vector.broadcast %11 : vector<8x1xf32> to vector<8x8xf32>
    %13 = arith.subf %9, %12 : vector<8x8xf32>
    %14 = math.exp %13 : vector<8x8xf32>
    %cst_11 = arith.constant dense<0.000000e+00> : vector<8xf32>
    %15 = vector.multi_reduction <add>, %14, %cst_11 [1] : vector<8x8xf32> to vector<8xf32>
    %16 = vector.shape_cast %15 : vector<8xf32> to vector<8x1xf32>
    %17 = tpu.reciprocal %16 {approx = true} : vector<8x1xf32> -> vector<8x1xf32>
    %18 = vector.broadcast %17 : vector<8x1xf32> to vector<8x8xf32>
    %19 = arith.mulf %14, %18 : vector<8x8xf32>
    %20 = arith.truncf %19 : vector<8x8xf32> to vector<8x8xbf16>
    %cst_12 = arith.constant dense<0.000000e+00> : vector<8x32xf32>
    %21 = tpu.matmul %20, %8, %cst_12 {dimension_numbers = #tpu.dot_dimension_numbers<[1], [0], [0], [1], [0, 0, 1, 1], [], []>} : vector<8x8xbf16>, vector<8x32xbf16>, vector<8x32xf32> -> vector<8x32xf32>
    %22 = arith.truncf %21 : vector<8x32xf32> to vector<8x32xbf16>
    %c0_13 = arith.constant 0 : index
    %c0_14 = arith.constant 0 : index
    %23 = vector.load %arg15[%c0_13, %c0_14] : memref<8x256xbf16, #tpu.memory_space<vmem>>, vector<8x32xbf16>
    tpu.vector_store %arg15[%c0_13, %c0_14], %22 {strides = array<i32>} : memref<8x256xbf16, #tpu.memory_space<vmem>>, vector<8x32xbf16>,
    %c0_15 = arith.constant 0 : index
    %c32 = arith.constant 32 : index
    %24 = vector.load %arg14[%c0_15, %c32] : memref<8x768xbf16, #tpu.memory_space<vmem>>, vector<8x32xbf16>
    %c0_16 = arith.constant 0 : index
    %c288 = arith.constant 288 : index
    %25 = vector.load %arg14[%c0_16, %c288] : memref<8x768xbf16, #tpu.memory_space<vmem>>, vector<8x32xbf16>
    %c0_17 = arith.constant 0 : index
    %c544 = arith.constant 544 : index
    %26 = vector.load %arg14[%c0_17, %c544] : memref<8x768xbf16, #tpu.memory_space<vmem>>, vector<8x32xbf16>
    %cst_18 = arith.constant dense<0.000000e+00> : vector<8x8xf32>
    %27 = tpu.matmul %24, %25, %cst_18 {dimension_numbers = #tpu.dot_dimension_numbers<[1], [1], [0], [0], [0, 0, 1, 0], [], []>} : vector<8x32xbf16>, vector<8x32xbf16>, vector<8x8xf32> -> vector<8x8xf32>
    %cst_19 = arith.constant dense<0xFF800000> : vector<8xf32>
    %28 = vector.multi_reduction <maximumf>, %27, %cst_19 [1] : vector<8x8xf32> to vector<8xf32>
    %29 = vector.shape_cast %28 : vector<8xf32> to vector<8x1xf32>
    %30 = vector.broadcast %29 : vector<8x1xf32> to vector<8x8xf32>
    %31 = arith.subf %27, %30 : vector<8x8xf32>
    %32 = math.exp %31 : vector<8x8xf32>
    %cst_20 = arith.constant dense<0.000000e+00> : vector<8xf32>
    %33 = vector.multi_reduction <add>, %32, %cst_20 [1] : vector<8x8xf32> to vector<8xf32>
    %34 = vector.shape_cast %33 : vector<8xf32> to vector<8x1xf32>
    %35 = tpu.reciprocal %34 {approx = true} : vector<8x1xf32> -> vector<8x1xf32>
    %36 = vector.broadcast %35 : vector<8x1xf32> to vector<8x8xf32>
    %37 = arith.mulf %32, %36 : vector<8x8xf32>
    %38 = arith.truncf %37 : vector<8x8xf32> to vector<8x8xbf16>
    %cst_21 = arith.constant dense<0.000000e+00> : vector<8x32xf32>
    %39 = tpu.matmul %38, %26, %cst_21 {dimension_numbers = #tpu.dot_dimension_numbers<[1], [0], [0], [1], [0, 0, 1, 1], [], []>} : vector<8x8xbf16>, vector<8x32xbf16>, vector<8x32xf32> -> vector<8x32xf32>
    %40 = arith.truncf %39 : vector<8x32xf32> to vector<8x32xbf16>
    %c0_22 = arith.constant 0 : index
    %c32_23 = arith.constant 32 : index
    %41 = vector.load %arg15[%c0_22, %c32_23] : memref<8x256xbf16, #tpu.memory_space<vmem>>, vector<8x32xbf16>
    tpu.vector_store %arg15[%c0_22, %c32_23], %40 {strides = array<i32>} : memref<8x256xbf16, #tpu.memory_space<vmem>>, vector<8x32xbf16>,
    %c0_24 = arith.constant 0 : index
    %c64 = arith.constant 64 : index
    %42 = vector.load %arg14[%c0_24, %c64] : memref<8x768xbf16, #tpu.memory_space<vmem>>, vector<8x32xbf16>
    %c0_25 = arith.constant 0 : index
    %c320 = arith.constant 320 : index
    %43 = vector.load %arg14[%c0_25, %c320] : memref<8x768xbf16, #tpu.memory_space<vmem>>, vector<8x32xbf16>
    %c0_26 = arith.constant 0 : index
    %c576 = arith.constant 576 : index
    %44 = vector.load %arg14[%c0_26, %c576] : memref<8x768xbf16, #tpu.memory_space<vmem>>, vector<8x32xbf16>
    %cst_27 = arith.constant dense<0.000000e+00> : vector<8x8xf32>
    %45 = tpu.matmul %42, %43, %cst_27 {dimension_numbers = #tpu.dot_dimension_numbers<[1], [1], [0], [0], [0, 0, 1, 0], [], []>} : vector<8x32xbf16>, vector<8x32xbf16>, vector<8x8xf32> -> vector<8x8xf32>
    %cst_28 = arith.constant dense<0xFF800000> : vector<8xf32>
    %46 = vector.multi_reduction <maximumf>, %45, %cst_28 [1] : vector<8x8xf32> to vector<8xf32>
    %47 = vector.shape_cast %46 : vector<8xf32> to vector<8x1xf32>
    %48 = vector.broadcast %47 : vector<8x1xf32> to vector<8x8xf32>
    %49 = arith.subf %45, %48 : vector<8x8xf32>
    %50 = math.exp %49 : vector<8x8xf32>
    %cst_29 = arith.constant dense<0.000000e+00> : vector<8xf32>
    %51 = vector.multi_reduction <add>, %50, %cst_29 [1] : vector<8x8xf32> to vector<8xf32>
    %52 = vector.shape_cast %51 : vector<8xf32> to vector<8x1xf32>
    %53 = tpu.reciprocal %52 {approx = true} : vector<8x1xf32> -> vector<8x1xf32>
    %54 = vector.broadcast %53 : vector<8x1xf32> to vector<8x8xf32>
    %55 = arith.mulf %50, %54 : vector<8x8xf32>
    %56 = arith.truncf %55 : vector<8x8xf32> to vector<8x8xbf16>
    %cst_30 = arith.constant dense<0.000000e+00> : vector<8x32xf32>
    %57 = tpu.matmul %56, %44, %cst_30 {dimension_numbers = #tpu.dot_dimension_numbers<[1], [0], [0], [1], [0, 0, 1, 1], [], []>} : vector<8x8xbf16>, vector<8x32xbf16>, vector<8x32xf32> -> vector<8x32xf32>
    %58 = arith.truncf %57 : vector<8x32xf32> to vector<8x32xbf16>
    %c0_31 = arith.constant 0 : index
    %c64_32 = arith.constant 64 : index
    %59 = vector.load %arg15[%c0_31, %c64_32] : memref<8x256xbf16, #tpu.memory_space<vmem>>, vector<8x32xbf16>
    tpu.vector_store %arg15[%c0_31, %c64_32], %58 {strides = array<i32>} : memref<8x256xbf16, #tpu.memory_space<vmem>>, vector<8x32xbf16>,
    %c0_33 = arith.constant 0 : index
    %c96 = arith.constant 96 : index
    %60 = vector.load %arg14[%c0_33, %c96] : memref<8x768xbf16, #tpu.memory_space<vmem>>, vector<8x32xbf16>
    %c0_34 = arith.constant 0 : index
    %c352 = arith.constant 352 : index
    %61 = vector.load %arg14[%c0_34, %c352] : memref<8x768xbf16, #tpu.memory_space<vmem>>, vector<8x32xbf16>
    %c0_35 = arith.constant 0 : index
    %c608 = arith.constant 608 : index
    %62 = vector.load %arg14[%c0_35, %c608] : memref<8x768xbf16, #tpu.memory_space<vmem>>, vector<8x32xbf16>
    %cst_36 = arith.constant dense<0.000000e+00> : vector<8x8xf32>
    %63 = tpu.matmul %60, %61, %cst_36 {dimension_numbers = #tpu.dot_dimension_numbers<[1], [1], [0], [0], [0, 0, 1, 0], [], []>} : vector<8x32xbf16>, vector<8x32xbf16>, vector<8x8xf32> -> vector<8x8xf32>
    %cst_37 = arith.constant dense<0xFF800000> : vector<8xf32>
    %64 = vector.multi_reduction <maximumf>, %63, %cst_37 [1] : vector<8x8xf32> to vector<8xf32>
    %65 = vector.shape_cast %64 : vector<8xf32> to vector<8x1xf32>
    %66 = vector.broadcast %65 : vector<8x1xf32> to vector<8x8xf32>
    %67 = arith.subf %63, %66 : vector<8x8xf32>
    %68 = math.exp %67 : vector<8x8xf32>
    %cst_38 = arith.constant dense<0.000000e+00> : vector<8xf32>
    %69 = vector.multi_reduction <add>, %68, %cst_38 [1] : vector<8x8xf32> to vector<8xf32>
    %70 = vector.shape_cast %69 : vector<8xf32> to vector<8x1xf32>
    %71 = tpu.reciprocal %70 {approx = true} : vector<8x1xf32> -> vector<8x1xf32>
    %72 = vector.broadcast %71 : vector<8x1xf32> to vector<8x8xf32>
    %73 = arith.mulf %68, %72 : vector<8x8xf32>
    %74 = arith.truncf %73 : vector<8x8xf32> to vector<8x8xbf16>
    %cst_39 = arith.constant dense<0.000000e+00> : vector<8x32xf32>
    %75 = tpu.matmul %74, %62, %cst_39 {dimension_numbers = #tpu.dot_dimension_numbers<[1], [0], [0], [1], [0, 0, 1, 1], [], []>} : vector<8x8xbf16>, vector<8x32xbf16>, vector<8x32xf32> -> vector<8x32xf32>
    %76 = arith.truncf %75 : vector<8x32xf32> to vector<8x32xbf16>
    %c0_40 = arith.constant 0 : index
    %c96_41 = arith.constant 96 : index
    %77 = vector.load %arg15[%c0_40, %c96_41] : memref<8x256xbf16, #tpu.memory_space<vmem>>, vector<8x32xbf16>
    tpu.vector_store %arg15[%c0_40, %c96_41], %76 {strides = array<i32>} : memref<8x256xbf16, #tpu.memory_space<vmem>>, vector<8x32xbf16>,
    %c0_42 = arith.constant 0 : index
    %c128 = arith.constant 128 : index
    %78 = vector.load %arg14[%c0_42, %c128] : memref<8x768xbf16, #tpu.memory_space<vmem>>, vector<8x32xbf16>
    %c0_43 = arith.constant 0 : index
    %c384 = arith.constant 384 : index
    %79 = vector.load %arg14[%c0_43, %c384] : memref<8x768xbf16, #tpu.memory_space<vmem>>, vector<8x32xbf16>
    %c0_44 = arith.constant 0 : index
    %c640 = arith.constant 640 : index
    %80 = vector.load %arg14[%c0_44, %c640] : memref<8x768xbf16, #tpu.memory_space<vmem>>, vector<8x32xbf16>
    %cst_45 = arith.constant dense<0.000000e+00> : vector<8x8xf32>
    %81 = tpu.matmul %78, %79, %cst_45 {dimension_numbers = #tpu.dot_dimension_numbers<[1], [1], [0], [0], [0, 0, 1, 0], [], []>} : vector<8x32xbf16>, vector<8x32xbf16>, vector<8x8xf32> -> vector<8x8xf32>
    %cst_46 = arith.constant dense<0xFF800000> : vector<8xf32>
    %82 = vector.multi_reduction <maximumf>, %81, %cst_46 [1] : vector<8x8xf32> to vector<8xf32>
    %83 = vector.shape_cast %82 : vector<8xf32> to vector<8x1xf32>
    %84 = vector.broadcast %83 : vector<8x1xf32> to vector<8x8xf32>
    %85 = arith.subf %81, %84 : vector<8x8xf32>
    %86 = math.exp %85 : vector<8x8xf32>
    %cst_47 = arith.constant dense<0.000000e+00> : vector<8xf32>
    %87 = vector.multi_reduction <add>, %86, %cst_47 [1] : vector<8x8xf32> to vector<8xf32>
    %88 = vector.shape_cast %87 : vector<8xf32> to vector<8x1xf32>
    %89 = tpu.reciprocal %88 {approx = true} : vector<8x1xf32> -> vector<8x1xf32>
    %90 = vector.broadcast %89 : vector<8x1xf32> to vector<8x8xf32>
    %91 = arith.mulf %86, %90 : vector<8x8xf32>
    %92 = arith.truncf %91 : vector<8x8xf32> to vector<8x8xbf16>
    %cst_48 = arith.constant dense<0.000000e+00> : vector<8x32xf32>
    %93 = tpu.matmul %92, %80, %cst_48 {dimension_numbers = #tpu.dot_dimension_numbers<[1], [0], [0], [1], [0, 0, 1, 1], [], []>} : vector<8x8xbf16>, vector<8x32xbf16>, vector<8x32xf32> -> vector<8x32xf32>
    %94 = arith.truncf %93 : vector<8x32xf32> to vector<8x32xbf16>
    %c0_49 = arith.constant 0 : index
    %c128_50 = arith.constant 128 : index
    %95 = vector.load %arg15[%c0_49, %c128_50] : memref<8x256xbf16, #tpu.memory_space<vmem>>, vector<8x32xbf16>
    tpu.vector_store %arg15[%c0_49, %c128_50], %94 {strides = array<i32>} : memref<8x256xbf16, #tpu.memory_space<vmem>>, vector<8x32xbf16>,
    %c0_51 = arith.constant 0 : index
    %c160 = arith.constant 160 : index
    %96 = vector.load %arg14[%c0_51, %c160] : memref<8x768xbf16, #tpu.memory_space<vmem>>, vector<8x32xbf16>
    %c0_52 = arith.constant 0 : index
    %c416 = arith.constant 416 : index
    %97 = vector.load %arg14[%c0_52, %c416] : memref<8x768xbf16, #tpu.memory_space<vmem>>, vector<8x32xbf16>
    %c0_53 = arith.constant 0 : index
    %c672 = arith.constant 672 : index
    %98 = vector.load %arg14[%c0_53, %c672] : memref<8x768xbf16, #tpu.memory_space<vmem>>, vector<8x32xbf16>
    %cst_54 = arith.constant dense<0.000000e+00> : vector<8x8xf32>
    %99 = tpu.matmul %96, %97, %cst_54 {dimension_numbers = #tpu.dot_dimension_numbers<[1], [1], [0], [0], [0, 0, 1, 0], [], []>} : vector<8x32xbf16>, vector<8x32xbf16>, vector<8x8xf32> -> vector<8x8xf32>
    %cst_55 = arith.constant dense<0xFF800000> : vector<8xf32>
    %100 = vector.multi_reduction <maximumf>, %99, %cst_55 [1] : vector<8x8xf32> to vector<8xf32>
    %101 = vector.shape_cast %100 : vector<8xf32> to vector<8x1xf32>
    %102 = vector.broadcast %101 : vector<8x1xf32> to vector<8x8xf32>
    %103 = arith.subf %99, %102 : vector<8x8xf32>
    %104 = math.exp %103 : vector<8x8xf32>
    %cst_56 = arith.constant dense<0.000000e+00> : vector<8xf32>
    %105 = vector.multi_reduction <add>, %104, %cst_56 [1] : vector<8x8xf32> to vector<8xf32>
    %106 = vector.shape_cast %105 : vector<8xf32> to vector<8x1xf32>
    %107 = tpu.reciprocal %106 {approx = true} : vector<8x1xf32> -> vector<8x1xf32>
    %108 = vector.broadcast %107 : vector<8x1xf32> to vector<8x8xf32>
    %109 = arith.mulf %104, %108 : vector<8x8xf32>
    %110 = arith.truncf %109 : vector<8x8xf32> to vector<8x8xbf16>
    %cst_57 = arith.constant dense<0.000000e+00> : vector<8x32xf32>
    %111 = tpu.matmul %110, %98, %cst_57 {dimension_numbers = #tpu.dot_dimension_numbers<[1], [0], [0], [1], [0, 0, 1, 1], [], []>} : vector<8x8xbf16>, vector<8x32xbf16>, vector<8x32xf32> -> vector<8x32xf32>
    %112 = arith.truncf %111 : vector<8x32xf32> to vector<8x32xbf16>
    %c0_58 = arith.constant 0 : index
    %c160_59 = arith.constant 160 : index
    %113 = vector.load %arg15[%c0_58, %c160_59] : memref<8x256xbf16, #tpu.memory_space<vmem>>, vector<8x32xbf16>
    tpu.vector_store %arg15[%c0_58, %c160_59], %112 {strides = array<i32>} : memref<8x256xbf16, #tpu.memory_space<vmem>>, vector<8x32xbf16>,
    %c0_60 = arith.constant 0 : index
    %c192 = arith.constant 192 : index
    %114 = vector.load %arg14[%c0_60, %c192] : memref<8x768xbf16, #tpu.memory_space<vmem>>, vector<8x32xbf16>
    %c0_61 = arith.constant 0 : index
    %c448 = arith.constant 448 : index
    %115 = vector.load %arg14[%c0_61, %c448] : memref<8x768xbf16, #tpu.memory_space<vmem>>, vector<8x32xbf16>
    %c0_62 = arith.constant 0 : index
    %c704 = arith.constant 704 : index
    %116 = vector.load %arg14[%c0_62, %c704] : memref<8x768xbf16, #tpu.memory_space<vmem>>, vector<8x32xbf16>
    %cst_63 = arith.constant dense<0.000000e+00> : vector<8x8xf32>
    %117 = tpu.matmul %114, %115, %cst_63 {dimension_numbers = #tpu.dot_dimension_numbers<[1], [1], [0], [0], [0, 0, 1, 0], [], []>} : vector<8x32xbf16>, vector<8x32xbf16>, vector<8x8xf32> -> vector<8x8xf32>
    %cst_64 = arith.constant dense<0xFF800000> : vector<8xf32>
    %118 = vector.multi_reduction <maximumf>, %117, %cst_64 [1] : vector<8x8xf32> to vector<8xf32>
    %119 = vector.shape_cast %118 : vector<8xf32> to vector<8x1xf32>
    %120 = vector.broadcast %119 : vector<8x1xf32> to vector<8x8xf32>
    %121 = arith.subf %117, %120 : vector<8x8xf32>
    %122 = math.exp %121 : vector<8x8xf32>
    %cst_65 = arith.constant dense<0.000000e+00> : vector<8xf32>
    %123 = vector.multi_reduction <add>, %122, %cst_65 [1] : vector<8x8xf32> to vector<8xf32>
    %124 = vector.shape_cast %123 : vector<8xf32> to vector<8x1xf32>
    %125 = tpu.reciprocal %124 {approx = true} : vector<8x1xf32> -> vector<8x1xf32>
    %126 = vector.broadcast %125 : vector<8x1xf32> to vector<8x8xf32>
    %127 = arith.mulf %122, %126 : vector<8x8xf32>
    %128 = arith.truncf %127 : vector<8x8xf32> to vector<8x8xbf16>
    %cst_66 = arith.constant dense<0.000000e+00> : vector<8x32xf32>
    %129 = tpu.matmul %128, %116, %cst_66 {dimension_numbers = #tpu.dot_dimension_numbers<[1], [0], [0], [1], [0, 0, 1, 1], [], []>} : vector<8x8xbf16>, vector<8x32xbf16>, vector<8x32xf32> -> vector<8x32xf32>
    %130 = arith.truncf %129 : vector<8x32xf32> to vector<8x32xbf16>
    %c0_67 = arith.constant 0 : index
    %c192_68 = arith.constant 192 : index
    %131 = vector.load %arg15[%c0_67, %c192_68] : memref<8x256xbf16, #tpu.memory_space<vmem>>, vector<8x32xbf16>
    tpu.vector_store %arg15[%c0_67, %c192_68], %130 {strides = array<i32>} : memref<8x256xbf16, #tpu.memory_space<vmem>>, vector<8x32xbf16>,
    %c0_69 = arith.constant 0 : index
    %c224 = arith.constant 224 : index
    %132 = vector.load %arg14[%c0_69, %c224] : memref<8x768xbf16, #tpu.memory_space<vmem>>, vector<8x32xbf16>
    %c0_70 = arith.constant 0 : index
    %c480 = arith.constant 480 : index
    %133 = vector.load %arg14[%c0_70, %c480] : memref<8x768xbf16, #tpu.memory_space<vmem>>, vector<8x32xbf16>
    %c0_71 = arith.constant 0 : index
    %c736 = arith.constant 736 : index
    %134 = vector.load %arg14[%c0_71, %c736] : memref<8x768xbf16, #tpu.memory_space<vmem>>, vector<8x32xbf16>
    %cst_72 = arith.constant dense<0.000000e+00> : vector<8x8xf32>
    %135 = tpu.matmul %132, %133, %cst_72 {dimension_numbers = #tpu.dot_dimension_numbers<[1], [1], [0], [0], [0, 0, 1, 0], [], []>} : vector<8x32xbf16>, vector<8x32xbf16>, vector<8x8xf32> -> vector<8x8xf32>
    %cst_73 = arith.constant dense<0xFF800000> : vector<8xf32>
    %136 = vector.multi_reduction <maximumf>, %135, %cst_73 [1] : vector<8x8xf32> to vector<8xf32>
    %137 = vector.shape_cast %136 : vector<8xf32> to vector<8x1xf32>
    %138 = vector.broadcast %137 : vector<8x1xf32> to vector<8x8xf32>
    %139 = arith.subf %135, %138 : vector<8x8xf32>
    %140 = math.exp %139 : vector<8x8xf32>
    %cst_74 = arith.constant dense<0.000000e+00> : vector<8xf32>
    %141 = vector.multi_reduction <add>, %140, %cst_74 [1] : vector<8x8xf32> to vector<8xf32>
    %142 = vector.shape_cast %141 : vector<8xf32> to vector<8x1xf32>
    %143 = tpu.reciprocal %142 {approx = true} : vector<8x1xf32> -> vector<8x1xf32>
    %144 = vector.broadcast %143 : vector<8x1xf32> to vector<8x8xf32>
    %145 = arith.mulf %140, %144 : vector<8x8xf32>
    %146 = arith.truncf %145 : vector<8x8xf32> to vector<8x8xbf16>
    %cst_75 = arith.constant dense<0.000000e+00> : vector<8x32xf32>
    %147 = tpu.matmul %146, %134, %cst_75 {dimension_numbers = #tpu.dot_dimension_numbers<[1], [0], [0], [1], [0, 0, 1, 1], [], []>} : vector<8x8xbf16>, vector<8x32xbf16>, vector<8x32xf32> -> vector<8x32xf32>
    %148 = arith.truncf %147 : vector<8x32xf32> to vector<8x32xbf16>
    %c0_76 = arith.constant 0 : index
    %c224_77 = arith.constant 224 : index
    %149 = vector.load %arg15[%c0_76, %c224_77] : memref<8x256xbf16, #tpu.memory_space<vmem>>, vector<8x32xbf16>
    tpu.vector_store %arg15[%c0_76, %c224_77], %148 {strides = array<i32>} : memref<8x256xbf16, #tpu.memory_space<vmem>>, vector<8x32xbf16>,
    %c0_78 = arith.constant 0 : index
    %c0_79 = arith.constant 0 : index
    %150 = vector.load %arg15[%c0_78, %c0_79] : memref<8x256xbf16, #tpu.memory_space<vmem>>, vector<8x256xbf16>
    %c0_80 = arith.constant 0 : index
    %c0_81 = arith.constant 0 : index
    %151 = vector.load %arg3[%c0_80, %c0_81] : memref<256x32xbf16, #tpu.memory_space<vmem>>, vector<256x32xbf16>
    %cst_82 = arith.constant dense<0.000000e+00> : vector<8x32xf32>
    %152 = tpu.matmul %150, %151, %cst_82 {dimension_numbers = #tpu.dot_dimension_numbers<[1], [0], [0], [1], [0, 0, 1, 1], [], []>} : vector<8x256xbf16>, vector<256x32xbf16>, vector<8x32xf32> -> vector<8x32xf32>
    %c0_83 = arith.constant 0 : index
    %c0_84 = arith.constant 0 : index
    %153 = vector.load %arg4[%c0_83, %c0_84] : memref<1x32xf32, #tpu.memory_space<vmem>>, vector<1x32xf32>
    %154 = vector.broadcast %153 : vector<1x32xf32> to vector<8x32xf32>
    %155 = arith.addf %152, %154 : vector<8x32xf32>
    %156 = arith.addf %155, %0 : vector<8x32xf32>
    %c0_85 = arith.constant 0 : index
    %c0_86 = arith.constant 0 : index
    %157 = vector.load %arg5[%c0_85, %c0_86] : memref<1x32xf32, #tpu.memory_space<vmem>>, vector<1x32xf32>
    %c0_87 = arith.constant 0 : index
    %c0_88 = arith.constant 0 : index
    %158 = vector.load %arg6[%c0_87, %c0_88] : memref<1x32xf32, #tpu.memory_space<vmem>>, vector<1x32xf32>
    %cst_89 = arith.constant dense<0.000000e+00> : vector<8xf32>
    %159 = vector.multi_reduction <add>, %156, %cst_89 [1] : vector<8x32xf32> to vector<8xf32>
    %160 = vector.shape_cast %159 : vector<8xf32> to vector<8x1xf32>
    %cst_90 = arith.constant 3.200000e+01 : f32
    %161 = vector.broadcast %cst_90 : f32 to vector<8x1xf32>
    %162 = arith.divf %160, %161 : vector<8x1xf32>
    %163 = vector.broadcast %162 : vector<8x1xf32> to vector<8x32xf32>
    %164 = arith.subf %156, %163 : vector<8x32xf32>
    %165 = arith.mulf %164, %164 : vector<8x32xf32>
    %cst_91 = arith.constant dense<0.000000e+00> : vector<8xf32>
    %166 = vector.multi_reduction <add>, %165, %cst_91 [1] : vector<8x32xf32> to vector<8xf32>
    %167 = vector.shape_cast %166 : vector<8xf32> to vector<8x1xf32>
    %cst_92 = arith.constant 3.200000e+01 : f32
    %168 = vector.broadcast %cst_92 : f32 to vector<8x1xf32>
    %169 = arith.divf %167, %168 : vector<8x1xf32>
    %170 = vector.broadcast %162 : vector<8x1xf32> to vector<8x32xf32>
    %171 = arith.subf %156, %170 : vector<8x32xf32>
    %cst_93 = arith.constant 9.99999974E-6 : f32
    %172 = vector.broadcast %cst_93 : f32 to vector<8x1xf32>
    %173 = arith.addf %169, %172 : vector<8x1xf32>
    %174 = math.rsqrt %173 : vector<8x1xf32>
    %175 = vector.broadcast %174 : vector<8x1xf32> to vector<8x32xf32>
    %176 = arith.mulf %171, %175 : vector<8x32xf32>
    %177 = vector.broadcast %157 : vector<1x32xf32> to vector<8x32xf32>
    %178 = arith.mulf %176, %177 : vector<8x32xf32>
    %179 = vector.broadcast %158 : vector<1x32xf32> to vector<8x32xf32>
    %180 = arith.addf %178, %179 : vector<8x32xf32>
    %181 = arith.truncf %180 : vector<8x32xf32> to vector<8x32xbf16>
    %cst_94 = arith.constant 0.000000e+00 : f32
    %182 = vector.broadcast %cst_94 : f32 to vector<8x32xf32>
    %c0_95 = arith.constant 0 : index
    %c0_96 = arith.constant 0 : index
    %183 = vector.load %arg7[%c0_95, %c0_96] : memref<32x128xbf16, #tpu.memory_space<vmem>>, vector<32x128xbf16>
    %cst_97 = arith.constant dense<0.000000e+00> : vector<8x128xf32>
    %184 = tpu.matmul %181, %183, %cst_97 {dimension_numbers = #tpu.dot_dimension_numbers<[1], [0], [0], [1], [0, 0, 1, 1], [], []>} : vector<8x32xbf16>, vector<32x128xbf16>, vector<8x128xf32> -> vector<8x128xf32>
    %c0_98 = arith.constant 0 : index
    %c0_99 = arith.constant 0 : index
    %185 = vector.load %arg8[%c0_98, %c0_99] : memref<1x128xf32, #tpu.memory_space<vmem>>, vector<1x128xf32>
    %186 = vector.broadcast %185 : vector<1x128xf32> to vector<8x128xf32>
    %187 = arith.addf %184, %186 : vector<8x128xf32>
    %cst_100 = arith.constant 0.000000e+00 : f32
    %188 = vector.broadcast %cst_100 : f32 to vector<8x128xf32>
    %189 = arith.maximumf %187, %188 : vector<8x128xf32>
    %190 = arith.truncf %189 : vector<8x128xf32> to vector<8x128xbf16>
    %c0_101 = arith.constant 0 : index
    %c0_102 = arith.constant 0 : index
    %191 = vector.load %arg9[%c0_101, %c0_102] : memref<128x32xbf16, #tpu.memory_space<vmem>>, vector<128x32xbf16>
    %cst_103 = arith.constant dense<0.000000e+00> : vector<8x32xf32>
    %192 = tpu.matmul %190, %191, %cst_103 {dimension_numbers = #tpu.dot_dimension_numbers<[1], [0], [0], [1], [0, 0, 1, 1], [], []>} : vector<8x128xbf16>, vector<128x32xbf16>, vector<8x32xf32> -> vector<8x32xf32>
    %193 = arith.addf %182, %192 : vector<8x32xf32>
    %c0_104 = arith.constant 0 : index
    %c0_105 = arith.constant 0 : index
    %194 = vector.load %arg10[%c0_104, %c0_105] : memref<1x32xf32, #tpu.memory_space<vmem>>, vector<1x32xf32>
    %195 = vector.broadcast %194 : vector<1x32xf32> to vector<8x32xf32>
    %196 = arith.addf %193, %195 : vector<8x32xf32>
    %197 = arith.addf %196, %180 : vector<8x32xf32>
    %c0_106 = arith.constant 0 : index
    %c0_107 = arith.constant 0 : index
    %198 = vector.load %arg11[%c0_106, %c0_107] : memref<1x32xf32, #tpu.memory_space<vmem>>, vector<1x32xf32>
    %c0_108 = arith.constant 0 : index
    %c0_109 = arith.constant 0 : index
    %199 = vector.load %arg12[%c0_108, %c0_109] : memref<1x32xf32, #tpu.memory_space<vmem>>, vector<1x32xf32>
    %cst_110 = arith.constant dense<0.000000e+00> : vector<8xf32>
    %200 = vector.multi_reduction <add>, %197, %cst_110 [1] : vector<8x32xf32> to vector<8xf32>
    %201 = vector.shape_cast %200 : vector<8xf32> to vector<8x1xf32>
    %cst_111 = arith.constant 3.200000e+01 : f32
    %202 = vector.broadcast %cst_111 : f32 to vector<8x1xf32>
    %203 = arith.divf %201, %202 : vector<8x1xf32>
    %204 = vector.broadcast %203 : vector<8x1xf32> to vector<8x32xf32>
    %205 = arith.subf %197, %204 : vector<8x32xf32>
    %206 = arith.mulf %205, %205 : vector<8x32xf32>
    %cst_112 = arith.constant dense<0.000000e+00> : vector<8xf32>
    %207 = vector.multi_reduction <add>, %206, %cst_112 [1] : vector<8x32xf32> to vector<8xf32>
    %208 = vector.shape_cast %207 : vector<8xf32> to vector<8x1xf32>
    %cst_113 = arith.constant 3.200000e+01 : f32
    %209 = vector.broadcast %cst_113 : f32 to vector<8x1xf32>
    %210 = arith.divf %208, %209 : vector<8x1xf32>
    %211 = vector.broadcast %203 : vector<8x1xf32> to vector<8x32xf32>
    %212 = arith.subf %197, %211 : vector<8x32xf32>
    %cst_114 = arith.constant 9.99999974E-6 : f32
    %213 = vector.broadcast %cst_114 : f32 to vector<8x1xf32>
    %214 = arith.addf %210, %213 : vector<8x1xf32>
    %215 = math.rsqrt %214 : vector<8x1xf32>
    %216 = vector.broadcast %215 : vector<8x1xf32> to vector<8x32xf32>
    %217 = arith.mulf %212, %216 : vector<8x32xf32>
    %218 = vector.broadcast %198 : vector<1x32xf32> to vector<8x32xf32>
    %219 = arith.mulf %217, %218 : vector<8x32xf32>
    %220 = vector.broadcast %199 : vector<1x32xf32> to vector<8x32xf32>
    %221 = arith.addf %219, %220 : vector<8x32xf32>
    %c0_115 = arith.constant 0 : index
    %c0_116 = arith.constant 0 : index
    %222 = vector.load %arg13[%c0_115, %c0_116] : memref<8x32xf32, #tpu.memory_space<vmem>>, vector<8x32xf32>
    tpu.vector_store %arg13[%c0_115, %c0_116], %221 {strides = array<i32>} : memref<8x32xf32, #tpu.memory_space<vmem>>, vector<8x32xf32>,
    return
  }
  func.func @transform_0(%arg0: i32) -> (i32, i32) {
    %c0_i32 = arith.constant 0 : i32
    %c0_i32_0 = arith.constant 0 : i32
    return %arg0, %c0_i32 : i32, i32
  }
  func.func @transform_1(%arg0: i32) -> (i32, i32) {
    %c0_i32 = arith.constant 0 : i32
    %c0_i32_0 = arith.constant 0 : i32
    %c0_i32_1 = arith.constant 0 : i32
    return %c0_i32, %c0_i32_0 : i32, i32
  }
  func.func @transform_2(%arg0: i32) -> (i32, i32) {
    %c0_i32 = arith.constant 0 : i32
    %c0_i32_0 = arith.constant 0 : i32
    %c0_i32_1 = arith.constant 0 : i32
    return %c0_i32, %c0_i32_0 : i32, i32
  }
  func.func @transform_3(%arg0: i32) -> (i32, i32) {
    %c0_i32 = arith.constant 0 : i32
    %c0_i32_0 = arith.constant 0 : i32
    %c0_i32_1 = arith.constant 0 : i32
    return %c0_i32, %c0_i32_0 : i32, i32
  }
  func.func @transform_4(%arg0: i32) -> (i32, i32) {
    %c0_i32 = arith.constant 0 : i32
    %c0_i32_0 = arith.constant 0 : i32
    %c0_i32_1 = arith.constant 0 : i32
    return %c0_i32, %c0_i32_0 : i32, i32
  }
  func.func @transform_5(%arg0: i32) -> (i32, i32) {
    %c0_i32 = arith.constant 0 : i32
    %c0_i32_0 = arith.constant 0 : i32
    %c0_i32_1 = arith.constant 0 : i32
    return %c0_i32, %c0_i32_0 : i32, i32
  }
  func.func @transform_6(%arg0: i32) -> (i32, i32) {
    %c0_i32 = arith.constant 0 : i32
    %c0_i32_0 = arith.constant 0 : i32
    %c0_i32_1 = arith.constant 0 : i32
    return %c0_i32, %c0_i32_0 : i32, i32
  }
  func.func @transform_7(%arg0: i32) -> (i32, i32) {
    %c0_i32 = arith.constant 0 : i32
    %c0_i32_0 = arith.constant 0 : i32
    %c0_i32_1 = arith.constant 0 : i32
    return %c0_i32, %c0_i32_0 : i32, i32
  }
  func.func @transform_8(%arg0: i32) -> (i32, i32) {
    %c0_i32 = arith.constant 0 : i32
    %c0_i32_0 = arith.constant 0 : i32
    %c0_i32_1 = arith.constant 0 : i32
    return %c0_i32, %c0_i32_0 : i32, i32
  }
  func.func @transform_9(%arg0: i32) -> (i32, i32) {
    %c0_i32 = arith.constant 0 : i32
    %c0_i32_0 = arith.constant 0 : i32
    %c0_i32_1 = arith.constant 0 : i32
    return %c0_i32, %c0_i32_0 : i32, i32
  }
  func.func @transform_10(%arg0: i32) -> (i32, i32) {
    %c0_i32 = arith.constant 0 : i32
    %c0_i32_0 = arith.constant 0 : i32
    %c0_i32_1 = arith.constant 0 : i32
    return %c0_i32, %c0_i32_0 : i32, i32
  }
  func.func @transform_11(%arg0: i32) -> (i32, i32) {
    %c0_i32 = arith.constant 0 : i32
    %c0_i32_0 = arith.constant 0 : i32
    %c0_i32_1 = arith.constant 0 : i32
    return %c0_i32, %c0_i32_0 : i32, i32
  }
  func.func @transform_12(%arg0: i32) -> (i32, i32) {
    %c0_i32 = arith.constant 0 : i32
    %c0_i32_0 = arith.constant 0 : i32
    return %arg0, %c0_i32 : i32, i32
  }
}

</mosaic_0001>

<llo_original>
// kernel: tpu_custom_call.1
$region0: #{tpu_custom_call.1}
  #allocation0 [shape = 'u32[]', space=smem, size = 0x4, offset = 0x4, fixed_abs, tag = 'smem constant byte address 0x4 - core index']
  #allocation1 [shape = 'u32[72,128]{1,0:T(1,128)}', space=vmem, size = 0x9000, scoped, tag = 'internal scratch']
  #allocation2 [shape = 'bf16[8,768]{1,0:T(8,128)(2,1)}', space=vmem, size = 0x3000, scoped, tag = 'scratch operand']
  #allocation3 [shape = 'bf16[8,256]{1,0:T(8,128)(2,1)}', space=vmem, size = 0x1000, scoped, tag = 'scratch operand']
  %s0 = inlined_call_operand.vmem [shape: f32[16,32], index: 0, kind: input, shape index: {}]
  %s1 = inlined_call_operand.vmem [shape: bf16[32,768], index: 1, kind: input, shape index: {}]
  %s2 = inlined_call_operand.vmem [shape: bf16[256,32], index: 2, kind: input, shape index: {}]
  %s3 = inlined_call_operand.vmem [shape: f32[1,32], index: 3, kind: input, shape index: {}]
  %s4 = inlined_call_operand.vmem [shape: f32[1,32], index: 4, kind: input, shape index: {}]
  %s5 = inlined_call_operand.vmem [shape: f32[1,32], index: 5, kind: input, shape index: {}]
  %s6 = inlined_call_operand.vmem [shape: bf16[32,128], index: 6, kind: input, shape index: {}]
  %s7 = inlined_call_operand.vmem [shape: f32[1,128], index: 7, kind: input, shape index: {}]
  %s8 = inlined_call_operand.vmem [shape: bf16[128,32], index: 8, kind: input, shape index: {}]
  %s9 = inlined_call_operand.vmem [shape: f32[1,32], index: 9, kind: input, shape index: {}]
  %s10 = inlined_call_operand.vmem [shape: f32[1,32], index: 10, kind: input, shape index: {}]
  %s11 = inlined_call_operand.vmem [shape: f32[1,32], index: 11, kind: input, shape index: {}]
  %s12 = inlined_call_operand.hbm [shape: f32[16,32], index: 12, kind: output, shape index: {}]
  %s13 = sld [smem:[#allocation0]]
  $region81: #{tpu_custom_call.1} parent=0
    _
  %s15 = ssub.s32 1, %s13
  %s16 = scalar_select 0, %s15, %s13
  $region1: #{tpu_custom_call.1} parent=0
    #allocation4 [shape = 'u8[8192]{0}', space=vmem, size = 0x2000, scoped, tag = 'output window, operand 0']
    #allocation5 [shape = 's32[2]{0}', space=sflag, size = 0x8, scoped, tag = 'scoped memory for tpu_custom_call.1']
    %17 = vsyncpa [#allocation5], 0
    %s18 = scalar_lea.sflag [#allocation5], 1
    %19 = vsyncpa %s18, 0
    loop: start=0, step=1, limit=4
    $region2: #{tpu_custom_call.1} parent=1 // loop_pre_header
      _
    $region3: #{tpu_custom_call.1} parent=1 // loop_header
      %s21 = sphi 0, %s25
      %p22 = scmp.ge.s32.totalorder %s21, 4
      %s31 = sphi 0, %s33
      %s34 = sphi 0, %s31
      %s35 = sphi 0, %s34
      %s51 = sphi 0, %s35
      %s55 = sphi 0, %s55
      %s57 = sphi 0, %s55
      %s58 = sphi 0, %s57
      %s72 = sphi 0, %s58
      %s76 = sphi 0, %s76
      %s78 = sphi 0, %s76
      %s79 = sphi 0, %s78
      %s93 = sphi 0, %s79
      %s97 = sphi 0, %s97
      %s99 = sphi 0, %s97
      %s100 = sphi 0, %s99
      %s114 = sphi 0, %s100
      %s118 = sphi 0, %s118
      %s120 = sphi 0, %s118
      %s121 = sphi 0, %s120
      %s135 = sphi 0, %s121
      %s139 = sphi 0, %s139
      %s141 = sphi 0, %s139
      %s142 = sphi 0, %s141
      %s156 = sphi 0, %s142
      %s160 = sphi 0, %s160
      %s162 = sphi 0, %s160
      %s163 = sphi 0, %s162
      %s177 = sphi 0, %s163
      %s181 = sphi 0, %s181
      %s183 = sphi 0, %s181
      %s184 = sphi 0, %s183
      %s198 = sphi 0, %s184
      %s202 = sphi 0, %s202
      %s204 = sphi 0, %s202
      %s205 = sphi 0, %s204
      %s219 = sphi 0, %s205
      %s223 = sphi 0, %s223
      %s225 = sphi 0, %s223
      %s226 = sphi 0, %s225
      %s240 = sphi 0, %s226
      %s244 = sphi 0, %s244
      %s246 = sphi 0, %s244
      %s247 = sphi 0, %s246
      %s261 = sphi 0, %s247
      %s265 = sphi 0, %s265
      %s267 = sphi 0, %s265
      %s268 = sphi 0, %s267
      %s282 = sphi 0, %s268
      %s288 = sphi 0, %s290
      %s291 = sphi 0, %s288
      %s292 = sphi 0, %s291
      %s308 = sphi 0, %s292
    $region4: #{tpu_custom_call.1} parent=1 // loop_header_branch
      %24 = sbr.rel (%p22) target = $region8
    $region5: #{tpu_custom_call.1} parent=1 // loop_body
      %s26 = ssub.s32 %s21, 1
      %s27 = ssub.s32 %s21, 2
      %s28 = sadd.s32 %s21, 1
      %s29 = ssub.s32 %s21, %s28
      %p30 = scmp.eq.s32.totalorder %s29, 0
      %s32 = sadd.s32 %s31, 1
      %s33 = scalar_select %p30, %s31, %s32
      %p36 = pneg %p30
      %p37 = scmp.eq.s32.totalorder %s21, 1
      %p38 = por %p36, %p37
      %p39 = scmp.ne.s32.totalorder %s31, %s34
      %p40 = scmp.eq.s32.totalorder %s21, 0
      %p41 = por %p39, %p40
      %p42 = scmp.ne.s32.totalorder %s31, %s34
      %p43 = scmp.eq.s32.totalorder %s26, 1
      %p44 = por %p42, %p43
      %p45 = scmp.ne.s32.totalorder %s34, %s35
      %p46 = scmp.eq.s32.totalorder %s26, 0
      %p47 = por %p45, %p46
      %p48 = scmp.ne.s32.totalorder %s34, %s35
      %p49 = scmp.eq.s32.totalorder %s27, 1
      %p50 = por %p48, %p49
      %p52 = scmp.ne.s32.totalorder %s35, %s51
      %p53 = scmp.eq.s32.totalorder %s27, 0
      %p54 = por %p52, %p53
      %s56 = sadd.s32 %s55, 1
      %p59 = scmp.eq.s32.totalorder %s21, 1
      %p60 = scmp.ne.s32.totalorder %s55, %s57
      %p61 = scmp.eq.s32.totalorder %s21, 0
      %p62 = por %p60, %p61
      %p63 = scmp.ne.s32.totalorder %s55, %s57
      %p64 = scmp.eq.s32.totalorder %s26, 1
      %p65 = por %p63, %p64
      %p66 = scmp.ne.s32.totalorder %s57, %s58
      %p67 = scmp.eq.s32.totalorder %s26, 0
      %p68 = por %p66, %p67
      %p69 = scmp.ne.s32.totalorder %s57, %s58
      %p70 = scmp.eq.s32.totalorder %s27, 1
      %p71 = por %p69, %p70
      %p73 = scmp.ne.s32.totalorder %s58, %s72
      %p74 = scmp.eq.s32.totalorder %s27, 0
      %p75 = por %p73, %p74
      %s77 = sadd.s32 %s76, 1
      %p80 = scmp.eq.s32.totalorder %s21, 1
      %p81 = scmp.ne.s32.totalorder %s76, %s78
      %p82 = scmp.eq.s32.totalorder %s21, 0
      %p83 = por %p81, %p82
      %p84 = scmp.ne.s32.totalorder %s76, %s78
      %p85 = scmp.eq.s32.totalorder %s26, 1
      %p86 = por %p84, %p85
      %p87 = scmp.ne.s32.totalorder %s78, %s79
      %p88 = scmp.eq.s32.totalorder %s26, 0
      %p89 = por %p87, %p88
      %p90 = scmp.ne.s32.totalorder %s78, %s79
      %p91 = scmp.eq.s32.totalorder %s27, 1
      %p92 = por %p90, %p91
      %p94 = scmp.ne.s32.totalorder %s79, %s93
      %p95 = scmp.eq.s32.totalorder %s27, 0
      %p96 = por %p94, %p95
      %s98 = sadd.s32 %s97, 1
      %p101 = scmp.eq.s32.totalorder %s21, 1
      %p102 = scmp.ne.s32.totalorder %s97, %s99
      %p103 = scmp.eq.s32.totalorder %s21, 0
      %p104 = por %p102, %p103
      %p105 = scmp.ne.s32.totalorder %s97, %s99
      %p106 = scmp.eq.s32.totalorder %s26, 1
      %p107 = por %p105, %p106
      %p108 = scmp.ne.s32.totalorder %s99, %s100
      %p109 = scmp.eq.s32.totalorder %s26, 0
      %p110 = por %p108, %p109
      %p111 = scmp.ne.s32.totalorder %s99, %s100
      %p112 = scmp.eq.s32.totalorder %s27, 1
      %p113 = por %p111, %p112
      %p115 = scmp.ne.s32.totalorder %s100, %s114
      %p116 = scmp.eq.s32.totalorder %s27, 0
      %p117 = por %p115, %p116
      %s119 = sadd.s32 %s118, 1
      %p122 = scmp.eq.s32.totalorder %s21, 1
      %p123 = scmp.ne.s32.totalorder %s118, %s120
      %p124 = scmp.eq.s32.totalorder %s21, 0
      %p125 = por %p123, %p124
      %p126 = scmp.ne.s32.totalorder %s118, %s120
      %p127 = scmp.eq.s32.totalorder %s26, 1
      %p128 = por %p126, %p127
      %p129 = scmp.ne.s32.totalorder %s120, %s121
      %p130 = scmp.eq.s32.totalorder %s26, 0
      %p131 = por %p129, %p130
      %p132 = scmp.ne.s32.totalorder %s120, %s121
      %p133 = scmp.eq.s32.totalorder %s27, 1
      %p134 = por %p132, %p133
      %p136 = scmp.ne.s32.totalorder %s121, %s135
      %p137 = scmp.eq.s32.totalorder %s27, 0
      %p138 = por %p136, %p137
      %s140 = sadd.s32 %s139, 1
      %p143 = scmp.eq.s32.totalorder %s21, 1
      %p144 = scmp.ne.s32.totalorder %s139, %s141
      %p145 = scmp.eq.s32.totalorder %s21, 0
      %p146 = por %p144, %p145
      %p147 = scmp.ne.s32.totalorder %s139, %s141
      %p148 = scmp.eq.s32.totalorder %s26, 1
      %p149 = por %p147, %p148
      %p150 = scmp.ne.s32.totalorder %s141, %s142
      %p151 = scmp.eq.s32.totalorder %s26, 0
      %p152 = por %p150, %p151
      %p153 = scmp.ne.s32.totalorder %s141, %s142
      %p154 = scmp.eq.s32.totalorder %s27, 1
      %p155 = por %p153, %p154
      %p157 = scmp.ne.s32.totalorder %s142, %s156
      %p158 = scmp.eq.s32.totalorder %s27, 0
      %p159 = por %p157, %p158
      %s161 = sadd.s32 %s160, 1
      %p164 = scmp.eq.s32.totalorder %s21, 1
      %p165 = scmp.ne.s32.totalorder %s160, %s162
      %p166 = scmp.eq.s32.totalorder %s21, 0
      %p167 = por %p165, %p166
      %p168 = scmp.ne.s32.totalorder %s160, %s162
      %p169 = scmp.eq.s32.totalorder %s26, 1
      %p170 = por %p168, %p169
      %p171 = scmp.ne.s32.totalorder %s162, %s163
      %p172 = scmp.eq.s32.totalorder %s26, 0
      %p173 = por %p171, %p172
      %p174 = scmp.ne.s32.totalorder %s162, %s163
      %p175 = scmp.eq.s32.totalorder %s27, 1
      %p176 = por %p174, %p175
      %p178 = scmp.ne.s32.totalorder %s163, %s177
      %p179 = scmp.eq.s32.totalorder %s27, 0
      %p180 = por %p178, %p179
      %s182 = sadd.s32 %s181, 1
      %p185 = scmp.eq.s32.totalorder %s21, 1
      %p186 = scmp.ne.s32.totalorder %s181, %s183
      %p187 = scmp.eq.s32.totalorder %s21, 0
      %p188 = por %p186, %p187
      %p189 = scmp.ne.s32.totalorder %s181, %s183
      %p190 = scmp.eq.s32.totalorder %s26, 1
      %p191 = por %p189, %p190
      %p192 = scmp.ne.s32.totalorder %s183, %s184
      %p193 = scmp.eq.s32.totalorder %s26, 0
      %p194 = por %p192, %p193
      %p195 = scmp.ne.s32.totalorder %s183, %s184
      %p196 = scmp.eq.s32.totalorder %s27, 1
      %p197 = por %p195, %p196
      %p199 = scmp.ne.s32.totalorder %s184, %s198
      %p200 = scmp.eq.s32.totalorder %s27, 0
      %p201 = por %p199, %p200
      %s203 = sadd.s32 %s202, 1
      %p206 = scmp.eq.s32.totalorder %s21, 1
      %p207 = scmp.ne.s32.totalorder %s202, %s204
      %p208 = scmp.eq.s32.totalorder %s21, 0
      %p209 = por %p207, %p208
      %p210 = scmp.ne.s32.totalorder %s202, %s204
      %p211 = scmp.eq.s32.totalorder %s26, 1
      %p212 = por %p210, %p211
      %p213 = scmp.ne.s32.totalorder %s204, %s205
      %p214 = scmp.eq.s32.totalorder %s26, 0
      %p215 = por %p213, %p214
      %p216 = scmp.ne.s32.totalorder %s204, %s205
      %p217 = scmp.eq.s32.totalorder %s27, 1
      %p218 = por %p216, %p217
      %p220 = scmp.ne.s32.totalorder %s205, %s219
      %p221 = scmp.eq.s32.totalorder %s27, 0
      %p222 = por %p220, %p221
      %s224 = sadd.s32 %s223, 1
      %p227 = scmp.eq.s32.totalorder %s21, 1
      %p228 = scmp.ne.s32.totalorder %s223, %s225
      %p229 = scmp.eq.s32.totalorder %s21, 0
      %p230 = por %p228, %p229
      %p231 = scmp.ne.s32.totalorder %s223, %s225
      %p232 = scmp.eq.s32.totalorder %s26, 1
      %p233 = por %p231, %p232
      %p234 = scmp.ne.s32.totalorder %s225, %s226
      %p235 = scmp.eq.s32.totalorder %s26, 0
      %p236 = por %p234, %p235
      %p237 = scmp.ne.s32.totalorder %s225, %s226
      %p238 = scmp.eq.s32.totalorder %s27, 1
      %p239 = por %p237, %p238
      %p241 = scmp.ne.s32.totalorder %s226, %s240
      %p242 = scmp.eq.s32.totalorder %s27, 0
      %p243 = por %p241, %p242
      %s245 = sadd.s32 %s244, 1
      %p248 = scmp.eq.s32.totalorder %s21, 1
      %p249 = scmp.ne.s32.totalorder %s244, %s246
      %p250 = scmp.eq.s32.totalorder %s21, 0
      %p251 = por %p249, %p250
      %p252 = scmp.ne.s32.totalorder %s244, %s246
      %p253 = scmp.eq.s32.totalorder %s26, 1
      %p254 = por %p252, %p253
      %p255 = scmp.ne.s32.totalorder %s246, %s247
      %p256 = scmp.eq.s32.totalorder %s26, 0
      %p257 = por %p255, %p256
      %p258 = scmp.ne.s32.totalorder %s246, %s247
      %p259 = scmp.eq.s32.totalorder %s27, 1
      %p260 = por %p258, %p259
      %p262 = scmp.ne.s32.totalorder %s247, %s261
      %p263 = scmp.eq.s32.totalorder %s27, 0
      %p264 = por %p262, %p263
      %s266 = sadd.s32 %s265, 1
      %p269 = scmp.eq.s32.totalorder %s21, 1
      %p270 = scmp.ne.s32.totalorder %s265, %s267
      %p271 = scmp.eq.s32.totalorder %s21, 0
      %p272 = por %p270, %p271
      %p273 = scmp.ne.s32.totalorder %s265, %s267
      %p274 = scmp.eq.s32.totalorder %s26, 1
      %p275 = por %p273, %p274
      %p276 = scmp.ne.s32.totalorder %s267, %s268
      %p277 = scmp.eq.s32.totalorder %s26, 0
      %p278 = por %p276, %p277
      %p279 = scmp.ne.s32.totalorder %s267, %s268
      %p280 = scmp.eq.s32.totalorder %s27, 1
      %p281 = por %p279, %p280
      %p283 = scmp.ne.s32.totalorder %s268, %s282
      %p284 = scmp.eq.s32.totalorder %s27, 0
      %p285 = por %p283, %p284
      %s286 = ssub.s32 %s21, %s28
      %p287 = scmp.eq.s32.totalorder %s286, 0
      %s289 = sadd.s32 %s288, 1
      %s290 = scalar_select %p287, %s288, %s289
      %p293 = pneg %p287
      %p294 = scmp.eq.s32.totalorder %s21, 1
      %p295 = por %p293, %p294
      %p296 = scmp.ne.s32.totalorder %s288, %s291
      %p297 = scmp.eq.s32.totalorder %s21, 0
      %p298 = por %p296, %p297
      %p299 = scmp.ne.s32.totalorder %s288, %s291
      %p300 = scmp.eq.s32.totalorder %s26, 1
      %p301 = por %p299, %p300
      %p302 = scmp.ne.s32.totalorder %s291, %s292
      %p303 = scmp.eq.s32.totalorder %s26, 0
      %p304 = por %p302, %p303
      %p305 = scmp.ne.s32.totalorder %s291, %s292
      %p306 = scmp.eq.s32.totalorder %s27, 1
      %p307 = por %p305, %p306
      %p309 = scmp.ne.s32.totalorder %s292, %s308
      %p310 = scmp.eq.s32.totalorder %s27, 0
      %p311 = por %p309, %p310
      %p312 = scmp.le.s32.totalorder 1, %s21
      %p313 = scmp.lt.s32.totalorder %s21, 3
      %p314 = pnand %p312, %p313
      %p315 = pneg %p314
      // Predicated region
      $region9: #{tpu_custom_call.1} parent=5 // pred_check
        _
      $region10: #{tpu_custom_call.1} parent=5 // pred_check_branch
        %317 = sbr.rel (%p314) target = $region12
      $region11: #{tpu_custom_call.1} parent=5 // pred_region
        %s318 = ssub.s32 %s21, 1
        // Predicated region
        $region13: #{tpu_custom_call.1} parent=11 // pred_check
          %p319 = pneg %p68
        $region14: #{tpu_custom_call.1} parent=11 // pred_check_branch
          %321 = sbr.rel (%p319) target = $region16
        $region15: #{tpu_custom_call.1} parent=11 // pred_region
          _
        $region16: #{tpu_custom_call.1} parent=11 // pred_fallthru
          _
        // Predicated region
        $region17: #{tpu_custom_call.1} parent=11 // pred_check
          %p322 = pneg %p89
        $region18: #{tpu_custom_call.1} parent=11 // pred_check_branch
          %324 = sbr.rel (%p322) target = $region20
        $region19: #{tpu_custom_call.1} parent=11 // pred_region
          _
        $region20: #{tpu_custom_call.1} parent=11 // pred_fallthru
          _
        // Predicated region
        $region21: #{tpu_custom_call.1} parent=11 // pred_check
          %p325 = pneg %p110
        $region22: #{tpu_custom_call.1} parent=11 // pred_check_branch
          %327 = sbr.rel (%p325) target = $region24
        $region23: #{tpu_custom_call.1} parent=11 // pred_region
          _
        $region24: #{tpu_custom_call.1} parent=11 // pred_fallthru
          _
        // Predicated region
        $region25: #{tpu_custom_call.1} parent=11 // pred_check
          %p328 = pneg %p131
        $region26: #{tpu_custom_call.1} parent=11 // pred_check_branch
          %330 = sbr.rel (%p328) target = $region28
        $region27: #{tpu_custom_call.1} parent=11 // pred_region
          _
        $region28: #{tpu_custom_call.1} parent=11 // pred_fallthru
          _
        // Predicated region
        $region29: #{tpu_custom_call.1} parent=11 // pred_check
          %p331 = pneg %p152
        $region30: #{tpu_custom_call.1} parent=11 // pred_check_branch
          %333 = sbr.rel (%p331) target = $region32
        $region31: #{tpu_custom_call.1} parent=11 // pred_region
          _
        $region32: #{tpu_custom_call.1} parent=11 // pred_fallthru
          _
        // Predicated region
        $region33: #{tpu_custom_call.1} parent=11 // pred_check
          %p334 = pneg %p173
        $region34: #{tpu_custom_call.1} parent=11 // pred_check_branch
          %336 = sbr.rel (%p334) target = $region36
        $region35: #{tpu_custom_call.1} parent=11 // pred_region
          _
        $region36: #{tpu_custom_call.1} parent=11 // pred_fallthru
          _
        // Predicated region
        $region37: #{tpu_custom_call.1} parent=11 // pred_check
          %p337 = pneg %p194
        $region38: #{tpu_custom_call.1} parent=11 // pred_check_branch
          %339 = sbr.rel (%p337) target = $region40
        $region39: #{tpu_custom_call.1} parent=11 // pred_region
          _
        $region40: #{tpu_custom_call.1} parent=11 // pred_fallthru
          _
        // Predicated region
        $region41: #{tpu_custom_call.1} parent=11 // pred_check
          %p340 = pneg %p215
        $region42: #{tpu_custom_call.1} parent=11 // pred_check_branch
          %342 = sbr.rel (%p340) target = $region44
        $region43: #{tpu_custom_call.1} parent=11 // pred_region
          _
        $region44: #{tpu_custom_call.1} parent=11 // pred_fallthru
          _
        // Predicated region
        $region45: #{tpu_custom_call.1} parent=11 // pred_check
          %p343 = pneg %p236
        $region46: #{tpu_custom_call.1} parent=11 // pred_check_branch
          %345 = sbr.rel (%p343) target = $region48
        $region47: #{tpu_custom_call.1} parent=11 // pred_region
          _
        $region48: #{tpu_custom_call.1} parent=11 // pred_fallthru
          _
        // Predicated region
        $region49: #{tpu_custom_call.1} parent=11 // pred_check
          %p346 = pneg %p257
        $region50: #{tpu_custom_call.1} parent=11 // pred_check_branch
          %348 = sbr.rel (%p346) target = $region52
        $region51: #{tpu_custom_call.1} parent=11 // pred_region
          _
        $region52: #{tpu_custom_call.1} parent=11 // pred_fallthru
          _
        // Predicated region
        $region53: #{tpu_custom_call.1} parent=11 // pred_check
          %p349 = pneg %p278
        $region54: #{tpu_custom_call.1} parent=11 // pred_check_branch
          %351 = sbr.rel (%p349) target = $region56
        $region55: #{tpu_custom_call.1} parent=11 // pred_region
          _
        $region56: #{tpu_custom_call.1} parent=11 // pred_fallthru
          _
      $region12: #{tpu_custom_call.1} parent=5 // pred_fallthru
        _
      %p352 = scmp.lt.s32.totalorder %s21, 2
      // Predicated region
      $region57: #{tpu_custom_call.1} parent=5 // pred_check
        %p353 = pneg %p352
      $region58: #{tpu_custom_call.1} parent=5 // pred_check_branch
        %355 = sbr.rel (%p353) target = $region60
      $region59: #{tpu_custom_call.1} parent=5 // pred_region
        // Predicated region
        $region61: #{tpu_custom_call.1} parent=59 // pred_check
          %p356 = pneg %p41
        $region62: #{tpu_custom_call.1} parent=59 // pred_check_branch
          %358 = sbr.rel (%p356) target = $region64
        $region63: #{tpu_custom_call.1} parent=59 // pred_region
          %p359 = scmp.lt.s32.totalorder %s21, 1
          %s360 = scalar_select %p359, %s21, 1
          %s361 = smul.addr %s360, 8
          %s362 = scalar_lea.vmem %s0, %s361
        $region64: #{tpu_custom_call.1} parent=59 // pred_fallthru
          _
      $region60: #{tpu_custom_call.1} parent=5 // pred_fallthru
        _
      %p363 = scmp.le.s32.totalorder 1, %s21
      %p364 = scmp.lt.s32.totalorder %s21, 3
      %p365 = pnand %p363, %p364
      %p366 = pneg %p365
      // Predicated region
      $region65: #{tpu_custom_call.1} parent=5 // pred_check
        _
      $region66: #{tpu_custom_call.1} parent=5 // pred_check_branch
        %368 = sbr.rel (%p365) target = $region68
      $region67: #{tpu_custom_call.1} parent=5 // pred_region
        %s369 = ssub.s32 %s21, 1
        %p370 = scmp.lt.s32.totalorder %s26, 1
        %s371 = scalar_select %p370, %s26, 1
        %s372 = smul.addr %s371, 8
        %s373 = scalar_lea.vmem %s0, %s372
        %p374 = pneg %p47
        %p375 = pneg %p44
        %p376 = pneg %p68
        %p377 = pneg %p65
        %p378 = pneg %p89
        %p379 = pneg %p86
        %p380 = pneg %p110
        %p381 = pneg %p107
        %p382 = pneg %p131
        %p383 = pneg %p128
        %p384 = pneg %p152
        %p385 = pneg %p149
        %p386 = pneg %p173
        %p387 = pneg %p170
        %p388 = pneg %p194
        %p389 = pneg %p191
        %p390 = pneg %p215
        %p391 = pneg %p212
        %p392 = pneg %p236
        %p393 = pneg %p233
        %p394 = pneg %p257
        %p395 = pneg %p254
        %p396 = pneg %p278
        %p397 = pneg %p275
        %p398 = pneg %p304
        %p399 = pneg %p301
        %s400 = sand.u32 %s291, 1
        %s401 = scalar_lea.sflag [#allocation5], %s400
        %s402 = sand.u32 %s291, 1
        %s403 = smul.addr %s402, 8
        %s404 = scalar_lea.vmem [#allocation4], %s403
        %p405 = scmp.lt.s32.totalorder %s26, 1
        %s406 = scalar_select %p405, %s26, 1
        %s407 = smul.addr %s406, 8
        %s408 = scalar_lea.vmem %s0, %s407
        %v410 = vld [vmem:[%s408] sm:$0xff]
        %v411 = vpack.c.bf16 %v410, %v410
        %v412 = vld [vmem:[%s1] sm:$0xff]
        %v413 = vld [vmem:[%s1 + $0x8] sm:$0xff]
        %v414 = vld [vmem:[%s1 + $0x10] sm:$0xff]
        %v415 = vld [vmem:[%s1 + $0x18] sm:$0xff]
        %v416 = vld [vmem:[%s1 + $0x20] sm:$0xff]
        %v417 = vld [vmem:[%s1 + $0x28] sm:$0xff]
        %v418 = vld [vmem:[%s1 + $0x30] sm:$0xff]
        %v419 = vld [vmem:[%s1 + $0x38] sm:$0xff]
        %v420 = vld [vmem:[%s1 + $0x40] sm:$0xff]
        %v421 = vld [vmem:[%s1 + $0x48] sm:$0xff]
        %v422 = vld [vmem:[%s1 + $0x50] sm:$0xff]
        %v423 = vld [vmem:[%s1 + $0x58] sm:$0xff]
        %v436 = vunpack.c.l.b16 %v412
        %v437 = vunpack.c.h.b16 %v412
        %v438 = vunpack.c.l.b16 %v413
        %v439 = vunpack.c.h.b16 %v413
        %v440 = vunpack.c.l.b16 %v414
        %v441 = vunpack.c.h.b16 %v414
        %v442 = vunpack.c.l.b16 %v415
        %v443 = vunpack.c.h.b16 %v415
        %v444 = vunpack.c.l.b16 %v416
        %v445 = vunpack.c.h.b16 %v416
        %v446 = vunpack.c.l.b16 %v417
        %v447 = vunpack.c.h.b16 %v417
        %v448 = vunpack.c.l.b16 %v418
        %v449 = vunpack.c.h.b16 %v418
        %v450 = vunpack.c.l.b16 %v419
        %v451 = vunpack.c.h.b16 %v419
        %v452 = vunpack.c.l.b16 %v420
        %v453 = vunpack.c.h.b16 %v420
        %v454 = vunpack.c.l.b16 %v421
        %v455 = vunpack.c.h.b16 %v421
        %v456 = vunpack.c.l.b16 %v422
        %v457 = vunpack.c.h.b16 %v422
        %v458 = vunpack.c.l.b16 %v423
        %v459 = vunpack.c.h.b16 %v423
        %v460 = vpack.c.b16 %v442, %v436
        %v461 = vpack.c.b16 %v443, %v437
        %v462 = vpack.c.b16 %v444, %v438
        %v463 = vpack.c.b16 %v445, %v439
        %v464 = vpack.c.b16 %v446, %v440
        %v465 = vpack.c.b16 %v447, %v441
        %v466 = vpack.c.b16 %v454, %v448
        %v467 = vpack.c.b16 %v455, %v449
        %v468 = vpack.c.b16 %v456, %v450
        %v469 = vpack.c.b16 %v457, %v451
        %v470 = vpack.c.b16 %v458, %v452
        %v471 = vpack.c.b16 %v459, %v453
        %vm484 = vcmask 261120
        %v486 = vsel %vm484, %v411, 0
        %488 = vmatpush.bf16.msra.mxu0 0
        %489 = vmatpush.bf16.msra.mxu0 0
        %490 = vmatpush.bf16.msra.mxu0 0
        %491 = vmatpush.bf16.msra.mxu0 0
        %492 = vmatpush.bf16.msra.mxu0 0
        %493 = vmatpush.bf16.msra.mxu0 0
        %494 = vmatpush.bf16.msra.mxu0 %v466
        %495 = vmatpush.bf16.msra.mxu0 %v460
        %496 = vmatmul.bf16.gmra.mxu0 %v486
        %v497 = vpop.f32.mrf.mxu0
        %v498 = vadd.f32 0.0, %v497
        %v499 = vpop.f32.mrf.mxu0
        %500 = vdwg.mxu0
        %501 = vmatpush.bf16.msra.mxu0 0
        %502 = vmatpush.bf16.msra.mxu0 0
        %503 = vmatpush.bf16.msra.mxu0 0
        %504 = vmatpush.bf16.msra.mxu0 0
        %505 = vmatpush.bf16.msra.mxu0 0
        %506 = vmatpush.bf16.msra.mxu0 0
        %507 = vmatpush.bf16.msra.mxu0 %v467
        %508 = vmatpush.bf16.msra.mxu0 %v461
        %509 = vmatmul.bf16.gmra.mxu0 %v486
        %v510 = vpop.f32.mrf.mxu0
        %v511 = vadd.f32 0.0, %v510
        %v512 = vpop.f32.mrf.mxu0
        %513 = vdwg.mxu0
        %514 = vmatpush.bf16.msra.mxu0 0
        %515 = vmatpush.bf16.msra.mxu0 0
        %516 = vmatpush.bf16.msra.mxu0 0
        %517 = vmatpush.bf16.msra.mxu0 0
        %518 = vmatpush.bf16.msra.mxu0 0
        %519 = vmatpush.bf16.msra.mxu0 0
        %520 = vmatpush.bf16.msra.mxu0 %v468
        %521 = vmatpush.bf16.msra.mxu0 %v462
        %522 = vmatmul.bf16.gmra.mxu0 %v486
        %v523 = vpop.f32.mrf.mxu0
        %v524 = vadd.f32 0.0, %v523
        %v525 = vpop.f32.mrf.mxu0
        %526 = vdwg.mxu0
        %527 = vmatpush.bf16.msra.mxu0 0
        %528 = vmatpush.bf16.msra.mxu0 0
        %529 = vmatpush.bf16.msra.mxu0 0
        %530 = vmatpush.bf16.msra.mxu0 0
        %531 = vmatpush.bf16.msra.mxu0 0
        %532 = vmatpush.bf16.msra.mxu0 0
        %533 = vmatpush.bf16.msra.mxu0 %v469
        %534 = vmatpush.bf16.msra.mxu0 %v463
        %535 = vmatmul.bf16.gmra.mxu0 %v486
        %v536 = vpop.f32.mrf.mxu0
        %v537 = vadd.f32 0.0, %v536
        %v538 = vpop.f32.mrf.mxu0
        %539 = vdwg.mxu0
        %540 = vmatpush.bf16.msra.mxu0 0
        %541 = vmatpush.bf16.msra.mxu0 0
        %542 = vmatpush.bf16.msra.mxu0 0
        %543 = vmatpush.bf16.msra.mxu0 0
        %544 = vmatpush.bf16.msra.mxu0 0
        %545 = vmatpush.bf16.msra.mxu0 0
        %546 = vmatpush.bf16.msra.mxu0 %v470
        %547 = vmatpush.bf16.msra.mxu0 %v464
        %548 = vmatmul.bf16.gmra.mxu0 %v486
        %v549 = vpop.f32.mrf.mxu0
        %v550 = vadd.f32 0.0, %v549
        %v551 = vpop.f32.mrf.mxu0
        %552 = vdwg.mxu0
        %553 = vmatpush.bf16.msra.mxu0 0
        %554 = vmatpush.bf16.msra.mxu0 0
        %555 = vmatpush.bf16.msra.mxu0 0
        %556 = vmatpush.bf16.msra.mxu0 0
        %557 = vmatpush.bf16.msra.mxu0 0
        %558 = vmatpush.bf16.msra.mxu0 0
        %559 = vmatpush.bf16.msra.mxu0 %v471
        %560 = vmatpush.bf16.msra.mxu0 %v465
        %561 = vmatmul.bf16.gmra.mxu0 %v486
        %v562 = vpop.f32.mrf.mxu0
        %v563 = vadd.f32 0.0, %v562
        %v564 = vpop.f32.mrf.mxu0
        %565 = vdwg.mxu0
        %v566 = vpack.c.bf16 %v511, %v498
        %v567 = vpack.c.bf16 %v537, %v524
        %v568 = vpack.c.bf16 %v563, %v550
        %569 = vst [vmem:[#allocation2] sm:$0xff] %v566
        %570 = vst [vmem:[#allocation2 + $0x8] sm:$0xff] %v567
        %571 = vst [vmem:[#allocation2 + $0x10] sm:$0xff] %v568
        %v572 = vld [vmem:[#allocation2] sm:$0xf]
        %v573 = vld [vmem:[#allocation2 + $0x8] sm:$0xf]
        %v574 = vld [vmem:[#allocation2 + $0x10] sm:$0xf]
        %v576 = vsel %vm484, %v572, 0
        %v579 = vsel %vm484, %v573, 0
        %581 = vmatpush.bf16.xpose.msra.mxu0 0
        %582 = vmatpush.bf16.xpose.msra.mxu0 0
        %583 = vmatpush.bf16.xpose.msra.mxu0 0
        %584 = vmatpush.bf16.xpose.msra.mxu0 0
        %585 = vmatpush.bf16.xpose.msra.mxu0 0
        %586 = vmatpush.bf16.xpose.msra.mxu0 0
        %587 = vmatpush.bf16.xpose.msra.mxu0 0
        %588 = vmatpush.bf16.xpose.msra.mxu0 %v579
        %589 = vmatmul.bf16.gmra.mxu0 %v576
        %v590 = vpop.f32.mrf.mxu0
        %v591 = vadd.f32 0.0, %v590
        %v592 = vpop.f32.mrf.mxu0
        %593 = vdwg.mxu0
        %vm594 = vcmask 64512
        %v595 = vsel %vm594, %v591, -inf
        %596 = vmax.xlane.f32.xlu0 %v595
        %v597 = vpop.xlane.xlu0 %596
        %v598 = vsub.f32 %v591, %v597
        %v599 = vmul.f32 %v598, 1.442695
        %v600 = vpow.pop %v599
        %v601 = vsel %vm594, %v600, 0.0
        %602 = vadd.xlane.f32.xlu0 %v601
        %v603 = vpop.xlane.xlu0 %602
        %v604 = vrcp.pop %v603
        %v605 = vmul.f32 %v600, %v604
        %v606 = vpack.c.bf16 %v605, %v605
        %v608 = vsel %vm594, %v606, 0
        %vm610 = vcmask 1043456
        %v612 = vsel %vm610, %v574, 0
        %614 = vmatpush.bf16.msra.mxu0 0
        %615 = vmatpush.bf16.msra.mxu0 0
        %616 = vmatpush.bf16.msra.mxu0 0
        %617 = vmatpush.bf16.msra.mxu0 0
        %618 = vmatpush.bf16.msra.mxu0 0
        %619 = vmatpush.bf16.msra.mxu0 0
        %620 = vmatpush.bf16.msra.mxu0 0
        %621 = vmatpush.bf16.msra.mxu0 %v612
        %622 = vmatmul.bf16.gmra.mxu0 %v608
        %v623 = vpop.f32.mrf.mxu0
        %v624 = vadd.f32 0.0, %v623
        %v625 = vpop.f32.mrf.mxu0
        %626 = vdwg.mxu0
        %v627 = vpack.c.bf16 %v624, %v624
        %vm628 = vcmask 257024
        %629 = vst.msk [vmem:[#allocation3] sm:$0xf] %vm628, %v627
        %v630 = vld [vmem:[#allocation2] sm:$0xf]
        %v631 = vld [vmem:[#allocation2 + $0x8] sm:$0xf]
        %v632 = vld [vmem:[#allocation2 + $0x10] sm:$0xf]
        %v634 = vunpack.c.l.b16 %v630
        %v635 = vpack.c.b16 %v634, %v634
        %636 = vrot.lane.b32.xlu0 %v635, 96
        %v637 = vpop.permute.xlu0 %636
        %v639 = vunpack.c.l.b16 %v631
        %v640 = vpack.c.b16 %v639, %v639
        %641 = vrot.lane.b32.xlu0 %v640, 96
        %v642 = vpop.permute.xlu0 %641
        %v644 = vsel %vm484, %v637, 0
        %v647 = vsel %vm484, %v642, 0
        %649 = vmatpush.bf16.xpose.msra.mxu0 0
        %650 = vmatpush.bf16.xpose.msra.mxu0 0
        %651 = vmatpush.bf16.xpose.msra.mxu0 0
        %652 = vmatpush.bf16.xpose.msra.mxu0 0
        %653 = vmatpush.bf16.xpose.msra.mxu0 0
        %654 = vmatpush.bf16.xpose.msra.mxu0 0
        %655 = vmatpush.bf16.xpose.msra.mxu0 0
        %656 = vmatpush.bf16.xpose.msra.mxu0 %v647
        %657 = vmatmul.bf16.gmra.mxu0 %v644
        %v658 = vpop.f32.mrf.mxu0
        %v659 = vadd.f32 0.0, %v658
        %v660 = vpop.f32.mrf.mxu0
        %661 = vdwg.mxu0
        %v662 = vsel %vm594, %v659, -inf
        %663 = vmax.xlane.f32.xlu0 %v662
        %v664 = vpop.xlane.xlu0 %663
        %v665 = vsub.f32 %v659, %v664
        %v666 = vmul.f32 %v665, 1.442695
        %v667 = vpow.pop %v666
        %v668 = vsel %vm594, %v667, 0.0
        %669 = vadd.xlane.f32.xlu0 %v668
        %v670 = vpop.xlane.xlu0 %669
        %v671 = vrcp.pop %v670
        %v672 = vmul.f32 %v667, %v671
        %v673 = vpack.c.bf16 %v672, %v672
        %v675 = vunpack.c.l.b16 %v632
        %v676 = vpack.c.b16 %v675, %v675
        %677 = vrot.lane.b32.xlu0 %v676, 96
        %v678 = vpop.permute.xlu0 %677
        %v680 = vsel %vm594, %v673, 0
        %v683 = vsel %vm610, %v678, 0
        %685 = vmatpush.bf16.msra.mxu0 0
        %686 = vmatpush.bf16.msra.mxu0 0
        %687 = vmatpush.bf16.msra.mxu0 0
        %688 = vmatpush.bf16.msra.mxu0 0
        %689 = vmatpush.bf16.msra.mxu0 0
        %690 = vmatpush.bf16.msra.mxu0 0
        %691 = vmatpush.bf16.msra.mxu0 0
        %692 = vmatpush.bf16.msra.mxu0 %v683
        %693 = vmatmul.bf16.gmra.mxu0 %v680
        %v694 = vpop.f32.mrf.mxu0
        %v695 = vadd.f32 0.0, %v694
        %v696 = vpop.f32.mrf.mxu0
        %697 = vdwg.mxu0
        %v698 = vpack.c.bf16 %v695, %v695
        %700 = vrot.lane.b32.xlu0 %v698, 32
        %v701 = vpop.permute.xlu0 %700
        %vm703 = vcmask 519424
        %704 = vst.msk [vmem:[#allocation3] sm:$0xf] %vm703, %v701
        %v705 = vld [vmem:[#allocation2] sm:$0xf]
        %v706 = vld [vmem:[#allocation2 + $0x8] sm:$0xf]
        %v707 = vld [vmem:[#allocation2 + $0x10] sm:$0xf]
        %v709 = vunpack.c.l.b16 %v705
        %v710 = vpack.c.b16 %v709, %v709
        %711 = vrot.lane.b32.xlu0 %v710, 64
        %v712 = vpop.permute.xlu0 %711
        %v714 = vunpack.c.l.b16 %v706
        %v715 = vpack.c.b16 %v714, %v714
        %716 = vrot.lane.b32.xlu0 %v715, 64
        %v717 = vpop.permute.xlu0 %716
        %v719 = vsel %vm484, %v712, 0
        %v722 = vsel %vm484, %v717, 0
        %724 = vmatpush.bf16.xpose.msra.mxu0 0
        %725 = vmatpush.bf16.xpose.msra.mxu0 0
        %726 = vmatpush.bf16.xpose.msra.mxu0 0
        %727 = vmatpush.bf16.xpose.msra.mxu0 0
        %728 = vmatpush.bf16.xpose.msra.mxu0 0
        %729 = vmatpush.bf16.xpose.msra.mxu0 0
        %730 = vmatpush.bf16.xpose.msra.mxu0 0
        %731 = vmatpush.bf16.xpose.msra.mxu0 %v722
        %732 = vmatmul.bf16.gmra.mxu0 %v719
        %v733 = vpop.f32.mrf.mxu0
        %v734 = vadd.f32 0.0, %v733
        %v735 = vpop.f32.mrf.mxu0
        %736 = vdwg.mxu0
        %v737 = vsel %vm594, %v734, -inf
        %738 = vmax.xlane.f32.xlu0 %v737
        %v739 = vpop.xlane.xlu0 %738
        %v740 = vsub.f32 %v734, %v739
        %v741 = vmul.f32 %v740, 1.442695
        %v742 = vpow.pop %v741
        %v743 = vsel %vm594, %v742, 0.0
        %744 = vadd.xlane.f32.xlu0 %v743
        %v745 = vpop.xlane.xlu0 %744
        %v746 = vrcp.pop %v745
        %v747 = vmul.f32 %v742, %v746
        %v748 = vpack.c.bf16 %v747, %v747
        %v750 = vunpack.c.l.b16 %v707
        %v751 = vpack.c.b16 %v750, %v750
        %752 = vrot.lane.b32.xlu0 %v751, 64
        %v753 = vpop.permute.xlu0 %752
        %v755 = vsel %vm594, %v748, 0
        %v758 = vsel %vm610, %v753, 0
        %760 = vmatpush.bf16.msra.mxu0 0
        %761 = vmatpush.bf16.msra.mxu0 0
        %762 = vmatpush.bf16.msra.mxu0 0
        %763 = vmatpush.bf16.msra.mxu0 0
        %764 = vmatpush.bf16.msra.mxu0 0
        %765 = vmatpush.bf16.msra.mxu0 0
        %766 = vmatpush.bf16.msra.mxu0 0
        %767 = vmatpush.bf16.msra.mxu0 %v758
        %768 = vmatmul.bf16.gmra.mxu0 %v755
        %v769 = vpop.f32.mrf.mxu0
        %v770 = vadd.f32 0.0, %v769
        %v771 = vpop.f32.mrf.mxu0
        %772 = vdwg.mxu0
        %v773 = vpack.c.bf16 %v770, %v770
        %775 = vrot.lane.b32.xlu0 %v773, 64
        %v776 = vpop.permute.xlu0 %775
        %vm778 = vcmask 781824
        %779 = vst.msk [vmem:[#allocation3] sm:$0xf] %vm778, %v776
        %v780 = vld [vmem:[#allocation2] sm:$0xf]
        %v781 = vld [vmem:[#allocation2 + $0x8] sm:$0xf]
        %v782 = vld [vmem:[#allocation2 + $0x10] sm:$0xf]
        %v784 = vunpack.c.l.b16 %v780
        %v785 = vpack.c.b16 %v784, %v784
        %786 = vrot.lane.b32.xlu0 %v785, 32
        %v787 = vpop.permute.xlu0 %786
        %v789 = vunpack.c.l.b16 %v781
        %v790 = vpack.c.b16 %v789, %v789
        %791 = vrot.lane.b32.xlu0 %v790, 32
        %v792 = vpop.permute.xlu0 %791
        %v794 = vsel %vm484, %v787, 0
        %v797 = vsel %vm484, %v792, 0
        %799 = vmatpush.bf16.xpose.msra.mxu0 0
        %800 = vmatpush.bf16.xpose.msra.mxu0 0
        %801 = vmatpush.bf16.xpose.msra.mxu0 0
        %802 = vmatpush.bf16.xpose.msra.mxu0 0
        %803 = vmatpush.bf16.xpose.msra.mxu0 0
        %804 = vmatpush.bf16.xpose.msra.mxu0 0
        %805 = vmatpush.bf16.xpose.msra.mxu0 0
        %806 = vmatpush.bf16.xpose.msra.mxu0 %v797
        %807 = vmatmul.bf16.gmra.mxu0 %v794
        %v808 = vpop.f32.mrf.mxu0
        %v809 = vadd.f32 0.0, %v808
        %v810 = vpop.f32.mrf.mxu0
        %811 = vdwg.mxu0
        %v812 = vsel %vm594, %v809, -inf
        %813 = vmax.xlane.f32.xlu0 %v812
        %v814 = vpop.xlane.xlu0 %813
        %v815 = vsub.f32 %v809, %v814
        %v816 = vmul.f32 %v815, 1.442695
        %v817 = vpow.pop %v816
        %v818 = vsel %vm594, %v817, 0.0
        %819 = vadd.xlane.f32.xlu0 %v818
        %v820 = vpop.xlane.xlu0 %819
        %v821 = vrcp.pop %v820
        %v822 = vmul.f32 %v817, %v821
        %v823 = vpack.c.bf16 %v822, %v822
        %v825 = vunpack.c.l.b16 %v782
        %v826 = vpack.c.b16 %v825, %v825
        %827 = vrot.lane.b32.xlu0 %v826, 32
        %v828 = vpop.permute.xlu0 %827
        %v830 = vsel %vm594, %v823, 0
        %v833 = vsel %vm610, %v828, 0
        %835 = vmatpush.bf16.msra.mxu0 0
        %836 = vmatpush.bf16.msra.mxu0 0
        %837 = vmatpush.bf16.msra.mxu0 0
        %838 = vmatpush.bf16.msra.mxu0 0
        %839 = vmatpush.bf16.msra.mxu0 0
        %840 = vmatpush.bf16.msra.mxu0 0
        %841 = vmatpush.bf16.msra.mxu0 0
        %842 = vmatpush.bf16.msra.mxu0 %v833
        %843 = vmatmul.bf16.gmra.mxu0 %v830
        %v844 = vpop.f32.mrf.mxu0
        %v845 = vadd.f32 0.0, %v844
        %v846 = vpop.f32.mrf.mxu0
        %847 = vdwg.mxu0
        %v848 = vpack.c.bf16 %v845, %v845
        %850 = vrot.lane.b32.xlu0 %v848, 96
        %v851 = vpop.permute.xlu0 %850
        %vm853 = vcmask 1044224
        %854 = vst.msk [vmem:[#allocation3] sm:$0xf] %vm853, %v851
        %v855 = vld [vmem:[#allocation2 + $0x4] sm:$0xf]
        %v856 = vld [vmem:[#allocation2 + $0xc] sm:$0xf]
        %v857 = vld [vmem:[#allocation2 + $0x14] sm:$0xf]
        %v859 = vsel %vm484, %v855, 0
        %v862 = vsel %vm484, %v856, 0
        %864 = vmatpush.bf16.xpose.msra.mxu0 0
        %865 = vmatpush.bf16.xpose.msra.mxu0 0
        %866 = vmatpush.bf16.xpose.msra.mxu0 0
        %867 = vmatpush.bf16.xpose.msra.mxu0 0
        %868 = vmatpush.bf16.xpose.msra.mxu0 0
        %869 = vmatpush.bf16.xpose.msra.mxu0 0
        %870 = vmatpush.bf16.xpose.msra.mxu0 0
        %871 = vmatpush.bf16.xpose.msra.mxu0 %v862
        %872 = vmatmul.bf16.gmra.mxu0 %v859
        %v873 = vpop.f32.mrf.mxu0
        %v874 = vadd.f32 0.0, %v873
        %v875 = vpop.f32.mrf.mxu0
        %876 = vdwg.mxu0
        %v877 = vsel %vm594, %v874, -inf
        %878 = vmax.xlane.f32.xlu0 %v877
        %v879 = vpop.xlane.xlu0 %878
        %v880 = vsub.f32 %v874, %v879
        %v881 = vmul.f32 %v880, 1.442695
        %v882 = vpow.pop %v881
        %v883 = vsel %vm594, %v882, 0.0
        %884 = vadd.xlane.f32.xlu0 %v883
        %v885 = vpop.xlane.xlu0 %884
        %v886 = vrcp.pop %v885
        %v887 = vmul.f32 %v882, %v886
        %v888 = vpack.c.bf16 %v887, %v887
        %v890 = vsel %vm594, %v888, 0
        %v893 = vsel %vm610, %v857, 0
        %895 = vmatpush.bf16.msra.mxu0 0
        %896 = vmatpush.bf16.msra.mxu0 0
        %897 = vmatpush.bf16.msra.mxu0 0
        %898 = vmatpush.bf16.msra.mxu0 0
        %899 = vmatpush.bf16.msra.mxu0 0
        %900 = vmatpush.bf16.msra.mxu0 0
        %901 = vmatpush.bf16.msra.mxu0 0
        %902 = vmatpush.bf16.msra.mxu0 %v893
        %903 = vmatmul.bf16.gmra.mxu0 %v890
        %v904 = vpop.f32.mrf.mxu0
        %v905 = vadd.f32 0.0, %v904
        %v906 = vpop.f32.mrf.mxu0
        %907 = vdwg.mxu0
        %v908 = vpack.c.bf16 %v905, %v905
        %909 = vst.msk [vmem:[#allocation3 + $0x4] sm:$0xf] %vm628, %v908
        %v910 = vld [vmem:[#allocation2 + $0x4] sm:$0xf]
        %v911 = vld [vmem:[#allocation2 + $0xc] sm:$0xf]
        %v912 = vld [vmem:[#allocation2 + $0x14] sm:$0xf]
        %v914 = vunpack.c.l.b16 %v910
        %v915 = vpack.c.b16 %v914, %v914
        %916 = vrot.lane.b32.xlu0 %v915, 96
        %v917 = vpop.permute.xlu0 %916
        %v919 = vunpack.c.l.b16 %v911
        %v920 = vpack.c.b16 %v919, %v919
        %921 = vrot.lane.b32.xlu0 %v920, 96
        %v922 = vpop.permute.xlu0 %921
        %v924 = vsel %vm484, %v917, 0
        %v927 = vsel %vm484, %v922, 0
        %929 = vmatpush.bf16.xpose.msra.mxu0 0
        %930 = vmatpush.bf16.xpose.msra.mxu0 0
        %931 = vmatpush.bf16.xpose.msra.mxu0 0
        %932 = vmatpush.bf16.xpose.msra.mxu0 0
        %933 = vmatpush.bf16.xpose.msra.mxu0 0
        %934 = vmatpush.bf16.xpose.msra.mxu0 0
        %935 = vmatpush.bf16.xpose.msra.mxu0 0
        %936 = vmatpush.bf16.xpose.msra.mxu0 %v927
        %937 = vmatmul.bf16.gmra.mxu0 %v924
        %v938 = vpop.f32.mrf.mxu0
        %v939 = vadd.f32 0.0, %v938
        %v940 = vpop.f32.mrf.mxu0
        %941 = vdwg.mxu0
        %v942 = vsel %vm594, %v939, -inf
        %943 = vmax.xlane.f32.xlu0 %v942
        %v944 = vpop.xlane.xlu0 %943
        %v945 = vsub.f32 %v939, %v944
        %v946 = vmul.f32 %v945, 1.442695
        %v947 = vpow.pop %v946
        %v948 = vsel %vm594, %v947, 0.0
        %949 = vadd.xlane.f32.xlu0 %v948
        %v950 = vpop.xlane.xlu0 %949
        %v951 = vrcp.pop %v950
        %v952 = vmul.f32 %v947, %v951
        %v953 = vpack.c.bf16 %v952, %v952
        %v955 = vunpack.c.l.b16 %v912
        %v956 = vpack.c.b16 %v955, %v955
        %957 = vrot.lane.b32.xlu0 %v956, 96
        %v958 = vpop.permute.xlu0 %957
        %v960 = vsel %vm594, %v953, 0
        %v963 = vsel %vm610, %v958, 0
        %965 = vmatpush.bf16.msra.mxu0 0
        %966 = vmatpush.bf16.msra.mxu0 0
        %967 = vmatpush.bf16.msra.mxu0 0
        %968 = vmatpush.bf16.msra.mxu0 0
        %969 = vmatpush.bf16.msra.mxu0 0
        %970 = vmatpush.bf16.msra.mxu0 0
        %971 = vmatpush.bf16.msra.mxu0 0
        %972 = vmatpush.bf16.msra.mxu0 %v963
        %973 = vmatmul.bf16.gmra.mxu0 %v960
        %v974 = vpop.f32.mrf.mxu0
        %v975 = vadd.f32 0.0, %v974
        %v976 = vpop.f32.mrf.mxu0
        %977 = vdwg.mxu0
        %v978 = vpack.c.bf16 %v975, %v975
        %980 = vrot.lane.b32.xlu0 %v978, 32
        %v981 = vpop.permute.xlu0 %980
        %983 = vst.msk [vmem:[#allocation3 + $0x4] sm:$0xf] %vm703, %v981
        %v984 = vld [vmem:[#allocation2 + $0x4] sm:$0xf]
        %v985 = vld [vmem:[#allocation2 + $0xc] sm:$0xf]
        %v986 = vld [vmem:[#allocation2 + $0x14] sm:$0xf]
        %v988 = vunpack.c.l.b16 %v984
        %v989 = vpack.c.b16 %v988, %v988
        %990 = vrot.lane.b32.xlu0 %v989, 64
        %v991 = vpop.permute.xlu0 %990
        %v993 = vunpack.c.l.b16 %v985
        %v994 = vpack.c.b16 %v993, %v993
        %995 = vrot.lane.b32.xlu0 %v994, 64
        %v996 = vpop.permute.xlu0 %995
        %v998 = vsel %vm484, %v991, 0
        %v1001 = vsel %vm484, %v996, 0
        %1003 = vmatpush.bf16.xpose.msra.mxu0 0
        %1004 = vmatpush.bf16.xpose.msra.mxu0 0
        %1005 = vmatpush.bf16.xpose.msra.mxu0 0
        %1006 = vmatpush.bf16.xpose.msra.mxu0 0
        %1007 = vmatpush.bf16.xpose.msra.mxu0 0
        %1008 = vmatpush.bf16.xpose.msra.mxu0 0
        %1009 = vmatpush.bf16.xpose.msra.mxu0 0
        %1010 = vmatpush.bf16.xpose.msra.mxu0 %v1001
        %1011 = vmatmul.bf16.gmra.mxu0 %v998
        %v1012 = vpop.f32.mrf.mxu0
        %v1013 = vadd.f32 0.0, %v1012
        %v1014 = vpop.f32.mrf.mxu0
        %1015 = vdwg.mxu0
        %v1016 = vsel %vm594, %v1013, -inf
        %1017 = vmax.xlane.f32.xlu0 %v1016
        %v1018 = vpop.xlane.xlu0 %1017
        %v1019 = vsub.f32 %v1013, %v1018
        %v1020 = vmul.f32 %v1019, 1.442695
        %v1021 = vpow.pop %v1020
        %v1022 = vsel %vm594, %v1021, 0.0
        %1023 = vadd.xlane.f32.xlu0 %v1022
        %v1024 = vpop.xlane.xlu0 %1023
        %v1025 = vrcp.pop %v1024
        %v1026 = vmul.f32 %v1021, %v1025
        %v1027 = vpack.c.bf16 %v1026, %v1026
        %v1029 = vunpack.c.l.b16 %v986
        %v1030 = vpack.c.b16 %v1029, %v1029
        %1031 = vrot.lane.b32.xlu0 %v1030, 64
        %v1032 = vpop.permute.xlu0 %1031
        %v1034 = vsel %vm594, %v1027, 0
        %v1037 = vsel %vm610, %v1032, 0
        %1039 = vmatpush.bf16.msra.mxu0 0
        %1040 = vmatpush.bf16.msra.mxu0 0
        %1041 = vmatpush.bf16.msra.mxu0 0
        %1042 = vmatpush.bf16.msra.mxu0 0
        %1043 = vmatpush.bf16.msra.mxu0 0
        %1044 = vmatpush.bf16.msra.mxu0 0
        %1045 = vmatpush.bf16.msra.mxu0 0
        %1046 = vmatpush.bf16.msra.mxu0 %v1037
        %1047 = vmatmul.bf16.gmra.mxu0 %v1034
        %v1048 = vpop.f32.mrf.mxu0
        %v1049 = vadd.f32 0.0, %v1048
        %v1050 = vpop.f32.mrf.mxu0
        %1051 = vdwg.mxu0
        %v1052 = vpack.c.bf16 %v1049, %v1049
        %1054 = vrot.lane.b32.xlu0 %v1052, 64
        %v1055 = vpop.permute.xlu0 %1054
        %1057 = vst.msk [vmem:[#allocation3 + $0x4] sm:$0xf] %vm778, %v1055
        %v1058 = vld [vmem:[#allocation2 + $0x4] sm:$0xf]
        %v1059 = vld [vmem:[#allocation2 + $0xc] sm:$0xf]
        %v1060 = vld [vmem:[#allocation2 + $0x14] sm:$0xf]
        %v1062 = vunpack.c.l.b16 %v1058
        %v1063 = vpack.c.b16 %v1062, %v1062
        %1064 = vrot.lane.b32.xlu0 %v1063, 32
        %v1065 = vpop.permute.xlu0 %1064
        %v1067 = vunpack.c.l.b16 %v1059
        %v1068 = vpack.c.b16 %v1067, %v1067
        %1069 = vrot.lane.b32.xlu0 %v1068, 32
        %v1070 = vpop.permute.xlu0 %1069
        %v1072 = vsel %vm484, %v1065, 0
        %v1075 = vsel %vm484, %v1070, 0
        %1077 = vmatpush.bf16.xpose.msra.mxu0 0
        %1078 = vmatpush.bf16.xpose.msra.mxu0 0
        %1079 = vmatpush.bf16.xpose.msra.mxu0 0
        %1080 = vmatpush.bf16.xpose.msra.mxu0 0
        %1081 = vmatpush.bf16.xpose.msra.mxu0 0
        %1082 = vmatpush.bf16.xpose.msra.mxu0 0
        %1083 = vmatpush.bf16.xpose.msra.mxu0 0
        %1084 = vmatpush.bf16.xpose.msra.mxu0 %v1075
        %1085 = vmatmul.bf16.gmra.mxu0 %v1072
        %v1086 = vpop.f32.mrf.mxu0
        %v1087 = vadd.f32 0.0, %v1086
        %v1088 = vpop.f32.mrf.mxu0
        %1089 = vdwg.mxu0
        %v1090 = vsel %vm594, %v1087, -inf
        %1091 = vmax.xlane.f32.xlu0 %v1090
        %v1092 = vpop.xlane.xlu0 %1091
        %v1093 = vsub.f32 %v1087, %v1092
        %v1094 = vmul.f32 %v1093, 1.442695
        %v1095 = vpow.pop %v1094
        %v1096 = vsel %vm594, %v1095, 0.0
        %1097 = vadd.xlane.f32.xlu0 %v1096
        %v1098 = vpop.xlane.xlu0 %1097
        %v1099 = vrcp.pop %v1098
        %v1100 = vmul.f32 %v1095, %v1099
        %v1101 = vpack.c.bf16 %v1100, %v1100
        %v1103 = vunpack.c.l.b16 %v1060
        %v1104 = vpack.c.b16 %v1103, %v1103
        %1105 = vrot.lane.b32.xlu0 %v1104, 32
        %v1106 = vpop.permute.xlu0 %1105
        %v1108 = vsel %vm594, %v1101, 0
        %v1111 = vsel %vm610, %v1106, 0
        %1113 = vmatpush.bf16.msra.mxu0 0
        %1114 = vmatpush.bf16.msra.mxu0 0
        %1115 = vmatpush.bf16.msra.mxu0 0
        %1116 = vmatpush.bf16.msra.mxu0 0
        %1117 = vmatpush.bf16.msra.mxu0 0
        %1118 = vmatpush.bf16.msra.mxu0 0
        %1119 = vmatpush.bf16.msra.mxu0 0
        %1120 = vmatpush.bf16.msra.mxu0 %v1111
        %1121 = vmatmul.bf16.gmra.mxu0 %v1108
        %v1122 = vpop.f32.mrf.mxu0
        %v1123 = vadd.f32 0.0, %v1122
        %v1124 = vpop.f32.mrf.mxu0
        %1125 = vdwg.mxu0
        %v1126 = vpack.c.bf16 %v1123, %v1123
        %1128 = vrot.lane.b32.xlu0 %v1126, 96
        %v1129 = vpop.permute.xlu0 %1128
        %1131 = vst.msk [vmem:[#allocation3 + $0x4] sm:$0xf] %vm853, %v1129
        %v1132 = vld [vmem:[#allocation3] sm:$0xff]
        %v1133 = vld [vmem:[%s2] sm:$0xf]
        %v1134 = vld [vmem:[%s2 + $0x4] sm:$0xf]
        %v1135 = vld [vmem:[%s2 + $0x8] sm:$0xf]
        %v1136 = vld [vmem:[%s2 + $0xc] sm:$0xf]
        %v1137 = vld [vmem:[%s2 + $0x10] sm:$0xf]
        %v1138 = vld [vmem:[%s2 + $0x14] sm:$0xf]
        %v1139 = vld [vmem:[%s2 + $0x18] sm:$0xf]
        %v1140 = vld [vmem:[%s2 + $0x1c] sm:$0xf]
        %v1141 = vld [vmem:[%s2 + $0x20] sm:$0xf]
        %v1142 = vld [vmem:[%s2 + $0x24] sm:$0xf]
        %v1143 = vld [vmem:[%s2 + $0x28] sm:$0xf]
        %v1144 = vld [vmem:[%s2 + $0x2c] sm:$0xf]
        %v1145 = vld [vmem:[%s2 + $0x30] sm:$0xf]
        %v1146 = vld [vmem:[%s2 + $0x34] sm:$0xf]
        %v1147 = vld [vmem:[%s2 + $0x38] sm:$0xf]
        %v1148 = vld [vmem:[%s2 + $0x3c] sm:$0xf]
        %v1149 = vld [vmem:[%s2 + $0x40] sm:$0xf]
        %v1150 = vld [vmem:[%s2 + $0x44] sm:$0xf]
        %v1151 = vld [vmem:[%s2 + $0x48] sm:$0xf]
        %v1152 = vld [vmem:[%s2 + $0x4c] sm:$0xf]
        %v1153 = vld [vmem:[%s2 + $0x50] sm:$0xf]
        %v1154 = vld [vmem:[%s2 + $0x54] sm:$0xf]
        %v1155 = vld [vmem:[%s2 + $0x58] sm:$0xf]
        %v1156 = vld [vmem:[%s2 + $0x5c] sm:$0xf]
        %v1157 = vld [vmem:[%s2 + $0x60] sm:$0xf]
        %v1158 = vld [vmem:[%s2 + $0x64] sm:$0xf]
        %v1159 = vld [vmem:[%s2 + $0x68] sm:$0xf]
        %v1160 = vld [vmem:[%s2 + $0x6c] sm:$0xf]
        %v1161 = vld [vmem:[%s2 + $0x70] sm:$0xf]
        %v1162 = vld [vmem:[%s2 + $0x74] sm:$0xf]
        %v1163 = vld [vmem:[%s2 + $0x78] sm:$0xf]
        %v1164 = vld [vmem:[%s2 + $0x7c] sm:$0xf]
        %v1165 = vld [vmem:[%s3] sm:$0x1]
        %v1167 = vperm.slane %v1165, 0
        %v1170 = vunpack.c.l.b16 %v1132
        %v1171 = vunpack.c.h.b16 %v1132
        %v1172 = vpack.c.b16 %v1170, %v1170
        %v1173 = vpack.c.b16 %v1171, %v1171
        %v1208 = vunpack.c.l.b16 %v1133
        %v1209 = vunpack.c.l.b16 %v1134
        %v1210 = vunpack.c.l.b16 %v1135
        %v1211 = vunpack.c.l.b16 %v1136
        %v1212 = vunpack.c.l.b16 %v1137
        %v1213 = vunpack.c.l.b16 %v1138
        %v1214 = vunpack.c.l.b16 %v1139
        %v1215 = vunpack.c.l.b16 %v1140
        %v1216 = vunpack.c.l.b16 %v1141
        %v1217 = vunpack.c.l.b16 %v1142
        %v1218 = vunpack.c.l.b16 %v1143
        %v1219 = vunpack.c.l.b16 %v1144
        %v1220 = vunpack.c.l.b16 %v1145
        %v1221 = vunpack.c.l.b16 %v1146
        %v1222 = vunpack.c.l.b16 %v1147
        %v1223 = vunpack.c.l.b16 %v1148
        %v1224 = vunpack.c.l.b16 %v1149
        %v1225 = vunpack.c.l.b16 %v1150
        %v1226 = vunpack.c.l.b16 %v1151
        %v1227 = vunpack.c.l.b16 %v1152
        %v1228 = vunpack.c.l.b16 %v1153
        %v1229 = vunpack.c.l.b16 %v1154
        %v1230 = vunpack.c.l.b16 %v1155
        %v1231 = vunpack.c.l.b16 %v1156
        %v1232 = vunpack.c.l.b16 %v1157
        %v1233 = vunpack.c.l.b16 %v1158
        %v1234 = vunpack.c.l.b16 %v1159
        %v1235 = vunpack.c.l.b16 %v1160
        %v1236 = vunpack.c.l.b16 %v1161
        %v1237 = vunpack.c.l.b16 %v1162
        %v1238 = vunpack.c.l.b16 %v1163
        %v1239 = vunpack.c.l.b16 %v1164
        %v1240 = vpack.c.b16 %v1209, %v1208
        %v1241 = vpack.c.b16 %v1211, %v1210
        %v1242 = vpack.c.b16 %v1213, %v1212
        %v1243 = vpack.c.b16 %v1215, %v1214
        %v1244 = vpack.c.b16 %v1217, %v1216
        %v1245 = vpack.c.b16 %v1219, %v1218
        %v1246 = vpack.c.b16 %v1221, %v1220
        %v1247 = vpack.c.b16 %v1223, %v1222
        %v1248 = vpack.c.b16 %v1225, %v1224
        %v1249 = vpack.c.b16 %v1227, %v1226
        %v1250 = vpack.c.b16 %v1229, %v1228
        %v1251 = vpack.c.b16 %v1231, %v1230
        %v1252 = vpack.c.b16 %v1233, %v1232
        %v1253 = vpack.c.b16 %v1235, %v1234
        %v1254 = vpack.c.b16 %v1237, %v1236
        %v1255 = vpack.c.b16 %v1239, %v1238
        %1272 = vmatpush.bf16.msra.mxu0 %v1247
        %1273 = vmatpush.bf16.msra.mxu0 %v1246
        %1274 = vmatpush.bf16.msra.mxu0 %v1245
        %1275 = vmatpush.bf16.msra.mxu0 %v1244
        %1276 = vmatpush.bf16.msra.mxu0 %v1243
        %1277 = vmatpush.bf16.msra.mxu0 %v1242
        %1278 = vmatpush.bf16.msra.mxu0 %v1241
        %1279 = vmatpush.bf16.msra.mxu0 %v1240
        %1280 = vmatmul.bf16.gmra.mxu0 %v1172
        %v1281 = vpop.f32.mrf.mxu0
        %v1282 = vadd.f32 %v1167, %v1281
        %v1283 = vpop.f32.mrf.mxu0
        %1284 = vdwg.mxu0
        %1285 = vmatpush.bf16.msra.mxu0 %v1255
        %1286 = vmatpush.bf16.msra.mxu0 %v1254
        %1287 = vmatpush.bf16.msra.mxu0 %v1253
        %1288 = vmatpush.bf16.msra.mxu0 %v1252
        %1289 = vmatpush.bf16.msra.mxu0 %v1251
        %1290 = vmatpush.bf16.msra.mxu0 %v1250
        %1291 = vmatpush.bf16.msra.mxu0 %v1249
        %1292 = vmatpush.bf16.msra.mxu0 %v1248
        %1293 = vmatmul.bf16.gmra.mxu0 %v1173
        %v1294 = vpop.f32.mrf.mxu0
        %v1295 = vadd.f32 %v1282, %v1294
        %v1296 = vpop.f32.mrf.mxu0
        %1297 = vdwg.mxu0
        %v1298 = vadd.f32 %v1295, %v410
        %v1299 = vld [vmem:[%s4] sm:$0x1]
        %v1300 = vld [vmem:[%s5] sm:$0x1]
        %v1301 = vsel %vm484, %v1298, 0.0
        %1302 = vadd.xlane.f32.xlu0 %v1301
        %v1303 = vpop.xlane.xlu0 %1302
        %v1304 = vrcp.pop 32.0
        %v1305 = vmul.f32 32.0, %v1304
        %v1306 = vsub.f32 1.0, %v1305
        %v1307 = vmul.f32 %v1304, %v1306
        %v1308 = vadd.f32 %v1304, %v1307
        %vm1309 = vweird.f32 %v1304
        %v1310 = vsel %vm1309, %v1304, %v1308
        %v1311 = vmul.f32 %v1303, %v1310
        %v1312 = vsub.f32 %v1298, %v1311
        %v1313 = vmul.f32 %v1312, %v1312
        %v1314 = vsel %vm484, %v1313, 0.0
        %1315 = vadd.xlane.f32.xlu0 %v1314
        %v1316 = vpop.xlane.xlu0 %1315
        %v1317 = vmul.f32 %v1316, %v1310
        %v1318 = vadd.f32 %v1317, 1e-05
        %v1319 = vrsqrt.pop %v1318
        %v1320 = vmul.f32 %v1319, %v1318
        %v1321 = vmul.f32 %v1320, %v1319
        %v1322 = vmul.f32 0.5, %v1321
        %v1323 = vsub.f32 1.5, %v1322
        %v1324 = vmul.f32 %v1319, %v1323
        %vm1325 = vweird.f32 %v1318
        %vm1326 = vweird.f32 %v1319
        %vm1327 = vmor %vm1325, %vm1326
        %v1328 = vsel %vm1327, %v1319, %v1324
        %v1329 = vmul.f32 %v1312, %v1328
        %v1331 = vperm.slane %v1299, 0
        %v1333 = vmul.f32 %v1329, %v1331
        %v1335 = vperm.slane %v1300, 0
        %v1337 = vadd.f32 %v1333, %v1335
        %v1338 = vpack.c.bf16 %v1337, %v1337
        %v1339 = vld [vmem:[%s6] sm:$0xf]
        %v1340 = vld [vmem:[%s6 + $0x4] sm:$0xf]
        %v1341 = vld [vmem:[%s6 + $0x8] sm:$0xf]
        %v1342 = vld [vmem:[%s6 + $0xc] sm:$0xf]
        %v1343 = vld [vmem:[%s7] sm:$0x1]
        %v1345 = vperm.slane %v1343, 0
        %v1351 = vunpack.c.l.b16 %v1339
        %v1352 = vunpack.c.l.b16 %v1340
        %v1353 = vunpack.c.l.b16 %v1341
        %v1354 = vunpack.c.l.b16 %v1342
        %v1355 = vpack.c.b16 %v1352, %v1351
        %v1356 = vpack.c.b16 %v1354, %v1353
        %v1360 = vsel %vm484, %v1338, 0
        %1362 = vmatpush.bf16.msra.mxu0 0
        %1363 = vmatpush.bf16.msra.mxu0 0
        %1364 = vmatpush.bf16.msra.mxu0 0
        %1365 = vmatpush.bf16.msra.mxu0 0
        %1366 = vmatpush.bf16.msra.mxu0 0
        %1367 = vmatpush.bf16.msra.mxu0 0
        %1368 = vmatpush.bf16.msra.mxu0 %v1356
        %1369 = vmatpush.bf16.msra.mxu0 %v1355
        %1370 = vmatmul.bf16.gmra.mxu0 %v1360
        %v1371 = vpop.f32.mrf.mxu0
        %v1372 = vadd.f32 %v1345, %v1371
        %v1373 = vpop.f32.mrf.mxu0
        %1374 = vdwg.mxu0
        %v1375 = vmax.f32 %v1372, 0.0
        %v1376 = vpack.c.bf16 %v1375, %v1375
        %v1377 = vld [vmem:[%s8] sm:$0xf]
        %v1378 = vld [vmem:[%s8 + $0x4] sm:$0xf]
        %v1379 = vld [vmem:[%s8 + $0x8] sm:$0xf]
        %v1380 = vld [vmem:[%s8 + $0xc] sm:$0xf]
        %v1381 = vld [vmem:[%s8 + $0x10] sm:$0xf]
        %v1382 = vld [vmem:[%s8 + $0x14] sm:$0xf]
        %v1383 = vld [vmem:[%s8 + $0x18] sm:$0xf]
        %v1384 = vld [vmem:[%s8 + $0x1c] sm:$0xf]
        %v1385 = vld [vmem:[%s8 + $0x20] sm:$0xf]
        %v1386 = vld [vmem:[%s8 + $0x24] sm:$0xf]
        %v1387 = vld [vmem:[%s8 + $0x28] sm:$0xf]
        %v1388 = vld [vmem:[%s8 + $0x2c] sm:$0xf]
        %v1389 = vld [vmem:[%s8 + $0x30] sm:$0xf]
        %v1390 = vld [vmem:[%s8 + $0x34] sm:$0xf]
        %v1391 = vld [vmem:[%s8 + $0x38] sm:$0xf]
        %v1392 = vld [vmem:[%s8 + $0x3c] sm:$0xf]
        %v1393 = vld [vmem:[%s9] sm:$0x1]
        %v1395 = vperm.slane %v1393, 0
        %v1413 = vunpack.c.l.b16 %v1377
        %v1414 = vunpack.c.l.b16 %v1378
        %v1415 = vunpack.c.l.b16 %v1379
        %v1416 = vunpack.c.l.b16 %v1380
        %v1417 = vunpack.c.l.b16 %v1381
        %v1418 = vunpack.c.l.b16 %v1382
        %v1419 = vunpack.c.l.b16 %v1383
        %v1420 = vunpack.c.l.b16 %v1384
        %v1421 = vunpack.c.l.b16 %v1385
        %v1422 = vunpack.c.l.b16 %v1386
        %v1423 = vunpack.c.l.b16 %v1387
        %v1424 = vunpack.c.l.b16 %v1388
        %v1425 = vunpack.c.l.b16 %v1389
        %v1426 = vunpack.c.l.b16 %v1390
        %v1427 = vunpack.c.l.b16 %v1391
        %v1428 = vunpack.c.l.b16 %v1392
        %v1429 = vpack.c.b16 %v1414, %v1413
        %v1430 = vpack.c.b16 %v1416, %v1415
        %v1431 = vpack.c.b16 %v1418, %v1417
        %v1432 = vpack.c.b16 %v1420, %v1419
        %v1433 = vpack.c.b16 %v1422, %v1421
        %v1434 = vpack.c.b16 %v1424, %v1423
        %v1435 = vpack.c.b16 %v1426, %v1425
        %v1436 = vpack.c.b16 %v1428, %v1427
        %1445 = vmatpush.bf16.msra.mxu0 %v1436
        %1446 = vmatpush.bf16.msra.mxu0 %v1435
        %1447 = vmatpush.bf16.msra.mxu0 %v1434
        %1448 = vmatpush.bf16.msra.mxu0 %v1433
        %1449 = vmatpush.bf16.msra.mxu0 %v1432
        %1450 = vmatpush.bf16.msra.mxu0 %v1431
        %1451 = vmatpush.bf16.msra.mxu0 %v1430
        %1452 = vmatpush.bf16.msra.mxu0 %v1429
        %1453 = vmatmul.bf16.gmra.mxu0 %v1376
        %v1454 = vpop.f32.mrf.mxu0
        %v1455 = vadd.f32 %v1395, %v1454
        %v1456 = vpop.f32.mrf.mxu0
        %1457 = vdwg.mxu0
        %v1458 = vadd.f32 %v1455, %v1337
        %v1459 = vld [vmem:[%s10] sm:$0x1]
        %v1460 = vld [vmem:[%s11] sm:$0x1]
        %v1461 = vsel %vm484, %v1458, 0.0
        %1462 = vadd.xlane.f32.xlu0 %v1461
        %v1463 = vpop.xlane.xlu0 %1462
        %v1464 = vmul.f32 %v1463, %v1310
        %v1465 = vsub.f32 %v1458, %v1464
        %v1466 = vmul.f32 %v1465, %v1465
        %v1467 = vsel %vm484, %v1466, 0.0
        %1468 = vadd.xlane.f32.xlu0 %v1467
        %v1469 = vpop.xlane.xlu0 %1468
        %v1470 = vmul.f32 %v1469, %v1310
        %v1471 = vadd.f32 %v1470, 1e-05
        %v1472 = vrsqrt.pop %v1471
        %v1473 = vmul.f32 %v1472, %v1471
        %v1474 = vmul.f32 %v1473, %v1472
        %v1475 = vmul.f32 0.5, %v1474
        %v1476 = vsub.f32 1.5, %v1475
        %v1477 = vmul.f32 %v1472, %v1476
        %vm1478 = vweird.f32 %v1471
        %vm1479 = vweird.f32 %v1472
        %vm1480 = vmor %vm1478, %vm1479
        %v1481 = vsel %vm1480, %v1472, %v1477
        %v1482 = vmul.f32 %v1465, %v1481
        %v1484 = vperm.slane %v1459, 0
        %v1486 = vmul.f32 %v1482, %v1484
        %v1488 = vperm.slane %v1460, 0
        %v1490 = vadd.f32 %v1486, %v1488
        %1491 = vst.msk [vmem:[%s404] sm:$0xff] %vm484, %v1490
        %s1492 = sand.u32 %s291, 1
        %s1493 = scalar_lea.sflag [#allocation5], %s1492
        %s1494 = sand.u32 %s291, 1
        %s1495 = smul.addr %s1494, 8
        %s1496 = scalar_lea.vmem [#allocation4], %s1495
        // Predicated region
        $region69: #{tpu_custom_call.1} parent=67 // pred_check
          %p1497 = pneg %p301
        $region70: #{tpu_custom_call.1} parent=67 // pred_check_branch
          %1499 = sbr.rel (%p1497) target = $region72
        $region71: #{tpu_custom_call.1} parent=67 // pred_region
          %1501 = vsyncadd %s1493, 0
          %s1502 = smul.addr %s26, 8
          %s1503 = scalar_lea.hbm %s12, %s1502
          %s1505 = sshll.u32 %s1496, 4
          %s1506 = int_to_ptr.vmem [resolvable:$true] %s1505
          %s1507 = sshll.u32 %s1503, 4
          %s1508 = int_to_ptr.hbm [resolvable:$true] %s1507
          %1510 = dma.vmem_to_hbm [thread:$0]  %s1506, 128, %s1508, %s1493
        $region72: #{tpu_custom_call.1} parent=67 // pred_fallthru
          _
      $region68: #{tpu_custom_call.1} parent=5 // pred_fallthru
        _
      %p1511 = scmp.le.s32.totalorder 2, %s21
      // Predicated region
      $region73: #{tpu_custom_call.1} parent=5 // pred_check
        %p1512 = pneg %p1511
      $region74: #{tpu_custom_call.1} parent=5 // pred_check_branch
        %1514 = sbr.rel (%p1512) target = $region76
      $region75: #{tpu_custom_call.1} parent=5 // pred_region
        %s1515 = ssub.s32 %s21, 2
        // Predicated region
        $region77: #{tpu_custom_call.1} parent=75 // pred_check
          %p1516 = pneg %p307
        $region78: #{tpu_custom_call.1} parent=75 // pred_check_branch
          %1518 = sbr.rel (%p1516) target = $region80
        $region79: #{tpu_custom_call.1} parent=75 // pred_region
          %s1519 = sand.u32 %s292, 1
          %s1520 = scalar_lea.sflag [#allocation5], %s1519
          %s1521 = sand.u32 %s292, 1
          %s1522 = smul.addr %s1521, 8
          %s1523 = scalar_lea.vmem [#allocation4], %s1522
          %1525 = dma.done %s1520, 128
        $region80: #{tpu_custom_call.1} parent=75 // pred_fallthru
          _
      $region76: #{tpu_custom_call.1} parent=5 // pred_fallthru
        _
    $region6: #{tpu_custom_call.1} parent=1 // loop_footer
      %s25 = sadd.s32 1, %s21
    $region7: #{tpu_custom_call.1} parent=1 // loop_footer_branch
      %20 = sbr.rel target = $region3
    $region8: #{tpu_custom_call.1} parent=1 // loop_exit
      _
    %1526 = vsyncpa [#allocation5], 1
    %s1527 = scalar_lea.sflag [#allocation5], 1
    %1528 = vsyncpa %s1527, 1

// kernel: tpu_custom_call.1
$region0: #{tpu_custom_call.1}
  #allocation0 [shape = 'u32[]', space=smem, size = 0x4, offset = 0x4, fixed_abs, tag = 'smem constant byte address 0x4 - core index']
  #allocation1 [shape = 'u32[72,128]{1,0:T(1,128)}', space=vmem, size = 0x9000, scoped, tag = 'internal scratch']
  #allocation2 [shape = 'bf16[8,768]{1,0:T(8,128)(2,1)}', space=vmem, size = 0x3000, scoped, tag = 'scratch operand']
  #allocation3 [shape = 'bf16[8,256]{1,0:T(8,128)(2,1)}', space=vmem, size = 0x1000, scoped, tag = 'scratch operand']
  %s0 = inlined_call_operand.vmem [shape: f32[16,32], index: 0, kind: input, shape index: {}]
  %s1 = inlined_call_operand.vmem [shape: bf16[32,768], index: 1, kind: input, shape index: {}]
  %s2 = inlined_call_operand.vmem [shape: bf16[256,32], index: 2, kind: input, shape index: {}]
  %s3 = inlined_call_operand.vmem [shape: f32[1,32], index: 3, kind: input, shape index: {}]
  %s4 = inlined_call_operand.vmem [shape: f32[1,32], index: 4, kind: input, shape index: {}]
  %s5 = inlined_call_operand.vmem [shape: f32[1,32], index: 5, kind: input, shape index: {}]
  %s6 = inlined_call_operand.vmem [shape: bf16[32,128], index: 6, kind: input, shape index: {}]
  %s7 = inlined_call_operand.vmem [shape: f32[1,128], index: 7, kind: input, shape index: {}]
  %s8 = inlined_call_operand.vmem [shape: bf16[128,32], index: 8, kind: input, shape index: {}]
  %s9 = inlined_call_operand.vmem [shape: f32[1,32], index: 9, kind: input, shape index: {}]
  %s10 = inlined_call_operand.vmem [shape: f32[1,32], index: 10, kind: input, shape index: {}]
  %s11 = inlined_call_operand.vmem [shape: f32[1,32], index: 11, kind: input, shape index: {}]
  %s12 = inlined_call_operand.hbm [shape: f32[16,32], index: 12, kind: output, shape index: {}]
  %s13 = sld [smem:[#allocation0]]
  $region81: #{tpu_custom_call.1} parent=0
    _
  %s15 = ssub.s32 1, %s13
  %s16 = scalar_select 0, %s15, %s13
  $region1: #{tpu_custom_call.1} parent=0
    #allocation4 [shape = 'u8[8192]{0}', space=vmem, size = 0x2000, scoped, tag = 'output window, operand 0']
    #allocation5 [shape = 's32[2]{0}', space=sflag, size = 0x8, scoped, tag = 'scoped memory for tpu_custom_call.1']
    %17 = vsyncpa [#allocation5], 0
    %s18 = scalar_lea.sflag [#allocation5], 1
    %19 = vsyncpa %s18, 0
    loop: start=0, step=1, limit=4
    $region2: #{tpu_custom_call.1} parent=1 // loop_pre_header
      _
    $region3: #{tpu_custom_call.1} parent=1 // loop_header
      %s21 = sphi 0, %s25
      %p22 = scmp.ge.s32.totalorder %s21, 4
      %s31 = sphi 0, %s33
      %s34 = sphi 0, %s31
      %s35 = sphi 0, %s34
      %s51 = sphi 0, %s35
      %s55 = sphi 0, %s55
      %s57 = sphi 0, %s55
      %s58 = sphi 0, %s57
      %s72 = sphi 0, %s58
      %s76 = sphi 0, %s76
      %s78 = sphi 0, %s76
      %s79 = sphi 0, %s78
      %s93 = sphi 0, %s79
      %s97 = sphi 0, %s97
      %s99 = sphi 0, %s97
      %s100 = sphi 0, %s99
      %s114 = sphi 0, %s100
      %s118 = sphi 0, %s118
      %s120 = sphi 0, %s118
      %s121 = sphi 0, %s120
      %s135 = sphi 0, %s121
      %s139 = sphi 0, %s139
      %s141 = sphi 0, %s139
      %s142 = sphi 0, %s141
      %s156 = sphi 0, %s142
      %s160 = sphi 0, %s160
      %s162 = sphi 0, %s160
      %s163 = sphi 0, %s162
      %s177 = sphi 0, %s163
      %s181 = sphi 0, %s181
      %s183 = sphi 0, %s181
      %s184 = sphi 0, %s183
      %s198 = sphi 0, %s184
      %s202 = sphi 0, %s202
      %s204 = sphi 0, %s202
      %s205 = sphi 0, %s204
      %s219 = sphi 0, %s205
      %s223 = sphi 0, %s223
      %s225 = sphi 0, %s223
      %s226 = sphi 0, %s225
      %s240 = sphi 0, %s226
      %s244 = sphi 0, %s244
      %s246 = sphi 0, %s244
      %s247 = sphi 0, %s246
      %s261 = sphi 0, %s247
      %s265 = sphi 0, %s265
      %s267 = sphi 0, %s265
      %s268 = sphi 0, %s267
      %s282 = sphi 0, %s268
      %s288 = sphi 0, %s290
      %s291 = sphi 0, %s288
      %s292 = sphi 0, %s291
      %s308 = sphi 0, %s292
    $region4: #{tpu_custom_call.1} parent=1 // loop_header_branch
      %24 = sbr.rel (%p22) target = $region8
    $region5: #{tpu_custom_call.1} parent=1 // loop_body
      %s26 = ssub.s32 %s21, 1
      %s27 = ssub.s32 %s21, 2
      %s28 = sadd.s32 %s21, 1
      %s29 = ssub.s32 %s21, %s28
      %p30 = scmp.eq.s32.totalorder %s29, 0
      %s32 = sadd.s32 %s31, 1
      %s33 = scalar_select %p30, %s31, %s32
      %p36 = pneg %p30
      %p37 = scmp.eq.s32.totalorder %s21, 1
      %p38 = por %p36, %p37
      %p39 = scmp.ne.s32.totalorder %s31, %s34
      %p40 = scmp.eq.s32.totalorder %s21, 0
      %p41 = por %p39, %p40
      %p42 = scmp.ne.s32.totalorder %s31, %s34
      %p43 = scmp.eq.s32.totalorder %s26, 1
      %p44 = por %p42, %p43
      %p45 = scmp.ne.s32.totalorder %s34, %s35
      %p46 = scmp.eq.s32.totalorder %s26, 0
      %p47 = por %p45, %p46
      %p48 = scmp.ne.s32.totalorder %s34, %s35
      %p49 = scmp.eq.s32.totalorder %s27, 1
      %p50 = por %p48, %p49
      %p52 = scmp.ne.s32.totalorder %s35, %s51
      %p53 = scmp.eq.s32.totalorder %s27, 0
      %p54 = por %p52, %p53
      %s56 = sadd.s32 %s55, 1
      %p59 = scmp.eq.s32.totalorder %s21, 1
      %p60 = scmp.ne.s32.totalorder %s55, %s57
      %p61 = scmp.eq.s32.totalorder %s21, 0
      %p62 = por %p60, %p61
      %p63 = scmp.ne.s32.totalorder %s55, %s57
      %p64 = scmp.eq.s32.totalorder %s26, 1
      %p65 = por %p63, %p64
      %p66 = scmp.ne.s32.totalorder %s57, %s58
      %p67 = scmp.eq.s32.totalorder %s26, 0
      %p68 = por %p66, %p67
      %p69 = scmp.ne.s32.totalorder %s57, %s58
      %p70 = scmp.eq.s32.totalorder %s27, 1
      %p71 = por %p69, %p70
      %p73 = scmp.ne.s32.totalorder %s58, %s72
      %p74 = scmp.eq.s32.totalorder %s27, 0
      %p75 = por %p73, %p74
      %s77 = sadd.s32 %s76, 1
      %p80 = scmp.eq.s32.totalorder %s21, 1
      %p81 = scmp.ne.s32.totalorder %s76, %s78
      %p82 = scmp.eq.s32.totalorder %s21, 0
      %p83 = por %p81, %p82
      %p84 = scmp.ne.s32.totalorder %s76, %s78
      %p85 = scmp.eq.s32.totalorder %s26, 1
      %p86 = por %p84, %p85
      %p87 = scmp.ne.s32.totalorder %s78, %s79
      %p88 = scmp.eq.s32.totalorder %s26, 0
      %p89 = por %p87, %p88
      %p90 = scmp.ne.s32.totalorder %s78, %s79
      %p91 = scmp.eq.s32.totalorder %s27, 1
      %p92 = por %p90, %p91
      %p94 = scmp.ne.s32.totalorder %s79, %s93
      %p95 = scmp.eq.s32.totalorder %s27, 0
      %p96 = por %p94, %p95
      %s98 = sadd.s32 %s97, 1
      %p101 = scmp.eq.s32.totalorder %s21, 1
      %p102 = scmp.ne.s32.totalorder %s97, %s99
      %p103 = scmp.eq.s32.totalorder %s21, 0
      %p104 = por %p102, %p103
      %p105 = scmp.ne.s32.totalorder %s97, %s99
      %p106 = scmp.eq.s32.totalorder %s26, 1
      %p107 = por %p105, %p106
      %p108 = scmp.ne.s32.totalorder %s99, %s100
      %p109 = scmp.eq.s32.totalorder %s26, 0
      %p110 = por %p108, %p109
      %p111 = scmp.ne.s32.totalorder %s99, %s100
      %p112 = scmp.eq.s32.totalorder %s27, 1
      %p113 = por %p111, %p112
      %p115 = scmp.ne.s32.totalorder %s100, %s114
      %p116 = scmp.eq.s32.totalorder %s27, 0
      %p117 = por %p115, %p116
      %s119 = sadd.s32 %s118, 1
      %p122 = scmp.eq.s32.totalorder %s21, 1
      %p123 = scmp.ne.s32.totalorder %s118, %s120
      %p124 = scmp.eq.s32.totalorder %s21, 0
      %p125 = por %p123, %p124
      %p126 = scmp.ne.s32.totalorder %s118, %s120
      %p127 = scmp.eq.s32.totalorder %s26, 1
      %p128 = por %p126, %p127
      %p129 = scmp.ne.s32.totalorder %s120, %s121
      %p130 = scmp.eq.s32.totalorder %s26, 0
      %p131 = por %p129, %p130
      %p132 = scmp.ne.s32.totalorder %s120, %s121
      %p133 = scmp.eq.s32.totalorder %s27, 1
      %p134 = por %p132, %p133
      %p136 = scmp.ne.s32.totalorder %s121, %s135
      %p137 = scmp.eq.s32.totalorder %s27, 0
      %p138 = por %p136, %p137
      %s140 = sadd.s32 %s139, 1
      %p143 = scmp.eq.s32.totalorder %s21, 1
      %p144 = scmp.ne.s32.totalorder %s139, %s141
      %p145 = scmp.eq.s32.totalorder %s21, 0
      %p146 = por %p144, %p145
      %p147 = scmp.ne.s32.totalorder %s139, %s141
      %p148 = scmp.eq.s32.totalorder %s26, 1
      %p149 = por %p147, %p148
      %p150 = scmp.ne.s32.totalorder %s141, %s142
      %p151 = scmp.eq.s32.totalorder %s26, 0
      %p152 = por %p150, %p151
      %p153 = scmp.ne.s32.totalorder %s141, %s142
      %p154 = scmp.eq.s32.totalorder %s27, 1
      %p155 = por %p153, %p154
      %p157 = scmp.ne.s32.totalorder %s142, %s156
      %p158 = scmp.eq.s32.totalorder %s27, 0
      %p159 = por %p157, %p158
      %s161 = sadd.s32 %s160, 1
      %p164 = scmp.eq.s32.totalorder %s21, 1
      %p165 = scmp.ne.s32.totalorder %s160, %s162
      %p166 = scmp.eq.s32.totalorder %s21, 0
      %p167 = por %p165, %p166
      %p168 = scmp.ne.s32.totalorder %s160, %s162
      %p169 = scmp.eq.s32.totalorder %s26, 1
      %p170 = por %p168, %p169
      %p171 = scmp.ne.s32.totalorder %s162, %s163
      %p172 = scmp.eq.s32.totalorder %s26, 0
      %p173 = por %p171, %p172
      %p174 = scmp.ne.s32.totalorder %s162, %s163
      %p175 = scmp.eq.s32.totalorder %s27, 1
      %p176 = por %p174, %p175
      %p178 = scmp.ne.s32.totalorder %s163, %s177
      %p179 = scmp.eq.s32.totalorder %s27, 0
      %p180 = por %p178, %p179
      %s182 = sadd.s32 %s181, 1
      %p185 = scmp.eq.s32.totalorder %s21, 1
      %p186 = scmp.ne.s32.totalorder %s181, %s183
      %p187 = scmp.eq.s32.totalorder %s21, 0
      %p188 = por %p186, %p187
      %p189 = scmp.ne.s32.totalorder %s181, %s183
      %p190 = scmp.eq.s32.totalorder %s26, 1
      %p191 = por %p189, %p190
      %p192 = scmp.ne.s32.totalorder %s183, %s184
      %p193 = scmp.eq.s32.totalorder %s26, 0
      %p194 = por %p192, %p193
      %p195 = scmp.ne.s32.totalorder %s183, %s184
      %p196 = scmp.eq.s32.totalorder %s27, 1
      %p197 = por %p195, %p196
      %p199 = scmp.ne.s32.totalorder %s184, %s198
      %p200 = scmp.eq.s32.totalorder %s27, 0
      %p201 = por %p199, %p200
      %s203 = sadd.s32 %s202, 1
      %p206 = scmp.eq.s32.totalorder %s21, 1
      %p207 = scmp.ne.s32.totalorder %s202, %s204
      %p208 = scmp.eq.s32.totalorder %s21, 0
      %p209 = por %p207, %p208
      %p210 = scmp.ne.s32.totalorder %s202, %s204
      %p211 = scmp.eq.s32.totalorder %s26, 1
      %p212 = por %p210, %p211
      %p213 = scmp.ne.s32.totalorder %s204, %s205
      %p214 = scmp.eq.s32.totalorder %s26, 0
      %p215 = por %p213, %p214
      %p216 = scmp.ne.s32.totalorder %s204, %s205
      %p217 = scmp.eq.s32.totalorder %s27, 1
      %p218 = por %p216, %p217
      %p220 = scmp.ne.s32.totalorder %s205, %s219
      %p221 = scmp.eq.s32.totalorder %s27, 0
      %p222 = por %p220, %p221
      %s224 = sadd.s32 %s223, 1
      %p227 = scmp.eq.s32.totalorder %s21, 1
      %p228 = scmp.ne.s32.totalorder %s223, %s225
      %p229 = scmp.eq.s32.totalorder %s21, 0
      %p230 = por %p228, %p229
      %p231 = scmp.ne.s32.totalorder %s223, %s225
      %p232 = scmp.eq.s32.totalorder %s26, 1
      %p233 = por %p231, %p232
      %p234 = scmp.ne.s32.totalorder %s225, %s226
      %p235 = scmp.eq.s32.totalorder %s26, 0
      %p236 = por %p234, %p235
      %p237 = scmp.ne.s32.totalorder %s225, %s226
      %p238 = scmp.eq.s32.totalorder %s27, 1
      %p239 = por %p237, %p238
      %p241 = scmp.ne.s32.totalorder %s226, %s240
      %p242 = scmp.eq.s32.totalorder %s27, 0
      %p243 = por %p241, %p242
      %s245 = sadd.s32 %s244, 1
      %p248 = scmp.eq.s32.totalorder %s21, 1
      %p249 = scmp.ne.s32.totalorder %s244, %s246
      %p250 = scmp.eq.s32.totalorder %s21, 0
      %p251 = por %p249, %p250
      %p252 = scmp.ne.s32.totalorder %s244, %s246
      %p253 = scmp.eq.s32.totalorder %s26, 1
      %p254 = por %p252, %p253
      %p255 = scmp.ne.s32.totalorder %s246, %s247
      %p256 = scmp.eq.s32.totalorder %s26, 0
      %p257 = por %p255, %p256
      %p258 = scmp.ne.s32.totalorder %s246, %s247
      %p259 = scmp.eq.s32.totalorder %s27, 1
      %p260 = por %p258, %p259
      %p262 = scmp.ne.s32.totalorder %s247, %s261
      %p263 = scmp.eq.s32.totalorder %s27, 0
      %p264 = por %p262, %p263
      %s266 = sadd.s32 %s265, 1
      %p269 = scmp.eq.s32.totalorder %s21, 1
      %p270 = scmp.ne.s32.totalorder %s265, %s267
      %p271 = scmp.eq.s32.totalorder %s21, 0
      %p272 = por %p270, %p271
      %p273 = scmp.ne.s32.totalorder %s265, %s267
      %p274 = scmp.eq.s32.totalorder %s26, 1
      %p275 = por %p273, %p274
      %p276 = scmp.ne.s32.totalorder %s267, %s268
      %p277 = scmp.eq.s32.totalorder %s26, 0
      %p278 = por %p276, %p277
      %p279 = scmp.ne.s32.totalorder %s267, %s268
      %p280 = scmp.eq.s32.totalorder %s27, 1
      %p281 = por %p279, %p280
      %p283 = scmp.ne.s32.totalorder %s268, %s282
      %p284 = scmp.eq.s32.totalorder %s27, 0
      %p285 = por %p283, %p284
      %s286 = ssub.s32 %s21, %s28
      %p287 = scmp.eq.s32.totalorder %s286, 0
      %s289 = sadd.s32 %s288, 1
      %s290 = scalar_select %p287, %s288, %s289
      %p293 = pneg %p287
      %p294 = scmp.eq.s32.totalorder %s21, 1
      %p295 = por %p293, %p294
      %p296 = scmp.ne.s32.totalorder %s288, %s291
      %p297 = scmp.eq.s32.totalorder %s21, 0
      %p298 = por %p296, %p297
      %p299 = scmp.ne.s32.totalorder %s288, %s291
      %p300 = scmp.eq.s32.totalorder %s26, 1
      %p301 = por %p299, %p300
      %p302 = scmp.ne.s32.totalorder %s291, %s292
      %p303 = scmp.eq.s32.totalorder %s26, 0
      %p304 = por %p302, %p303
      %p305 = scmp.ne.s32.totalorder %s291, %s292
      %p306 = scmp.eq.s32.totalorder %s27, 1
      %p307 = por %p305, %p306
      %p309 = scmp.ne.s32.totalorder %s292, %s308
      %p310 = scmp.eq.s32.totalorder %s27, 0
      %p311 = por %p309, %p310
      %p312 = scmp.le.s32.totalorder 1, %s21
      %p313 = scmp.lt.s32.totalorder %s21, 3
      %p314 = pnand %p312, %p313
      %p315 = pneg %p314
      // Predicated region
      $region9: #{tpu_custom_call.1} parent=5 // pred_check
        _
      $region10: #{tpu_custom_call.1} parent=5 // pred_check_branch
        %317 = sbr.rel (%p314) target = $region12
      $region11: #{tpu_custom_call.1} parent=5 // pred_region
        %s318 = ssub.s32 %s21, 1
        // Predicated region
        $region13: #{tpu_custom_call.1} parent=11 // pred_check
          %p319 = pneg %p68
        $region14: #{tpu_custom_call.1} parent=11 // pred_check_branch
          %321 = sbr.rel (%p319) target = $region16
        $region15: #{tpu_custom_call.1} parent=11 // pred_region
          _
        $region16: #{tpu_custom_call.1} parent=11 // pred_fallthru
          _
        // Predicated region
        $region17: #{tpu_custom_call.1} parent=11 // pred_check
          %p322 = pneg %p89
        $region18: #{tpu_custom_call.1} parent=11 // pred_check_branch
          %324 = sbr.rel (%p322) target = $region20
        $region19: #{tpu_custom_call.1} parent=11 // pred_region
          _
        $region20: #{tpu_custom_call.1} parent=11 // pred_fallthru
          _
        // Predicated region
        $region21: #{tpu_custom_call.1} parent=11 // pred_check
          %p325 = pneg %p110
        $region22: #{tpu_custom_call.1} parent=11 // pred_check_branch
          %327 = sbr.rel (%p325) target = $region24
        $region23: #{tpu_custom_call.1} parent=11 // pred_region
          _
        $region24: #{tpu_custom_call.1} parent=11 // pred_fallthru
          _
        // Predicated region
        $region25: #{tpu_custom_call.1} parent=11 // pred_check
          %p328 = pneg %p131
        $region26: #{tpu_custom_call.1} parent=11 // pred_check_branch
          %330 = sbr.rel (%p328) target = $region28
        $region27: #{tpu_custom_call.1} parent=11 // pred_region
          _
        $region28: #{tpu_custom_call.1} parent=11 // pred_fallthru
          _
        // Predicated region
        $region29: #{tpu_custom_call.1} parent=11 // pred_check
          %p331 = pneg %p152
        $region30: #{tpu_custom_call.1} parent=11 // pred_check_branch
          %333 = sbr.rel (%p331) target = $region32
        $region31: #{tpu_custom_call.1} parent=11 // pred_region
          _
        $region32: #{tpu_custom_call.1} parent=11 // pred_fallthru
          _
        // Predicated region
        $region33: #{tpu_custom_call.1} parent=11 // pred_check
          %p334 = pneg %p173
        $region34: #{tpu_custom_call.1} parent=11 // pred_check_branch
          %336 = sbr.rel (%p334) target = $region36
        $region35: #{tpu_custom_call.1} parent=11 // pred_region
          _
        $region36: #{tpu_custom_call.1} parent=11 // pred_fallthru
          _
        // Predicated region
        $region37: #{tpu_custom_call.1} parent=11 // pred_check
          %p337 = pneg %p194
        $region38: #{tpu_custom_call.1} parent=11 // pred_check_branch
          %339 = sbr.rel (%p337) target = $region40
        $region39: #{tpu_custom_call.1} parent=11 // pred_region
          _
        $region40: #{tpu_custom_call.1} parent=11 // pred_fallthru
          _
        // Predicated region
        $region41: #{tpu_custom_call.1} parent=11 // pred_check
          %p340 = pneg %p215
        $region42: #{tpu_custom_call.1} parent=11 // pred_check_branch
          %342 = sbr.rel (%p340) target = $region44
        $region43: #{tpu_custom_call.1} parent=11 // pred_region
          _
        $region44: #{tpu_custom_call.1} parent=11 // pred_fallthru
          _
        // Predicated region
        $region45: #{tpu_custom_call.1} parent=11 // pred_check
          %p343 = pneg %p236
        $region46: #{tpu_custom_call.1} parent=11 // pred_check_branch
          %345 = sbr.rel (%p343) target = $region48
        $region47: #{tpu_custom_call.1} parent=11 // pred_region
          _
        $region48: #{tpu_custom_call.1} parent=11 // pred_fallthru
          _
        // Predicated region
        $region49: #{tpu_custom_call.1} parent=11 // pred_check
          %p346 = pneg %p257
        $region50: #{tpu_custom_call.1} parent=11 // pred_check_branch
          %348 = sbr.rel (%p346) target = $region52
        $region51: #{tpu_custom_call.1} parent=11 // pred_region
          _
        $region52: #{tpu_custom_call.1} parent=11 // pred_fallthru
          _
        // Predicated region
        $region53: #{tpu_custom_call.1} parent=11 // pred_check
          %p349 = pneg %p278
        $region54: #{tpu_custom_call.1} parent=11 // pred_check_branch
          %351 = sbr.rel (%p349) target = $region56
        $region55: #{tpu_custom_call.1} parent=11 // pred_region
          _
        $region56: #{tpu_custom_call.1} parent=11 // pred_fallthru
          _
      $region12: #{tpu_custom_call.1} parent=5 // pred_fallthru
        _
      %p352 = scmp.lt.s32.totalorder %s21, 2
      // Predicated region
      $region57: #{tpu_custom_call.1} parent=5 // pred_check
        %p353 = pneg %p352
      $region58: #{tpu_custom_call.1} parent=5 // pred_check_branch
        %355 = sbr.rel (%p353) target = $region60
      $region59: #{tpu_custom_call.1} parent=5 // pred_region
        // Predicated region
        $region61: #{tpu_custom_call.1} parent=59 // pred_check
          %p356 = pneg %p41
        $region62: #{tpu_custom_call.1} parent=59 // pred_check_branch
          %358 = sbr.rel (%p356) target = $region64
        $region63: #{tpu_custom_call.1} parent=59 // pred_region
          %p359 = scmp.lt.s32.totalorder %s21, 1
          %s360 = scalar_select %p359, %s21, 1
          %s361 = smul.addr %s360, 8
          %s362 = scalar_lea.vmem %s0, %s361
        $region64: #{tpu_custom_call.1} parent=59 // pred_fallthru
          _
      $region60: #{tpu_custom_call.1} parent=5 // pred_fallthru
        _
      %p363 = scmp.le.s32.totalorder 1, %s21
      %p364 = scmp.lt.s32.totalorder %s21, 3
      %p365 = pnand %p363, %p364
      %p366 = pneg %p365
      // Predicated region
      $region65: #{tpu_custom_call.1} parent=5 // pred_check
        _
      $region66: #{tpu_custom_call.1} parent=5 // pred_check_branch
        %368 = sbr.rel (%p365) target = $region68
      $region67: #{tpu_custom_call.1} parent=5 // pred_region
        %s369 = ssub.s32 %s21, 1
        %p370 = scmp.lt.s32.totalorder %s26, 1
        %s371 = scalar_select %p370, %s26, 1
        %s372 = smul.addr %s371, 8
        %s373 = scalar_lea.vmem %s0, %s372
        %p374 = pneg %p47
        %p375 = pneg %p44
        %p376 = pneg %p68
        %p377 = pneg %p65
        %p378 = pneg %p89
        %p379 = pneg %p86
        %p380 = pneg %p110
        %p381 = pneg %p107
        %p382 = pneg %p131
        %p383 = pneg %p128
        %p384 = pneg %p152
        %p385 = pneg %p149
        %p386 = pneg %p173
        %p387 = pneg %p170
        %p388 = pneg %p194
        %p389 = pneg %p191
        %p390 = pneg %p215
        %p391 = pneg %p212
        %p392 = pneg %p236
        %p393 = pneg %p233
        %p394 = pneg %p257
        %p395 = pneg %p254
        %p396 = pneg %p278
        %p397 = pneg %p275
        %p398 = pneg %p304
        %p399 = pneg %p301
        %s400 = sand.u32 %s291, 1
        %s401 = scalar_lea.sflag [#allocation5], %s400
        %s402 = sand.u32 %s291, 1
        %s403 = smul.addr %s402, 8
        %s404 = scalar_lea.vmem [#allocation4], %s403
        %p405 = scmp.lt.s32.totalorder %s26, 1
        %s406 = scalar_select %p405, %s26, 1
        %s407 = smul.addr %s406, 8
        %s408 = scalar_lea.vmem %s0, %s407
        %v410 = vld [vmem:[%s408] sm:$0xff]
        %v411 = vpack.c.bf16 %v410, %v410
        %v412 = vld [vmem:[%s1] sm:$0xff]
        %v413 = vld [vmem:[%s1 + $0x8] sm:$0xff]
        %v414 = vld [vmem:[%s1 + $0x10] sm:$0xff]
        %v415 = vld [vmem:[%s1 + $0x18] sm:$0xff]
        %v416 = vld [vmem:[%s1 + $0x20] sm:$0xff]
        %v417 = vld [vmem:[%s1 + $0x28] sm:$0xff]
        %v418 = vld [vmem:[%s1 + $0x30] sm:$0xff]
        %v419 = vld [vmem:[%s1 + $0x38] sm:$0xff]
        %v420 = vld [vmem:[%s1 + $0x40] sm:$0xff]
        %v421 = vld [vmem:[%s1 + $0x48] sm:$0xff]
        %v422 = vld [vmem:[%s1 + $0x50] sm:$0xff]
        %v423 = vld [vmem:[%s1 + $0x58] sm:$0xff]
        %v436 = vunpack.c.l.b16 %v412
        %v437 = vunpack.c.h.b16 %v412
        %v438 = vunpack.c.l.b16 %v413
        %v439 = vunpack.c.h.b16 %v413
        %v440 = vunpack.c.l.b16 %v414
        %v441 = vunpack.c.h.b16 %v414
        %v442 = vunpack.c.l.b16 %v415
        %v443 = vunpack.c.h.b16 %v415
        %v444 = vunpack.c.l.b16 %v416
        %v445 = vunpack.c.h.b16 %v416
        %v446 = vunpack.c.l.b16 %v417
        %v447 = vunpack.c.h.b16 %v417
        %v448 = vunpack.c.l.b16 %v418
        %v449 = vunpack.c.h.b16 %v418
        %v450 = vunpack.c.l.b16 %v419
        %v451 = vunpack.c.h.b16 %v419
        %v452 = vunpack.c.l.b16 %v420
        %v453 = vunpack.c.h.b16 %v420
        %v454 = vunpack.c.l.b16 %v421
        %v455 = vunpack.c.h.b16 %v421
        %v456 = vunpack.c.l.b16 %v422
        %v457 = vunpack.c.h.b16 %v422
        %v458 = vunpack.c.l.b16 %v423
        %v459 = vunpack.c.h.b16 %v423
        %v460 = vpack.c.b16 %v442, %v436
        %v461 = vpack.c.b16 %v443, %v437
        %v462 = vpack.c.b16 %v444, %v438
        %v463 = vpack.c.b16 %v445, %v439
        %v464 = vpack.c.b16 %v446, %v440
        %v465 = vpack.c.b16 %v447, %v441
        %v466 = vpack.c.b16 %v454, %v448
        %v467 = vpack.c.b16 %v455, %v449
        %v468 = vpack.c.b16 %v456, %v450
        %v469 = vpack.c.b16 %v457, %v451
        %v470 = vpack.c.b16 %v458, %v452
        %v471 = vpack.c.b16 %v459, %v453
        %vm484 = vcmask 261120
        %v486 = vsel %vm484, %v411, 0
        %488 = vmatpush.bf16.msra.mxu0 0
        %489 = vmatpush.bf16.msra.mxu0 0
        %490 = vmatpush.bf16.msra.mxu0 0
        %491 = vmatpush.bf16.msra.mxu0 0
        %492 = vmatpush.bf16.msra.mxu0 0
        %493 = vmatpush.bf16.msra.mxu0 0
        %494 = vmatpush.bf16.msra.mxu0 %v466
        %495 = vmatpush.bf16.msra.mxu0 %v460
        %496 = vmatmul.bf16.gmra.mxu0 %v486
        %v497 = vpop.f32.mrf.mxu0
        %v498 = vadd.f32 0.0, %v497
        %v499 = vpop.f32.mrf.mxu0
        %500 = vdwg.mxu0
        %501 = vmatpush.bf16.msra.mxu0 0
        %502 = vmatpush.bf16.msra.mxu0 0
        %503 = vmatpush.bf16.msra.mxu0 0
        %504 = vmatpush.bf16.msra.mxu0 0
        %505 = vmatpush.bf16.msra.mxu0 0
        %506 = vmatpush.bf16.msra.mxu0 0
        %507 = vmatpush.bf16.msra.mxu0 %v467
        %508 = vmatpush.bf16.msra.mxu0 %v461
        %509 = vmatmul.bf16.gmra.mxu0 %v486
        %v510 = vpop.f32.mrf.mxu0
        %v511 = vadd.f32 0.0, %v510
        %v512 = vpop.f32.mrf.mxu0
        %513 = vdwg.mxu0
        %514 = vmatpush.bf16.msra.mxu0 0
        %515 = vmatpush.bf16.msra.mxu0 0
        %516 = vmatpush.bf16.msra.mxu0 0
        %517 = vmatpush.bf16.msra.mxu0 0
        %518 = vmatpush.bf16.msra.mxu0 0
        %519 = vmatpush.bf16.msra.mxu0 0
        %520 = vmatpush.bf16.msra.mxu0 %v468
        %521 = vmatpush.bf16.msra.mxu0 %v462
        %522 = vmatmul.bf16.gmra.mxu0 %v486
        %v523 = vpop.f32.mrf.mxu0
        %v524 = vadd.f32 0.0, %v523
        %v525 = vpop.f32.mrf.mxu0
        %526 = vdwg.mxu0
        %527 = vmatpush.bf16.msra.mxu0 0
        %528 = vmatpush.bf16.msra.mxu0 0
        %529 = vmatpush.bf16.msra.mxu0 0
        %530 = vmatpush.bf16.msra.mxu0 0
        %531 = vmatpush.bf16.msra.mxu0 0
        %532 = vmatpush.bf16.msra.mxu0 0
        %533 = vmatpush.bf16.msra.mxu0 %v469
        %534 = vmatpush.bf16.msra.mxu0 %v463
        %535 = vmatmul.bf16.gmra.mxu0 %v486
        %v536 = vpop.f32.mrf.mxu0
        %v537 = vadd.f32 0.0, %v536
        %v538 = vpop.f32.mrf.mxu0
        %539 = vdwg.mxu0
        %540 = vmatpush.bf16.msra.mxu0 0
        %541 = vmatpush.bf16.msra.mxu0 0
        %542 = vmatpush.bf16.msra.mxu0 0
        %543 = vmatpush.bf16.msra.mxu0 0
        %544 = vmatpush.bf16.msra.mxu0 0
        %545 = vmatpush.bf16.msra.mxu0 0
        %546 = vmatpush.bf16.msra.mxu0 %v470
        %547 = vmatpush.bf16.msra.mxu0 %v464
        %548 = vmatmul.bf16.gmra.mxu0 %v486
        %v549 = vpop.f32.mrf.mxu0
        %v550 = vadd.f32 0.0, %v549
        %v551 = vpop.f32.mrf.mxu0
        %552 = vdwg.mxu0
        %553 = vmatpush.bf16.msra.mxu0 0
        %554 = vmatpush.bf16.msra.mxu0 0
        %555 = vmatpush.bf16.msra.mxu0 0
        %556 = vmatpush.bf16.msra.mxu0 0
        %557 = vmatpush.bf16.msra.mxu0 0
        %558 = vmatpush.bf16.msra.mxu0 0
        %559 = vmatpush.bf16.msra.mxu0 %v471
        %560 = vmatpush.bf16.msra.mxu0 %v465
        %561 = vmatmul.bf16.gmra.mxu0 %v486
        %v562 = vpop.f32.mrf.mxu0
        %v563 = vadd.f32 0.0, %v562
        %v564 = vpop.f32.mrf.mxu0
        %565 = vdwg.mxu0
        %v566 = vpack.c.bf16 %v511, %v498
        %v567 = vpack.c.bf16 %v537, %v524
        %v568 = vpack.c.bf16 %v563, %v550
        %569 = vst [vmem:[#allocation2] sm:$0xff] %v566
        %570 = vst [vmem:[#allocation2 + $0x8] sm:$0xff] %v567
        %571 = vst [vmem:[#allocation2 + $0x10] sm:$0xff] %v568
        %v572 = vld [vmem:[#allocation2] sm:$0xf]
        %v573 = vld [vmem:[#allocation2 + $0x8] sm:$0xf]
        %v574 = vld [vmem:[#allocation2 + $0x10] sm:$0xf]
        %v576 = vsel %vm484, %v572, 0
        %v579 = vsel %vm484, %v573, 0
        %581 = vmatpush.bf16.xpose.msra.mxu0 0
        %582 = vmatpush.bf16.xpose.msra.mxu0 0
        %583 = vmatpush.bf16.xpose.msra.mxu0 0
        %584 = vmatpush.bf16.xpose.msra.mxu0 0
        %585 = vmatpush.bf16.xpose.msra.mxu0 0
        %586 = vmatpush.bf16.xpose.msra.mxu0 0
        %587 = vmatpush.bf16.xpose.msra.mxu0 0
        %588 = vmatpush.bf16.xpose.msra.mxu0 %v579
        %589 = vmatmul.bf16.gmra.mxu0 %v576
        %v590 = vpop.f32.mrf.mxu0
        %v591 = vadd.f32 0.0, %v590
        %v592 = vpop.f32.mrf.mxu0
        %593 = vdwg.mxu0
        %vm594 = vcmask 64512
        %v595 = vsel %vm594, %v591, -inf
        %596 = vmax.xlane.f32.xlu0 %v595
        %v597 = vpop.xlane.xlu0 %596
        %v598 = vsub.f32 %v591, %v597
        %v599 = vmul.f32 %v598, 1.442695
        %v600 = vpow.pop %v599
        %v601 = vsel %vm594, %v600, 0.0
        %602 = vadd.xlane.f32.xlu0 %v601
        %v603 = vpop.xlane.xlu0 %602
        %v604 = vrcp.pop %v603
        %v605 = vmul.f32 %v600, %v604
        %v606 = vpack.c.bf16 %v605, %v605
        %v608 = vsel %vm594, %v606, 0
        %vm610 = vcmask 1043456
        %v612 = vsel %vm610, %v574, 0
        %614 = vmatpush.bf16.msra.mxu0 0
        %615 = vmatpush.bf16.msra.mxu0 0
        %616 = vmatpush.bf16.msra.mxu0 0
        %617 = vmatpush.bf16.msra.mxu0 0
        %618 = vmatpush.bf16.msra.mxu0 0
        %619 = vmatpush.bf16.msra.mxu0 0
        %620 = vmatpush.bf16.msra.mxu0 0
        %621 = vmatpush.bf16.msra.mxu0 %v612
        %622 = vmatmul.bf16.gmra.mxu0 %v608
        %v623 = vpop.f32.mrf.mxu0
        %v624 = vadd.f32 0.0, %v623
        %v625 = vpop.f32.mrf.mxu0
        %626 = vdwg.mxu0
        %v627 = vpack.c.bf16 %v624, %v624
        %vm628 = vcmask 257024
        %629 = vst.msk [vmem:[#allocation3] sm:$0xf] %vm628, %v627
        %v630 = vld [vmem:[#allocation2] sm:$0xf]
        %v631 = vld [vmem:[#allocation2 + $0x8] sm:$0xf]
        %v632 = vld [vmem:[#allocation2 + $0x10] sm:$0xf]
        %v634 = vunpack.c.l.b16 %v630
        %v635 = vpack.c.b16 %v634, %v634
        %636 = vrot.lane.b32.xlu0 %v635, 96
        %v637 = vpop.permute.xlu0 %636
        %v639 = vunpack.c.l.b16 %v631
        %v640 = vpack.c.b16 %v639, %v639
        %641 = vrot.lane.b32.xlu0 %v640, 96
        %v642 = vpop.permute.xlu0 %641
        %v644 = vsel %vm484, %v637, 0
        %v647 = vsel %vm484, %v642, 0
        %649 = vmatpush.bf16.xpose.msra.mxu0 0
        %650 = vmatpush.bf16.xpose.msra.mxu0 0
        %651 = vmatpush.bf16.xpose.msra.mxu0 0
        %652 = vmatpush.bf16.xpose.msra.mxu0 0
        %653 = vmatpush.bf16.xpose.msra.mxu0 0
        %654 = vmatpush.bf16.xpose.msra.mxu0 0
        %655 = vmatpush.bf16.xpose.msra.mxu0 0
        %656 = vmatpush.bf16.xpose.msra.mxu0 %v647
        %657 = vmatmul.bf16.gmra.mxu0 %v644
        %v658 = vpop.f32.mrf.mxu0
        %v659 = vadd.f32 0.0, %v658
        %v660 = vpop.f32.mrf.mxu0
        %661 = vdwg.mxu0
        %v662 = vsel %vm594, %v659, -inf
        %663 = vmax.xlane.f32.xlu0 %v662
        %v664 = vpop.xlane.xlu0 %663
        %v665 = vsub.f32 %v659, %v664
        %v666 = vmul.f32 %v665, 1.442695
        %v667 = vpow.pop %v666
        %v668 = vsel %vm594, %v667, 0.0
        %669 = vadd.xlane.f32.xlu0 %v668
        %v670 = vpop.xlane.xlu0 %669
        %v671 = vrcp.pop %v670
        %v672 = vmul.f32 %v667, %v671
        %v673 = vpack.c.bf16 %v672, %v672
        %v675 = vunpack.c.l.b16 %v632
        %v676 = vpack.c.b16 %v675, %v675
        %677 = vrot.lane.b32.xlu0 %v676, 96
        %v678 = vpop.permute.xlu0 %677
        %v680 = vsel %vm594, %v673, 0
        %v683 = vsel %vm610, %v678, 0
        %685 = vmatpush.bf16.msra.mxu0 0
        %686 = vmatpush.bf16.msra.mxu0 0
        %687 = vmatpush.bf16.msra.mxu0 0
        %688 = vmatpush.bf16.msra.mxu0 0
        %689 = vmatpush.bf16.msra.mxu0 0
        %690 = vmatpush.bf16.msra.mxu0 0
        %691 = vmatpush.bf16.msra.mxu0 0
        %692 = vmatpush.bf16.msra.mxu0 %v683
        %693 = vmatmul.bf16.gmra.mxu0 %v680
        %v694 = vpop.f32.mrf.mxu0
        %v695 = vadd.f32 0.0, %v694
        %v696 = vpop.f32.mrf.mxu0
        %697 = vdwg.mxu0
        %v698 = vpack.c.bf16 %v695, %v695
        %700 = vrot.lane.b32.xlu0 %v698, 32
        %v701 = vpop.permute.xlu0 %700
        %vm703 = vcmask 519424
        %704 = vst.msk [vmem:[#allocation3] sm:$0xf] %vm703, %v701
        %v705 = vld [vmem:[#allocation2] sm:$0xf]
        %v706 = vld [vmem:[#allocation2 + $0x8] sm:$0xf]
        %v707 = vld [vmem:[#allocation2 + $0x10] sm:$0xf]
        %v709 = vunpack.c.l.b16 %v705
        %v710 = vpack.c.b16 %v709, %v709
        %711 = vrot.lane.b32.xlu0 %v710, 64
        %v712 = vpop.permute.xlu0 %711
        %v714 = vunpack.c.l.b16 %v706
        %v715 = vpack.c.b16 %v714, %v714
        %716 = vrot.lane.b32.xlu0 %v715, 64
        %v717 = vpop.permute.xlu0 %716
        %v719 = vsel %vm484, %v712, 0
        %v722 = vsel %vm484, %v717, 0
        %724 = vmatpush.bf16.xpose.msra.mxu0 0
        %725 = vmatpush.bf16.xpose.msra.mxu0 0
        %726 = vmatpush.bf16.xpose.msra.mxu0 0
        %727 = vmatpush.bf16.xpose.msra.mxu0 0
        %728 = vmatpush.bf16.xpose.msra.mxu0 0
        %729 = vmatpush.bf16.xpose.msra.mxu0 0
        %730 = vmatpush.bf16.xpose.msra.mxu0 0
        %731 = vmatpush.bf16.xpose.msra.mxu0 %v722
        %732 = vmatmul.bf16.gmra.mxu0 %v719
        %v733 = vpop.f32.mrf.mxu0
        %v734 = vadd.f32 0.0, %v733
        %v735 = vpop.f32.mrf.mxu0
        %736 = vdwg.mxu0
        %v737 = vsel %vm594, %v734, -inf
        %738 = vmax.xlane.f32.xlu0 %v737
        %v739 = vpop.xlane.xlu0 %738
        %v740 = vsub.f32 %v734, %v739
        %v741 = vmul.f32 %v740, 1.442695
        %v742 = vpow.pop %v741
        %v743 = vsel %vm594, %v742, 0.0
        %744 = vadd.xlane.f32.xlu0 %v743
        %v745 = vpop.xlane.xlu0 %744
        %v746 = vrcp.pop %v745
        %v747 = vmul.f32 %v742, %v746
        %v748 = vpack.c.bf16 %v747, %v747
        %v750 = vunpack.c.l.b16 %v707
        %v751 = vpack.c.b16 %v750, %v750
        %752 = vrot.lane.b32.xlu0 %v751, 64
        %v753 = vpop.permute.xlu0 %752
        %v755 = vsel %vm594, %v748, 0
        %v758 = vsel %vm610, %v753, 0
        %760 = vmatpush.bf16.msra.mxu0 0
        %761 = vmatpush.bf16.msra.mxu0 0
        %762 = vmatpush.bf16.msra.mxu0 0
        %763 = vmatpush.bf16.msra.mxu0 0
        %764 = vmatpush.bf16.msra.mxu0 0
        %765 = vmatpush.bf16.msra.mxu0 0
        %766 = vmatpush.bf16.msra.mxu0 0
        %767 = vmatpush.bf16.msra.mxu0 %v758
        %768 = vmatmul.bf16.gmra.mxu0 %v755
        %v769 = vpop.f32.mrf.mxu0
        %v770 = vadd.f32 0.0, %v769
        %v771 = vpop.f32.mrf.mxu0
        %772 = vdwg.mxu0
        %v773 = vpack.c.bf16 %v770, %v770
        %775 = vrot.lane.b32.xlu0 %v773, 64
        %v776 = vpop.permute.xlu0 %775
        %vm778 = vcmask 781824
        %779 = vst.msk [vmem:[#allocation3] sm:$0xf] %vm778, %v776
        %v780 = vld [vmem:[#allocation2] sm:$0xf]
        %v781 = vld [vmem:[#allocation2 + $0x8] sm:$0xf]
        %v782 = vld [vmem:[#allocation2 + $0x10] sm:$0xf]
        %v784 = vunpack.c.l.b16 %v780
        %v785 = vpack.c.b16 %v784, %v784
        %786 = vrot.lane.b32.xlu0 %v785, 32
        %v787 = vpop.permute.xlu0 %786
        %v789 = vunpack.c.l.b16 %v781
        %v790 = vpack.c.b16 %v789, %v789
        %791 = vrot.lane.b32.xlu0 %v790, 32
        %v792 = vpop.permute.xlu0 %791
        %v794 = vsel %vm484, %v787, 0
        %v797 = vsel %vm484, %v792, 0
        %799 = vmatpush.bf16.xpose.msra.mxu0 0
        %800 = vmatpush.bf16.xpose.msra.mxu0 0
        %801 = vmatpush.bf16.xpose.msra.mxu0 0
        %802 = vmatpush.bf16.xpose.msra.mxu0 0
        %803 = vmatpush.bf16.xpose.msra.mxu0 0
        %804 = vmatpush.bf16.xpose.msra.mxu0 0
        %805 = vmatpush.bf16.xpose.msra.mxu0 0
        %806 = vmatpush.bf16.xpose.msra.mxu0 %v797
        %807 = vmatmul.bf16.gmra.mxu0 %v794
        %v808 = vpop.f32.mrf.mxu0
        %v809 = vadd.f32 0.0, %v808
        %v810 = vpop.f32.mrf.mxu0
        %811 = vdwg.mxu0
        %v812 = vsel %vm594, %v809, -inf
        %813 = vmax.xlane.f32.xlu0 %v812
        %v814 = vpop.xlane.xlu0 %813
        %v815 = vsub.f32 %v809, %v814
        %v816 = vmul.f32 %v815, 1.442695
        %v817 = vpow.pop %v816
        %v818 = vsel %vm594, %v817, 0.0
        %819 = vadd.xlane.f32.xlu0 %v818
        %v820 = vpop.xlane.xlu0 %819
        %v821 = vrcp.pop %v820
        %v822 = vmul.f32 %v817, %v821
        %v823 = vpack.c.bf16 %v822, %v822
        %v825 = vunpack.c.l.b16 %v782
        %v826 = vpack.c.b16 %v825, %v825
        %827 = vrot.lane.b32.xlu0 %v826, 32
        %v828 = vpop.permute.xlu0 %827
        %v830 = vsel %vm594, %v823, 0
        %v833 = vsel %vm610, %v828, 0
        %835 = vmatpush.bf16.msra.mxu0 0
        %836 = vmatpush.bf16.msra.mxu0 0
        %837 = vmatpush.bf16.msra.mxu0 0
        %838 = vmatpush.bf16.msra.mxu0 0
        %839 = vmatpush.bf16.msra.mxu0 0
        %840 = vmatpush.bf16.msra.mxu0 0
        %841 = vmatpush.bf16.msra.mxu0 0
        %842 = vmatpush.bf16.msra.mxu0 %v833
        %843 = vmatmul.bf16.gmra.mxu0 %v830
        %v844 = vpop.f32.mrf.mxu0
        %v845 = vadd.f32 0.0, %v844
        %v846 = vpop.f32.mrf.mxu0
        %847 = vdwg.mxu0
        %v848 = vpack.c.bf16 %v845, %v845
        %850 = vrot.lane.b32.xlu0 %v848, 96
        %v851 = vpop.permute.xlu0 %850
        %vm853 = vcmask 1044224
        %854 = vst.msk [vmem:[#allocation3] sm:$0xf] %vm853, %v851
        %v855 = vld [vmem:[#allocation2 + $0x4] sm:$0xf]
        %v856 = vld [vmem:[#allocation2 + $0xc] sm:$0xf]
        %v857 = vld [vmem:[#allocation2 + $0x14] sm:$0xf]
        %v859 = vsel %vm484, %v855, 0
        %v862 = vsel %vm484, %v856, 0
        %864 = vmatpush.bf16.xpose.msra.mxu0 0
        %865 = vmatpush.bf16.xpose.msra.mxu0 0
        %866 = vmatpush.bf16.xpose.msra.mxu0 0
        %867 = vmatpush.bf16.xpose.msra.mxu0 0
        %868 = vmatpush.bf16.xpose.msra.mxu0 0
        %869 = vmatpush.bf16.xpose.msra.mxu0 0
        %870 = vmatpush.bf16.xpose.msra.mxu0 0
        %871 = vmatpush.bf16.xpose.msra.mxu0 %v862
        %872 = vmatmul.bf16.gmra.mxu0 %v859
        %v873 = vpop.f32.mrf.mxu0
        %v874 = vadd.f32 0.0, %v873
        %v875 = vpop.f32.mrf.mxu0
        %876 = vdwg.mxu0
        %v877 = vsel %vm594, %v874, -inf
        %878 = vmax.xlane.f32.xlu0 %v877
        %v879 = vpop.xlane.xlu0 %878
        %v880 = vsub.f32 %v874, %v879
        %v881 = vmul.f32 %v880, 1.442695
        %v882 = vpow.pop %v881
        %v883 = vsel %vm594, %v882, 0.0
        %884 = vadd.xlane.f32.xlu0 %v883
        %v885 = vpop.xlane.xlu0 %884
        %v886 = vrcp.pop %v885
        %v887 = vmul.f32 %v882, %v886
        %v888 = vpack.c.bf16 %v887, %v887
        %v890 = vsel %vm594, %v888, 0
        %v893 = vsel %vm610, %v857, 0
        %895 = vmatpush.bf16.msra.mxu0 0
        %896 = vmatpush.bf16.msra.mxu0 0
        %897 = vmatpush.bf16.msra.mxu0 0
        %898 = vmatpush.bf16.msra.mxu0 0
        %899 = vmatpush.bf16.msra.mxu0 0
        %900 = vmatpush.bf16.msra.mxu0 0
        %901 = vmatpush.bf16.msra.mxu0 0
        %902 = vmatpush.bf16.msra.mxu0 %v893
        %903 = vmatmul.bf16.gmra.mxu0 %v890
        %v904 = vpop.f32.mrf.mxu0
        %v905 = vadd.f32 0.0, %v904
        %v906 = vpop.f32.mrf.mxu0
        %907 = vdwg.mxu0
        %v908 = vpack.c.bf16 %v905, %v905
        %909 = vst.msk [vmem:[#allocation3 + $0x4] sm:$0xf] %vm628, %v908
        %v910 = vld [vmem:[#allocation2 + $0x4] sm:$0xf]
        %v911 = vld [vmem:[#allocation2 + $0xc] sm:$0xf]
        %v912 = vld [vmem:[#allocation2 + $0x14] sm:$0xf]
        %v914 = vunpack.c.l.b16 %v910
        %v915 = vpack.c.b16 %v914, %v914
        %916 = vrot.lane.b32.xlu0 %v915, 96
        %v917 = vpop.permute.xlu0 %916
        %v919 = vunpack.c.l.b16 %v911
        %v920 = vpack.c.b16 %v919, %v919
        %921 = vrot.lane.b32.xlu0 %v920, 96
        %v922 = vpop.permute.xlu0 %921
        %v924 = vsel %vm484, %v917, 0
        %v927 = vsel %vm484, %v922, 0
        %929 = vmatpush.bf16.xpose.msra.mxu0 0
        %930 = vmatpush.bf16.xpose.msra.mxu0 0
        %931 = vmatpush.bf16.xpose.msra.mxu0 0
        %932 = vmatpush.bf16.xpose.msra.mxu0 0
        %933 = vmatpush.bf16.xpose.msra.mxu0 0
        %934 = vmatpush.bf16.xpose.msra.mxu0 0
        %935 = vmatpush.bf16.xpose.msra.mxu0 0
        %936 = vmatpush.bf16.xpose.msra.mxu0 %v927
        %937 = vmatmul.bf16.gmra.mxu0 %v924
        %v938 = vpop.f32.mrf.mxu0
        %v939 = vadd.f32 0.0, %v938
        %v940 = vpop.f32.mrf.mxu0
        %941 = vdwg.mxu0
        %v942 = vsel %vm594, %v939, -inf
        %943 = vmax.xlane.f32.xlu0 %v942
        %v944 = vpop.xlane.xlu0 %943
        %v945 = vsub.f32 %v939, %v944
        %v946 = vmul.f32 %v945, 1.442695
        %v947 = vpow.pop %v946
        %v948 = vsel %vm594, %v947, 0.0
        %949 = vadd.xlane.f32.xlu0 %v948
        %v950 = vpop.xlane.xlu0 %949
        %v951 = vrcp.pop %v950
        %v952 = vmul.f32 %v947, %v951
        %v953 = vpack.c.bf16 %v952, %v952
        %v955 = vunpack.c.l.b16 %v912
        %v956 = vpack.c.b16 %v955, %v955
        %957 = vrot.lane.b32.xlu0 %v956, 96
        %v958 = vpop.permute.xlu0 %957
        %v960 = vsel %vm594, %v953, 0
        %v963 = vsel %vm610, %v958, 0
        %965 = vmatpush.bf16.msra.mxu0 0
        %966 = vmatpush.bf16.msra.mxu0 0
        %967 = vmatpush.bf16.msra.mxu0 0
        %968 = vmatpush.bf16.msra.mxu0 0
        %969 = vmatpush.bf16.msra.mxu0 0
        %970 = vmatpush.bf16.msra.mxu0 0
        %971 = vmatpush.bf16.msra.mxu0 0
        %972 = vmatpush.bf16.msra.mxu0 %v963
        %973 = vmatmul.bf16.gmra.mxu0 %v960
        %v974 = vpop.f32.mrf.mxu0
        %v975 = vadd.f32 0.0, %v974
        %v976 = vpop.f32.mrf.mxu0
        %977 = vdwg.mxu0
        %v978 = vpack.c.bf16 %v975, %v975
        %980 = vrot.lane.b32.xlu0 %v978, 32
        %v981 = vpop.permute.xlu0 %980
        %983 = vst.msk [vmem:[#allocation3 + $0x4] sm:$0xf] %vm703, %v981
        %v984 = vld [vmem:[#allocation2 + $0x4] sm:$0xf]
        %v985 = vld [vmem:[#allocation2 + $0xc] sm:$0xf]
        %v986 = vld [vmem:[#allocation2 + $0x14] sm:$0xf]
        %v988 = vunpack.c.l.b16 %v984
        %v989 = vpack.c.b16 %v988, %v988
        %990 = vrot.lane.b32.xlu0 %v989, 64
        %v991 = vpop.permute.xlu0 %990
        %v993 = vunpack.c.l.b16 %v985
        %v994 = vpack.c.b16 %v993, %v993
        %995 = vrot.lane.b32.xlu0 %v994, 64
        %v996 = vpop.permute.xlu0 %995
        %v998 = vsel %vm484, %v991, 0
        %v1001 = vsel %vm484, %v996, 0
        %1003 = vmatpush.bf16.xpose.msra.mxu0 0
        %1004 = vmatpush.bf16.xpose.msra.mxu0 0
        %1005 = vmatpush.bf16.xpose.msra.mxu0 0
        %1006 = vmatpush.bf16.xpose.msra.mxu0 0
        %1007 = vmatpush.bf16.xpose.msra.mxu0 0
        %1008 = vmatpush.bf16.xpose.msra.mxu0 0
        %1009 = vmatpush.bf16.xpose.msra.mxu0 0
        %1010 = vmatpush.bf16.xpose.msra.mxu0 %v1001
        %1011 = vmatmul.bf16.gmra.mxu0 %v998
        %v1012 = vpop.f32.mrf.mxu0
        %v1013 = vadd.f32 0.0, %v1012
        %v1014 = vpop.f32.mrf.mxu0
        %1015 = vdwg.mxu0
        %v1016 = vsel %vm594, %v1013, -inf
        %1017 = vmax.xlane.f32.xlu0 %v1016
        %v1018 = vpop.xlane.xlu0 %1017
        %v1019 = vsub.f32 %v1013, %v1018
        %v1020 = vmul.f32 %v1019, 1.442695
        %v1021 = vpow.pop %v1020
        %v1022 = vsel %vm594, %v1021, 0.0
        %1023 = vadd.xlane.f32.xlu0 %v1022
        %v1024 = vpop.xlane.xlu0 %1023
        %v1025 = vrcp.pop %v1024
        %v1026 = vmul.f32 %v1021, %v1025
        %v1027 = vpack.c.bf16 %v1026, %v1026
        %v1029 = vunpack.c.l.b16 %v986
        %v1030 = vpack.c.b16 %v1029, %v1029
        %1031 = vrot.lane.b32.xlu0 %v1030, 64
        %v1032 = vpop.permute.xlu0 %1031
        %v1034 = vsel %vm594, %v1027, 0
        %v1037 = vsel %vm610, %v1032, 0
        %1039 = vmatpush.bf16.msra.mxu0 0
        %1040 = vmatpush.bf16.msra.mxu0 0
        %1041 = vmatpush.bf16.msra.mxu0 0
        %1042 = vmatpush.bf16.msra.mxu0 0
        %1043 = vmatpush.bf16.msra.mxu0 0
        %1044 = vmatpush.bf16.msra.mxu0 0
        %1045 = vmatpush.bf16.msra.mxu0 0
        %1046 = vmatpush.bf16.msra.mxu0 %v1037
        %1047 = vmatmul.bf16.gmra.mxu0 %v1034
        %v1048 = vpop.f32.mrf.mxu0
        %v1049 = vadd.f32 0.0, %v1048
        %v1050 = vpop.f32.mrf.mxu0
        %1051 = vdwg.mxu0
        %v1052 = vpack.c.bf16 %v1049, %v1049
        %1054 = vrot.lane.b32.xlu0 %v1052, 64
        %v1055 = vpop.permute.xlu0 %1054
        %1057 = vst.msk [vmem:[#allocation3 + $0x4] sm:$0xf] %vm778, %v1055
        %v1058 = vld [vmem:[#allocation2 + $0x4] sm:$0xf]
        %v1059 = vld [vmem:[#allocation2 + $0xc] sm:$0xf]
        %v1060 = vld [vmem:[#allocation2 + $0x14] sm:$0xf]
        %v1062 = vunpack.c.l.b16 %v1058
        %v1063 = vpack.c.b16 %v1062, %v1062
        %1064 = vrot.lane.b32.xlu0 %v1063, 32
        %v1065 = vpop.permute.xlu0 %1064
        %v1067 = vunpack.c.l.b16 %v1059
        %v1068 = vpack.c.b16 %v1067, %v1067
        %1069 = vrot.lane.b32.xlu0 %v1068, 32
        %v1070 = vpop.permute.xlu0 %1069
        %v1072 = vsel %vm484, %v1065, 0
        %v1075 = vsel %vm484, %v1070, 0
        %1077 = vmatpush.bf16.xpose.msra.mxu0 0
        %1078 = vmatpush.bf16.xpose.msra.mxu0 0
        %1079 = vmatpush.bf16.xpose.msra.mxu0 0
        %1080 = vmatpush.bf16.xpose.msra.mxu0 0
        %1081 = vmatpush.bf16.xpose.msra.mxu0 0
        %1082 = vmatpush.bf16.xpose.msra.mxu0 0
        %1083 = vmatpush.bf16.xpose.msra.mxu0 0
        %1084 = vmatpush.bf16.xpose.msra.mxu0 %v1075
        %1085 = vmatmul.bf16.gmra.mxu0 %v1072
        %v1086 = vpop.f32.mrf.mxu0
        %v1087 = vadd.f32 0.0, %v1086
        %v1088 = vpop.f32.mrf.mxu0
        %1089 = vdwg.mxu0
        %v1090 = vsel %vm594, %v1087, -inf
        %1091 = vmax.xlane.f32.xlu0 %v1090
        %v1092 = vpop.xlane.xlu0 %1091
        %v1093 = vsub.f32 %v1087, %v1092
        %v1094 = vmul.f32 %v1093, 1.442695
        %v1095 = vpow.pop %v1094
        %v1096 = vsel %vm594, %v1095, 0.0
        %1097 = vadd.xlane.f32.xlu0 %v1096
        %v1098 = vpop.xlane.xlu0 %1097
        %v1099 = vrcp.pop %v1098
        %v1100 = vmul.f32 %v1095, %v1099
        %v1101 = vpack.c.bf16 %v1100, %v1100
        %v1103 = vunpack.c.l.b16 %v1060
        %v1104 = vpack.c.b16 %v1103, %v1103
        %1105 = vrot.lane.b32.xlu0 %v1104, 32
        %v1106 = vpop.permute.xlu0 %1105
        %v1108 = vsel %vm594, %v1101, 0
        %v1111 = vsel %vm610, %v1106, 0
        %1113 = vmatpush.bf16.msra.mxu0 0
        %1114 = vmatpush.bf16.msra.mxu0 0
        %1115 = vmatpush.bf16.msra.mxu0 0
        %1116 = vmatpush.bf16.msra.mxu0 0
        %1117 = vmatpush.bf16.msra.mxu0 0
        %1118 = vmatpush.bf16.msra.mxu0 0
        %1119 = vmatpush.bf16.msra.mxu0 0
        %1120 = vmatpush.bf16.msra.mxu0 %v1111
        %1121 = vmatmul.bf16.gmra.mxu0 %v1108
        %v1122 = vpop.f32.mrf.mxu0
        %v1123 = vadd.f32 0.0, %v1122
        %v1124 = vpop.f32.mrf.mxu0
        %1125 = vdwg.mxu0
        %v1126 = vpack.c.bf16 %v1123, %v1123
        %1128 = vrot.lane.b32.xlu0 %v1126, 96
        %v1129 = vpop.permute.xlu0 %1128
        %1131 = vst.msk [vmem:[#allocation3 + $0x4] sm:$0xf] %vm853, %v1129
        %v1132 = vld [vmem:[#allocation3] sm:$0xff]
        %v1133 = vld [vmem:[%s2] sm:$0xf]
        %v1134 = vld [vmem:[%s2 + $0x4] sm:$0xf]
        %v1135 = vld [vmem:[%s2 + $0x8] sm:$0xf]
        %v1136 = vld [vmem:[%s2 + $0xc] sm:$0xf]
        %v1137 = vld [vmem:[%s2 + $0x10] sm:$0xf]
        %v1138 = vld [vmem:[%s2 + $0x14] sm:$0xf]
        %v1139 = vld [vmem:[%s2 + $0x18] sm:$0xf]
        %v1140 = vld [vmem:[%s2 + $0x1c] sm:$0xf]
        %v1141 = vld [vmem:[%s2 + $0x20] sm:$0xf]
        %v1142 = vld [vmem:[%s2 + $0x24] sm:$0xf]
        %v1143 = vld [vmem:[%s2 + $0x28] sm:$0xf]
        %v1144 = vld [vmem:[%s2 + $0x2c] sm:$0xf]
        %v1145 = vld [vmem:[%s2 + $0x30] sm:$0xf]
        %v1146 = vld [vmem:[%s2 + $0x34] sm:$0xf]
        %v1147 = vld [vmem:[%s2 + $0x38] sm:$0xf]
        %v1148 = vld [vmem:[%s2 + $0x3c] sm:$0xf]
        %v1149 = vld [vmem:[%s2 + $0x40] sm:$0xf]
        %v1150 = vld [vmem:[%s2 + $0x44] sm:$0xf]
        %v1151 = vld [vmem:[%s2 + $0x48] sm:$0xf]
        %v1152 = vld [vmem:[%s2 + $0x4c] sm:$0xf]
        %v1153 = vld [vmem:[%s2 + $0x50] sm:$0xf]
        %v1154 = vld [vmem:[%s2 + $0x54] sm:$0xf]
        %v1155 = vld [vmem:[%s2 + $0x58] sm:$0xf]
        %v1156 = vld [vmem:[%s2 + $0x5c] sm:$0xf]
        %v1157 = vld [vmem:[%s2 + $0x60] sm:$0xf]
        %v1158 = vld [vmem:[%s2 + $0x64] sm:$0xf]
        %v1159 = vld [vmem:[%s2 + $0x68] sm:$0xf]
        %v1160 = vld [vmem:[%s2 + $0x6c] sm:$0xf]
        %v1161 = vld [vmem:[%s2 + $0x70] sm:$0xf]
        %v1162 = vld [vmem:[%s2 + $0x74] sm:$0xf]
        %v1163 = vld [vmem:[%s2 + $0x78] sm:$0xf]
        %v1164 = vld [vmem:[%s2 + $0x7c] sm:$0xf]
        %v1165 = vld [vmem:[%s3] sm:$0x1]
        %v1167 = vperm.slane %v1165, 0
        %v1170 = vunpack.c.l.b16 %v1132
        %v1171 = vunpack.c.h.b16 %v1132
        %v1172 = vpack.c.b16 %v1170, %v1170
        %v1173 = vpack.c.b16 %v1171, %v1171
        %v1208 = vunpack.c.l.b16 %v1133
        %v1209 = vunpack.c.l.b16 %v1134
        %v1210 = vunpack.c.l.b16 %v1135
        %v1211 = vunpack.c.l.b16 %v1136
        %v1212 = vunpack.c.l.b16 %v1137
        %v1213 = vunpack.c.l.b16 %v1138
        %v1214 = vunpack.c.l.b16 %v1139
        %v1215 = vunpack.c.l.b16 %v1140
        %v1216 = vunpack.c.l.b16 %v1141
        %v1217 = vunpack.c.l.b16 %v1142
        %v1218 = vunpack.c.l.b16 %v1143
        %v1219 = vunpack.c.l.b16 %v1144
        %v1220 = vunpack.c.l.b16 %v1145
        %v1221 = vunpack.c.l.b16 %v1146
        %v1222 = vunpack.c.l.b16 %v1147
        %v1223 = vunpack.c.l.b16 %v1148
        %v1224 = vunpack.c.l.b16 %v1149
        %v1225 = vunpack.c.l.b16 %v1150
        %v1226 = vunpack.c.l.b16 %v1151
        %v1227 = vunpack.c.l.b16 %v1152
        %v1228 = vunpack.c.l.b16 %v1153
        %v1229 = vunpack.c.l.b16 %v1154
        %v1230 = vunpack.c.l.b16 %v1155
        %v1231 = vunpack.c.l.b16 %v1156
        %v1232 = vunpack.c.l.b16 %v1157
        %v1233 = vunpack.c.l.b16 %v1158
        %v1234 = vunpack.c.l.b16 %v1159
        %v1235 = vunpack.c.l.b16 %v1160
        %v1236 = vunpack.c.l.b16 %v1161
        %v1237 = vunpack.c.l.b16 %v1162
        %v1238 = vunpack.c.l.b16 %v1163
        %v1239 = vunpack.c.l.b16 %v1164
        %v1240 = vpack.c.b16 %v1209, %v1208
        %v1241 = vpack.c.b16 %v1211, %v1210
        %v1242 = vpack.c.b16 %v1213, %v1212
        %v1243 = vpack.c.b16 %v1215, %v1214
        %v1244 = vpack.c.b16 %v1217, %v1216
        %v1245 = vpack.c.b16 %v1219, %v1218
        %v1246 = vpack.c.b16 %v1221, %v1220
        %v1247 = vpack.c.b16 %v1223, %v1222
        %v1248 = vpack.c.b16 %v1225, %v1224
        %v1249 = vpack.c.b16 %v1227, %v1226
        %v1250 = vpack.c.b16 %v1229, %v1228
        %v1251 = vpack.c.b16 %v1231, %v1230
        %v1252 = vpack.c.b16 %v1233, %v1232
        %v1253 = vpack.c.b16 %v1235, %v1234
        %v1254 = vpack.c.b16 %v1237, %v1236
        %v1255 = vpack.c.b16 %v1239, %v1238
        %1272 = vmatpush.bf16.msra.mxu0 %v1247
        %1273 = vmatpush.bf16.msra.mxu0 %v1246
        %1274 = vmatpush.bf16.msra.mxu0 %v1245
        %1275 = vmatpush.bf16.msra.mxu0 %v1244
        %1276 = vmatpush.bf16.msra.mxu0 %v1243
        %1277 = vmatpush.bf16.msra.mxu0 %v1242
        %1278 = vmatpush.bf16.msra.mxu0 %v1241
        %1279 = vmatpush.bf16.msra.mxu0 %v1240
        %1280 = vmatmul.bf16.gmra.mxu0 %v1172
        %v1281 = vpop.f32.mrf.mxu0
        %v1282 = vadd.f32 %v1167, %v1281
        %v1283 = vpop.f32.mrf.mxu0
        %1284 = vdwg.mxu0
        %1285 = vmatpush.bf16.msra.mxu0 %v1255
        %1286 = vmatpush.bf16.msra.mxu0 %v1254
        %1287 = vmatpush.bf16.msra.mxu0 %v1253
        %1288 = vmatpush.bf16.msra.mxu0 %v1252
        %1289 = vmatpush.bf16.msra.mxu0 %v1251
        %1290 = vmatpush.bf16.msra.mxu0 %v1250
        %1291 = vmatpush.bf16.msra.mxu0 %v1249
        %1292 = vmatpush.bf16.msra.mxu0 %v1248
        %1293 = vmatmul.bf16.gmra.mxu0 %v1173
        %v1294 = vpop.f32.mrf.mxu0
        %v1295 = vadd.f32 %v1282, %v1294
        %v1296 = vpop.f32.mrf.mxu0
        %1297 = vdwg.mxu0
        %v1298 = vadd.f32 %v1295, %v410
        %v1299 = vld [vmem:[%s4] sm:$0x1]
        %v1300 = vld [vmem:[%s5] sm:$0x1]
        %v1301 = vsel %vm484, %v1298, 0.0
        %1302 = vadd.xlane.f32.xlu0 %v1301
        %v1303 = vpop.xlane.xlu0 %1302
        %v1304 = vrcp.pop 32.0
        %v1305 = vmul.f32 32.0, %v1304
        %v1306 = vsub.f32 1.0, %v1305
        %v1307 = vmul.f32 %v1304, %v1306
        %v1308 = vadd.f32 %v1304, %v1307
        %vm1309 = vweird.f32 %v1304
        %v1310 = vsel %vm1309, %v1304, %v1308
        %v1311 = vmul.f32 %v1303, %v1310
        %v1312 = vsub.f32 %v1298, %v1311
        %v1313 = vmul.f32 %v1312, %v1312
        %v1314 = vsel %vm484, %v1313, 0.0
        %1315 = vadd.xlane.f32.xlu0 %v1314
        %v1316 = vpop.xlane.xlu0 %1315
        %v1317 = vmul.f32 %v1316, %v1310
        %v1318 = vadd.f32 %v1317, 1e-05
        %v1319 = vrsqrt.pop %v1318
        %v1320 = vmul.f32 %v1319, %v1318
        %v1321 = vmul.f32 %v1320, %v1319
        %v1322 = vmul.f32 0.5, %v1321
        %v1323 = vsub.f32 1.5, %v1322
        %v1324 = vmul.f32 %v1319, %v1323
        %vm1325 = vweird.f32 %v1318
        %vm1326 = vweird.f32 %v1319
        %vm1327 = vmor %vm1325, %vm1326
        %v1328 = vsel %vm1327, %v1319, %v1324
        %v1329 = vmul.f32 %v1312, %v1328
        %v1331 = vperm.slane %v1299, 0
        %v1333 = vmul.f32 %v1329, %v1331
        %v1335 = vperm.slane %v1300, 0
        %v1337 = vadd.f32 %v1333, %v1335
        %v1338 = vpack.c.bf16 %v1337, %v1337
        %v1339 = vld [vmem:[%s6] sm:$0xf]
        %v1340 = vld [vmem:[%s6 + $0x4] sm:$0xf]
        %v1341 = vld [vmem:[%s6 + $0x8] sm:$0xf]
        %v1342 = vld [vmem:[%s6 + $0xc] sm:$0xf]
        %v1343 = vld [vmem:[%s7] sm:$0x1]
        %v1345 = vperm.slane %v1343, 0
        %v1351 = vunpack.c.l.b16 %v1339
        %v1352 = vunpack.c.l.b16 %v1340
        %v1353 = vunpack.c.l.b16 %v1341
        %v1354 = vunpack.c.l.b16 %v1342
        %v1355 = vpack.c.b16 %v1352, %v1351
        %v1356 = vpack.c.b16 %v1354, %v1353
        %v1360 = vsel %vm484, %v1338, 0
        %1362 = vmatpush.bf16.msra.mxu0 0
        %1363 = vmatpush.bf16.msra.mxu0 0
        %1364 = vmatpush.bf16.msra.mxu0 0
        %1365 = vmatpush.bf16.msra.mxu0 0
        %1366 = vmatpush.bf16.msra.mxu0 0
        %1367 = vmatpush.bf16.msra.mxu0 0
        %1368 = vmatpush.bf16.msra.mxu0 %v1356
        %1369 = vmatpush.bf16.msra.mxu0 %v1355
        %1370 = vmatmul.bf16.gmra.mxu0 %v1360
        %v1371 = vpop.f32.mrf.mxu0
        %v1372 = vadd.f32 %v1345, %v1371
        %v1373 = vpop.f32.mrf.mxu0
        %1374 = vdwg.mxu0
        %v1375 = vmax.f32 %v1372, 0.0
        %v1376 = vpack.c.bf16 %v1375, %v1375
        %v1377 = vld [vmem:[%s8] sm:$0xf]
        %v1378 = vld [vmem:[%s8 + $0x4] sm:$0xf]
        %v1379 = vld [vmem:[%s8 + $0x8] sm:$0xf]
        %v1380 = vld [vmem:[%s8 + $0xc] sm:$0xf]
        %v1381 = vld [vmem:[%s8 + $0x10] sm:$0xf]
        %v1382 = vld [vmem:[%s8 + $0x14] sm:$0xf]
        %v1383 = vld [vmem:[%s8 + $0x18] sm:$0xf]
        %v1384 = vld [vmem:[%s8 + $0x1c] sm:$0xf]
        %v1385 = vld [vmem:[%s8 + $0x20] sm:$0xf]
        %v1386 = vld [vmem:[%s8 + $0x24] sm:$0xf]
        %v1387 = vld [vmem:[%s8 + $0x28] sm:$0xf]
        %v1388 = vld [vmem:[%s8 + $0x2c] sm:$0xf]
        %v1389 = vld [vmem:[%s8 + $0x30] sm:$0xf]
        %v1390 = vld [vmem:[%s8 + $0x34] sm:$0xf]
        %v1391 = vld [vmem:[%s8 + $0x38] sm:$0xf]
        %v1392 = vld [vmem:[%s8 + $0x3c] sm:$0xf]
        %v1393 = vld [vmem:[%s9] sm:$0x1]
        %v1395 = vperm.slane %v1393, 0
        %v1413 = vunpack.c.l.b16 %v1377
        %v1414 = vunpack.c.l.b16 %v1378
        %v1415 = vunpack.c.l.b16 %v1379
        %v1416 = vunpack.c.l.b16 %v1380
        %v1417 = vunpack.c.l.b16 %v1381
        %v1418 = vunpack.c.l.b16 %v1382
        %v1419 = vunpack.c.l.b16 %v1383
        %v1420 = vunpack.c.l.b16 %v1384
        %v1421 = vunpack.c.l.b16 %v1385
        %v1422 = vunpack.c.l.b16 %v1386
        %v1423 = vunpack.c.l.b16 %v1387
        %v1424 = vunpack.c.l.b16 %v1388
        %v1425 = vunpack.c.l.b16 %v1389
        %v1426 = vunpack.c.l.b16 %v1390
        %v1427 = vunpack.c.l.b16 %v1391
        %v1428 = vunpack.c.l.b16 %v1392
        %v1429 = vpack.c.b16 %v1414, %v1413
        %v1430 = vpack.c.b16 %v1416, %v1415
        %v1431 = vpack.c.b16 %v1418, %v1417
        %v1432 = vpack.c.b16 %v1420, %v1419
        %v1433 = vpack.c.b16 %v1422, %v1421
        %v1434 = vpack.c.b16 %v1424, %v1423
        %v1435 = vpack.c.b16 %v1426, %v1425
        %v1436 = vpack.c.b16 %v1428, %v1427
        %1445 = vmatpush.bf16.msra.mxu0 %v1436
        %1446 = vmatpush.bf16.msra.mxu0 %v1435
        %1447 = vmatpush.bf16.msra.mxu0 %v1434
        %1448 = vmatpush.bf16.msra.mxu0 %v1433
        %1449 = vmatpush.bf16.msra.mxu0 %v1432
        %1450 = vmatpush.bf16.msra.mxu0 %v1431
        %1451 = vmatpush.bf16.msra.mxu0 %v1430
        %1452 = vmatpush.bf16.msra.mxu0 %v1429
        %1453 = vmatmul.bf16.gmra.mxu0 %v1376
        %v1454 = vpop.f32.mrf.mxu0
        %v1455 = vadd.f32 %v1395, %v1454
        %v1456 = vpop.f32.mrf.mxu0
        %1457 = vdwg.mxu0
        %v1458 = vadd.f32 %v1455, %v1337
        %v1459 = vld [vmem:[%s10] sm:$0x1]
        %v1460 = vld [vmem:[%s11] sm:$0x1]
        %v1461 = vsel %vm484, %v1458, 0.0
        %1462 = vadd.xlane.f32.xlu0 %v1461
        %v1463 = vpop.xlane.xlu0 %1462
        %v1464 = vmul.f32 %v1463, %v1310
        %v1465 = vsub.f32 %v1458, %v1464
        %v1466 = vmul.f32 %v1465, %v1465
        %v1467 = vsel %vm484, %v1466, 0.0
        %1468 = vadd.xlane.f32.xlu0 %v1467
        %v1469 = vpop.xlane.xlu0 %1468
        %v1470 = vmul.f32 %v1469, %v1310
        %v1471 = vadd.f32 %v1470, 1e-05
        %v1472 = vrsqrt.pop %v1471
        %v1473 = vmul.f32 %v1472, %v1471
        %v1474 = vmul.f32 %v1473, %v1472
        %v1475 = vmul.f32 0.5, %v1474
        %v1476 = vsub.f32 1.5, %v1475
        %v1477 = vmul.f32 %v1472, %v1476
        %vm1478 = vweird.f32 %v1471
        %vm1479 = vweird.f32 %v1472
        %vm1480 = vmor %vm1478, %vm1479
        %v1481 = vsel %vm1480, %v1472, %v1477
        %v1482 = vmul.f32 %v1465, %v1481
        %v1484 = vperm.slane %v1459, 0
        %v1486 = vmul.f32 %v1482, %v1484
        %v1488 = vperm.slane %v1460, 0
        %v1490 = vadd.f32 %v1486, %v1488
        %1491 = vst.msk [vmem:[%s404] sm:$0xff] %vm484, %v1490
        %s1492 = sand.u32 %s291, 1
        %s1493 = scalar_lea.sflag [#allocation5], %s1492
        %s1494 = sand.u32 %s291, 1
        %s1495 = smul.addr %s1494, 8
        %s1496 = scalar_lea.vmem [#allocation4], %s1495
        // Predicated region
        $region69: #{tpu_custom_call.1} parent=67 // pred_check
          %p1497 = pneg %p301
        $region70: #{tpu_custom_call.1} parent=67 // pred_check_branch
          %1499 = sbr.rel (%p1497) target = $region72
        $region71: #{tpu_custom_call.1} parent=67 // pred_region
          %1501 = vsyncadd %s1493, 0
          %s1502 = smul.addr %s26, 8
          %s1503 = scalar_lea.hbm %s12, %s1502
          %s1505 = sshll.u32 %s1496, 4
          %s1506 = int_to_ptr.vmem [resolvable:$true] %s1505
          %s1507 = sshll.u32 %s1503, 4
          %s1508 = int_to_ptr.hbm [resolvable:$true] %s1507
          %1510 = dma.vmem_to_hbm [thread:$0]  %s1506, 128, %s1508, %s1493
        $region72: #{tpu_custom_call.1} parent=67 // pred_fallthru
          _
      $region68: #{tpu_custom_call.1} parent=5 // pred_fallthru
        _
      %p1511 = scmp.le.s32.totalorder 2, %s21
      // Predicated region
      $region73: #{tpu_custom_call.1} parent=5 // pred_check
        %p1512 = pneg %p1511
      $region74: #{tpu_custom_call.1} parent=5 // pred_check_branch
        %1514 = sbr.rel (%p1512) target = $region76
      $region75: #{tpu_custom_call.1} parent=5 // pred_region
        %s1515 = ssub.s32 %s21, 2
        // Predicated region
        $region77: #{tpu_custom_call.1} parent=75 // pred_check
          %p1516 = pneg %p307
        $region78: #{tpu_custom_call.1} parent=75 // pred_check_branch
          %1518 = sbr.rel (%p1516) target = $region80
        $region79: #{tpu_custom_call.1} parent=75 // pred_region
          %s1519 = sand.u32 %s292, 1
          %s1520 = scalar_lea.sflag [#allocation5], %s1519
          %s1521 = sand.u32 %s292, 1
          %s1522 = smul.addr %s1521, 8
          %s1523 = scalar_lea.vmem [#allocation4], %s1522
          %1525 = dma.done %s1520, 128
        $region80: #{tpu_custom_call.1} parent=75 // pred_fallthru
          _
      $region76: #{tpu_custom_call.1} parent=5 // pred_fallthru
        _
    $region6: #{tpu_custom_call.1} parent=1 // loop_footer
      %s25 = sadd.s32 1, %s21
    $region7: #{tpu_custom_call.1} parent=1 // loop_footer_branch
      %20 = sbr.rel target = $region3
    $region8: #{tpu_custom_call.1} parent=1 // loop_exit
      _
    %1526 = vsyncpa [#allocation5], 1
    %s1527 = scalar_lea.sflag [#allocation5], 1
    %1528 = vsyncpa %s1527, 1

</llo_original>
